<compile_context>
chip_gen: v6e
topology: v6e:2x2x1
jax: 0.10.0
libtpu: 0.0.40
codegen_flags: <defaults>
</compile_context>

<pallas_src>
import functools

import jax
import jax.numpy as jnp
from jax.experimental import pallas as pl
from jax.experimental.pallas import tpu as pltpu


# ---------------------------------------------------------------------------
# Fused kernel: embedding gather (manual DMA) + hoisted input projection +
# GRU recurrence over the whole sequence, batched over B sequences.
# ---------------------------------------------------------------------------
def _encoder_gru_kernel(tok_ref, emb_hbm, h0_ref, wih_ref, whh_ref,
                        bih_ref, bhh_ref, out_ref,
                        x_sc, gi_r_sc, gi_z_sc, gi_n_sc, sem, *, T, B):
    # tok_ref:  (T*B,) int32 token ids in SMEM (scalar prefetch), time-major:
    #           row r = t*B + b  holds token (sequence b, timestep t).
    # emb_hbm:  (V, H) embedding table, left in HBM (pl.ANY) - only used rows
    #           are DMA'd, so cost is independent of vocab size.
    # h0_ref:   (B, H)  initial hidden state.
    # wih_ref:  (3, H, H)  W_ih_g^T per gate g in PyTorch order [r, z, n].
    # whh_ref:  (3, H, H)  W_hh_g^T per gate.
    # bih_ref / bhh_ref: (3, 1, H) biases per gate.
    # out_ref:  (T*B, H) outputs (== hidden states) for every (t, b).
    # x_sc:     (T*B, H) gathered embeddings (VMEM scratch).
    # gi_*_sc:  (T*B, H) hoisted input projections per gate (VMEM scratch).
    # sem:      (T*B,) DMA semaphores.
    R = T * B

    # ---- 1) Gather the R used embedding rows HBM -> VMEM.  All DMAs are
    #         issued first so they overlap; then we wait on all of them.
    for r in range(R):
        pltpu.make_async_copy(emb_hbm.at[pl.ds(tok_ref[r], 1), :],
                              x_sc.at[pl.ds(r, 1), :],
                              sem.at[r]).start()
    for r in range(R):
        pltpu.make_async_copy(emb_hbm.at[pl.ds(tok_ref[r], 1), :],
                              x_sc.at[pl.ds(r, 1), :],
                              sem.at[r]).wait()

    # ---- 2) Hoisted input projection (no dependence on h): one MXU matmul
    #         per gate over all T*B rows.  Gate selection is leading-axis.
    x = x_sc[...]
    wih = wih_ref[...]
    bih = bih_ref[...]
    gi_r_sc[...] = jnp.dot(x, wih[0], preferred_element_type=jnp.float32) + bih[0]
    gi_z_sc[...] = jnp.dot(x, wih[1], preferred_element_type=jnp.float32) + bih[1]
    gi_n_sc[...] = jnp.dot(x, wih[2], preferred_element_type=jnp.float32) + bih[2]

    whh = whh_ref[...]
    bhh = bhh_ref[...]
    w_hr, w_hz, w_hn = whh[0], whh[1], whh[2]
    b_hr, b_hz, b_hn = bhh[0], bhh[1], bhh[2]

    # ---- 3) Recurrence: only h @ W_hh_g^T per step; all gate math in f32.
    # TODO(synk): hold W_hh in MXU weight registers across the loop with
    # pltpu.matmul_push_rhs / matmul_acc_lhs for the latency-bound M=B case.
    def step(t, h):
        row0 = pl.multiple_of(t * B, B)
        gi_r = gi_r_sc[pl.ds(row0, B), :]
        gi_z = gi_z_sc[pl.ds(row0, B), :]
        gi_n = gi_n_sc[pl.ds(row0, B), :]
        gh_r = jnp.dot(h, w_hr, preferred_element_type=jnp.float32) + b_hr
        gh_z = jnp.dot(h, w_hz, preferred_element_type=jnp.float32) + b_hz
        gh_n = jnp.dot(h, w_hn, preferred_element_type=jnp.float32) + b_hn
        r_g = jax.nn.sigmoid(gi_r + gh_r)
        z_g = jax.nn.sigmoid(gi_z + gh_z)
        n_g = jnp.tanh(gi_n + r_g * gh_n)
        h_new = (1.0 - z_g) * n_g + z_g * h
        out_ref[pl.ds(row0, B), :] = h_new.astype(out_ref.dtype)
        return h_new

    # Capped unroll: keeps LLO scheduling visibility without blowing up
    # instruction memory / compile time for long sequences.
    jax.lax.fori_loop(0, T, step, h0_ref[...].astype(jnp.float32),
                      unroll=min(T, 8))


def _encoder_gru(tok_flat, emb, h0, wih, whh, bih, bhh, *, T, B):
    V, H = emb.shape
    R = T * B
    grid_spec = pltpu.PrefetchScalarGridSpec(
        num_scalar_prefetch=1,          # token ids -> SMEM, drive the DMA gather
        grid=(1,),
        in_specs=[
            pl.BlockSpec(memory_space=pl.ANY),                   # embedding in HBM
            pl.BlockSpec((B, H), lambda i, toks: (0, 0)),        # h0
            pl.BlockSpec((3, H, H), lambda i, toks: (0, 0, 0)),  # W_ih^T per gate
            pl.BlockSpec((3, H, H), lambda i, toks: (0, 0, 0)),  # W_hh^T per gate
            pl.BlockSpec((3, 1, H), lambda i, toks: (0, 0, 0)),  # b_ih per gate
            pl.BlockSpec((3, 1, H), lambda i, toks: (0, 0, 0)),  # b_hh per gate
        ],
        # Single lane-dense output slab, resident in VMEM, written back once.
        out_specs=pl.BlockSpec((R, H), lambda i, toks: (0, 0)),
        scratch_shapes=[
            pltpu.VMEM((R, H), emb.dtype),      # gathered embeddings
            pltpu.VMEM((R, H), jnp.float32),    # gi_r
            pltpu.VMEM((R, H), jnp.float32),    # gi_z
            pltpu.VMEM((R, H), jnp.float32),    # gi_n
            pltpu.SemaphoreType.DMA((R,)),
        ],
    )
    # NOTE: at production sizes (large H / T) on v7x (64 MiB VMEM): tile T into
    # chunks on the grid, mark the chunk axis "arbitrary", carry h in VMEM
    # scratch, use pipeline_mode=pl.Buffered(1) on the resident weight specs,
    # and set vmem_limit_bytes explicitly.  Unnecessary at these toy sizes.
    return pl.pallas_call(
        functools.partial(_encoder_gru_kernel, T=T, B=B),
        out_shape=jax.ShapeDtypeStruct((R, H), jnp.float32),
        grid_spec=grid_spec,
        compiler_params=pltpu.CompilerParams(
            dimension_semantics=("arbitrary",)),
    )(tok_flat, emb, h0, wih, whh, bih, bhh)


# ---------------------------------------------------------------------------
# Wrappers (PyTorch-equivalent semantics).
# ---------------------------------------------------------------------------
def encoder_rnn_encode_batched(tokens_bt, hidden, params):
    """Run the encoder over B independent sequences in one fused kernel.

    tokens_bt: (B, T) int token ids; hidden: (1, B, H) initial hidden state.
    Returns (outputs (T, B, H), hidden (1, B, H)) — i.e. torch nn.GRU layout.
    """
    emb = params["embedding"]
    V, H = emb.shape
    B, T = tokens_bt.shape
    # Guard OOB ids (PyTorch nn.Embedding would raise; we clamp instead).
    toks = jnp.clip(tokens_bt.astype(jnp.int32), 0, V - 1)
    tok_flat = toks.T.reshape(T * B)                    # time-major: row t*B + b
    h0 = hidden.reshape(B, H).astype(jnp.float32)
    out_flat = _encoder_gru(tok_flat, emb, h0,
                            params["wih"], params["whh"],
                            params["bih"], params["bhh"], T=T, B=B)
    out = out_flat.reshape(T, B, H)
    # GRU output_t == hidden_t, so final hidden is the last timestep.
    return out, out[T - 1].reshape(1, B, H)


def encoder_rnn_encode(tokens, hidden, params):
    """Single sequence: tokens (T,), hidden (1,1,H) -> ((T,1,H), (1,1,H))."""
    out, h = encoder_rnn_encode_batched(tokens.reshape(1, -1),
                                        hidden.reshape(1, 1, -1), params)
    return out, h


def encoder_rnn_forward(token, hidden, params):
    """Single-step forward matching torch EncoderRNN.forward(input, hidden)."""
    return encoder_rnn_encode(jnp.reshape(token, (1,)), hidden, params)


def init_params(key, input_size, hidden_size, dtype=jnp.float32):
    """Embedding ~ N(0,1); GRU weights/biases ~ U(-1/sqrt(H),1/sqrt(H)) (torch).

    Weights are stored per-gate as (3, H, H) = transpose of torch's packed
    (3H, H) weight, so gates are selected by leading-axis index in the kernel.
    On v6e/v7x pass dtype=jnp.bfloat16 to halve weight/embedding DMA bytes.
    """
    k_emb, k_wih, k_whh, k_bih, k_bhh = jax.random.split(key, 5)
    H = hidden_size
    bound = 1.0 / (H ** 0.5)
    emb = jax.random.normal(k_emb, (input_size, H), jnp.float32)
    wih = jax.random.uniform(k_wih, (3 * H, H), jnp.float32, -bound, bound)
    whh = jax.random.uniform(k_whh, (3 * H, H), jnp.float32, -bound, bound)
    bih = jax.random.uniform(k_bih, (3 * H,), jnp.float32, -bound, bound)
    bhh = jax.random.uniform(k_bhh, (3 * H,), jnp.float32, -bound, bound)
    to_gate = lambda w: w.reshape(3, H, H).transpose(0, 2, 1).astype(dtype)
    return {
        "embedding": emb.astype(dtype),          # (V, H)
        "wih": to_gate(wih),                     # (3, H, H), wih[g] = W_ih_g^T
        "whh": to_gate(whh),                     # (3, H, H), whh[g] = W_hh_g^T
        "bih": bih.reshape(3, 1, H).astype(jnp.float32),
        "bhh": bhh.reshape(3, 1, H).astype(jnp.float32),
    }


# ---------------------------------------------------------------------------
# Pure-JAX reference (torch nn.GRU cell semantics, gate order r, z, n).
# ---------------------------------------------------------------------------
def reference_encode(tokens_bt, hidden, params):
    emb = params["embedding"].astype(jnp.float32)
    wih = params["wih"].astype(jnp.float32)
    whh = params["whh"].astype(jnp.float32)
    bih, bhh = params["bih"], params["bhh"]
    B, T = tokens_bt.shape
    H = emb.shape[1]
    h = hidden.reshape(B, H).astype(jnp.float32)
    outs = []
    for t in range(T):
        x = emb[tokens_bt[:, t]]                                  # (B, H)
        gi = [x @ wih[g] + bih[g] for g in range(3)]
        gh = [h @ whh[g] + bhh[g] for g in range(3)]
        r = jax.nn.sigmoid(gi[0] + gh[0])
        z = jax.nn.sigmoid(gi[1] + gh[1])
        n = jnp.tanh(gi[2] + r * gh[2])
        h = (1.0 - z) * n + z * h
        outs.append(h)
    out = jnp.stack(outs, axis=0)                                 # (T, B, H)
    return out, h.reshape(1, B, H)


if __name__ == "__main__":
    input_size = 64      # vocab size
    hidden_size = 32
    seq_len = 8
    batch = 8            # B sequences packed along the sublane axis

    key = jax.random.PRNGKey(0)
    params = init_params(key, input_size, hidden_size)

    # --- Single sequence (the original module's usage pattern). -------------
    tokens = jax.random.randint(jax.random.PRNGKey(1), (seq_len,), 0,
                                input_size, dtype=jnp.int32)
    hidden0 = jnp.zeros((1, 1, hidden_size), jnp.float32)          # initHidden()
    out_seq, h_seq = encoder_rnn_encode(tokens, hidden0, params)
    out_seq = jax.block_until_ready(out_seq)
    h_seq = jax.block_until_ready(h_seq)
    ref_out, ref_h = reference_encode(tokens.reshape(1, -1), hidden0, params)
    assert out_seq.shape == (seq_len, 1, hidden_size)
    assert h_seq.shape == (1, 1, hidden_size)
    assert jnp.allclose(out_seq, ref_out, atol=1e-4, rtol=1e-4)
    assert jnp.allclose(h_seq, ref_h, atol=1e-4, rtol=1e-4)

    # --- Single-step forward: the original (input, hidden)->(output, hidden).
    out1, h1 = encoder_rnn_forward(tokens[:1], hidden0, params)
    out1 = jax.block_until_ready(out1)
    h1 = jax.block_until_ready(h1)
    ref_out1, ref_h1 = reference_encode(tokens[:1].reshape(1, 1), hidden0, params)
    assert out1.shape == (1, 1, hidden_size) and h1.shape == (1, 1, hidden_size)
    assert jnp.allclose(out1, ref_out1, atol=1e-4, rtol=1e-4)
    assert jnp.allclose(h1, ref_h1, atol=1e-4, rtol=1e-4)

    # --- Batched: B independent sequences share every per-step matmul/store.
    tokens_bt = jax.random.randint(jax.random.PRNGKey(2), (batch, seq_len), 0,
                                   input_size, dtype=jnp.int32)
    hidden0_b = jnp.zeros((1, batch, hidden_size), jnp.float32)
    out_b, h_b = encoder_rnn_encode_batched(tokens_bt, hidden0_b, params)
    out_b = jax.block_until_ready(out_b)
    h_b = jax.block_until_ready(h_b)
    ref_out_b, ref_h_b = reference_encode(tokens_bt, hidden0_b, params)
    assert out_b.shape == (seq_len, batch, hidden_size)
    assert h_b.shape == (1, batch, hidden_size)
    assert jnp.allclose(out_b, ref_out_b, atol=1e-4, rtol=1e-4)
    assert jnp.allclose(h_b, ref_h_b, atol=1e-4, rtol=1e-4)

    # TODO(synk): on v7x, add a leading batch grid axis marked "parallel" (or
    # pl.core_map) so the two TensorCores each run half of the batch.
    print("KERNEL_OK")
</pallas_src>

<mosaic_0001>
module attributes {stable_mosaic.version = 11 : i64} {
  func.func @_encoder_gru_kernel(%arg0: i32, %arg1: memref<8xi32, #tpu.memory_space<smem>>, %arg2: memref<64x32xf32, #tpu.memory_space<any>>, %arg3: memref<1x32xf32, #tpu.memory_space<vmem>>, %arg4: memref<3x32x32xf32, #tpu.memory_space<vmem>>, %arg5: memref<3x32x32xf32, #tpu.memory_space<vmem>>, %arg6: memref<3x1x32xf32, #tpu.memory_space<vmem>>, %arg7: memref<3x1x32xf32, #tpu.memory_space<vmem>>, %arg8: memref<8x32xf32, #tpu.memory_space<vmem>>, %arg9: memref<8x32xf32, #tpu.memory_space<vmem>>, %arg10: memref<8x32xf32, #tpu.memory_space<vmem>>, %arg11: memref<8x32xf32, #tpu.memory_space<vmem>>, %arg12: memref<8x32xf32, #tpu.memory_space<vmem>>, %arg13: memref<8x!tpu.dma_semaphore, #tpu.memory_space<semaphore_mem>>) attributes {dimension_semantics = [#tpu.dimension_semantics<arbitrary>], iteration_bounds = array<i64: 1>, scalar_prefetch = 1 : i64, scratch_operands = 5 : i64, tpu.core_type = #tpu.core_type<tc>, window_params = [{}, {pipeline_mode = #tpu.pipeline_mode<synchronous>, transform_indices = @transform_1, window_bounds = array<i64: 1, 32>}, {pipeline_mode = #tpu.pipeline_mode<synchronous>, transform_indices = @transform_2, window_bounds = array<i64: 3, 32, 32>}, {pipeline_mode = #tpu.pipeline_mode<synchronous>, transform_indices = @transform_3, window_bounds = array<i64: 3, 32, 32>}, {pipeline_mode = #tpu.pipeline_mode<synchronous>, transform_indices = @transform_4, window_bounds = array<i64: 3, 1, 32>}, {pipeline_mode = #tpu.pipeline_mode<synchronous>, transform_indices = @transform_5, window_bounds = array<i64: 3, 1, 32>}, {pipeline_mode = #tpu.pipeline_mode<synchronous>, transform_indices = @transform_6, window_bounds = array<i64: 8, 32>}]} {
    %c0 = arith.constant 0 : index
    %0 = memref.load %arg1[%c0] : memref<8xi32, #tpu.memory_space<smem>>
    %c0_i32 = arith.constant 0 : i32
    %c0_i32_0 = arith.constant 0 : i32
    %1 = tpu.memref_slice %arg2[%0, %c0_i32_0] : memref<64x32xf32, #tpu.memory_space<any>> -> memref<1x32xf32, #tpu.memory_space<any>>
    %c0_i32_1 = arith.constant 0 : i32
    %c0_i32_2 = arith.constant 0 : i32
    %2 = tpu.memref_slice %arg9[%c0_i32_1, %c0_i32_2] : memref<8x32xf32, #tpu.memory_space<vmem>> -> memref<1x32xf32, #tpu.memory_space<vmem>>
    %3 = tpu.memref_slice %arg13[%c0_i32] : memref<8x!tpu.dma_semaphore, #tpu.memory_space<semaphore_mem>> -> memref<1x!tpu.dma_semaphore, #tpu.memory_space<semaphore_mem>>
    %4 = tpu.memref_squeeze %3 : memref<1x!tpu.dma_semaphore, #tpu.memory_space<semaphore_mem>> -> memref<!tpu.dma_semaphore, #tpu.memory_space<semaphore_mem>>
    tpu.enqueue_dma source(%1 : memref<1x32xf32, #tpu.memory_space<any>>) target(%2 : memref<1x32xf32, #tpu.memory_space<vmem>>) target_semaphore(%4 : memref<!tpu.dma_semaphore, #tpu.memory_space<semaphore_mem>>)
    %c1 = arith.constant 1 : index
    %5 = memref.load %arg1[%c1] : memref<8xi32, #tpu.memory_space<smem>>
    %c1_i32 = arith.constant 1 : i32
    %c0_i32_3 = arith.constant 0 : i32
    %6 = tpu.memref_slice %arg2[%5, %c0_i32_3] : memref<64x32xf32, #tpu.memory_space<any>> -> memref<1x32xf32, #tpu.memory_space<any>>
    %c1_i32_4 = arith.constant 1 : i32
    %c0_i32_5 = arith.constant 0 : i32
    %7 = tpu.memref_slice %arg9[%c1_i32_4, %c0_i32_5] : memref<8x32xf32, #tpu.memory_space<vmem>> -> memref<1x32xf32, #tpu.memory_space<vmem>>
    %8 = tpu.memref_slice %arg13[%c1_i32] : memref<8x!tpu.dma_semaphore, #tpu.memory_space<semaphore_mem>> -> memref<1x!tpu.dma_semaphore, #tpu.memory_space<semaphore_mem>>
    %9 = tpu.memref_squeeze %8 : memref<1x!tpu.dma_semaphore, #tpu.memory_space<semaphore_mem>> -> memref<!tpu.dma_semaphore, #tpu.memory_space<semaphore_mem>>
    tpu.enqueue_dma source(%6 : memref<1x32xf32, #tpu.memory_space<any>>) target(%7 : memref<1x32xf32, #tpu.memory_space<vmem>>) target_semaphore(%9 : memref<!tpu.dma_semaphore, #tpu.memory_space<semaphore_mem>>)
    %c2 = arith.constant 2 : index
    %10 = memref.load %arg1[%c2] : memref<8xi32, #tpu.memory_space<smem>>
    %c2_i32 = arith.constant 2 : i32
    %c0_i32_6 = arith.constant 0 : i32
    %11 = tpu.memref_slice %arg2[%10, %c0_i32_6] : memref<64x32xf32, #tpu.memory_space<any>> -> memref<1x32xf32, #tpu.memory_space<any>>
    %c2_i32_7 = arith.constant 2 : i32
    %c0_i32_8 = arith.constant 0 : i32
    %12 = tpu.memref_slice %arg9[%c2_i32_7, %c0_i32_8] : memref<8x32xf32, #tpu.memory_space<vmem>> -> memref<1x32xf32, #tpu.memory_space<vmem>>
    %13 = tpu.memref_slice %arg13[%c2_i32] : memref<8x!tpu.dma_semaphore, #tpu.memory_space<semaphore_mem>> -> memref<1x!tpu.dma_semaphore, #tpu.memory_space<semaphore_mem>>
    %14 = tpu.memref_squeeze %13 : memref<1x!tpu.dma_semaphore, #tpu.memory_space<semaphore_mem>> -> memref<!tpu.dma_semaphore, #tpu.memory_space<semaphore_mem>>
    tpu.enqueue_dma source(%11 : memref<1x32xf32, #tpu.memory_space<any>>) target(%12 : memref<1x32xf32, #tpu.memory_space<vmem>>) target_semaphore(%14 : memref<!tpu.dma_semaphore, #tpu.memory_space<semaphore_mem>>)
    %c3 = arith.constant 3 : index
    %15 = memref.load %arg1[%c3] : memref<8xi32, #tpu.memory_space<smem>>
    %c3_i32 = arith.constant 3 : i32
    %c0_i32_9 = arith.constant 0 : i32
    %16 = tpu.memref_slice %arg2[%15, %c0_i32_9] : memref<64x32xf32, #tpu.memory_space<any>> -> memref<1x32xf32, #tpu.memory_space<any>>
    %c3_i32_10 = arith.constant 3 : i32
    %c0_i32_11 = arith.constant 0 : i32
    %17 = tpu.memref_slice %arg9[%c3_i32_10, %c0_i32_11] : memref<8x32xf32, #tpu.memory_space<vmem>> -> memref<1x32xf32, #tpu.memory_space<vmem>>
    %18 = tpu.memref_slice %arg13[%c3_i32] : memref<8x!tpu.dma_semaphore, #tpu.memory_space<semaphore_mem>> -> memref<1x!tpu.dma_semaphore, #tpu.memory_space<semaphore_mem>>
    %19 = tpu.memref_squeeze %18 : memref<1x!tpu.dma_semaphore, #tpu.memory_space<semaphore_mem>> -> memref<!tpu.dma_semaphore, #tpu.memory_space<semaphore_mem>>
    tpu.enqueue_dma source(%16 : memref<1x32xf32, #tpu.memory_space<any>>) target(%17 : memref<1x32xf32, #tpu.memory_space<vmem>>) target_semaphore(%19 : memref<!tpu.dma_semaphore, #tpu.memory_space<semaphore_mem>>)
    %c4 = arith.constant 4 : index
    %20 = memref.load %arg1[%c4] : memref<8xi32, #tpu.memory_space<smem>>
    %c4_i32 = arith.constant 4 : i32
    %c0_i32_12 = arith.constant 0 : i32
    %21 = tpu.memref_slice %arg2[%20, %c0_i32_12] : memref<64x32xf32, #tpu.memory_space<any>> -> memref<1x32xf32, #tpu.memory_space<any>>
    %c4_i32_13 = arith.constant 4 : i32
    %c0_i32_14 = arith.constant 0 : i32
    %22 = tpu.memref_slice %arg9[%c4_i32_13, %c0_i32_14] : memref<8x32xf32, #tpu.memory_space<vmem>> -> memref<1x32xf32, #tpu.memory_space<vmem>>
    %23 = tpu.memref_slice %arg13[%c4_i32] : memref<8x!tpu.dma_semaphore, #tpu.memory_space<semaphore_mem>> -> memref<1x!tpu.dma_semaphore, #tpu.memory_space<semaphore_mem>>
    %24 = tpu.memref_squeeze %23 : memref<1x!tpu.dma_semaphore, #tpu.memory_space<semaphore_mem>> -> memref<!tpu.dma_semaphore, #tpu.memory_space<semaphore_mem>>
    tpu.enqueue_dma source(%21 : memref<1x32xf32, #tpu.memory_space<any>>) target(%22 : memref<1x32xf32, #tpu.memory_space<vmem>>) target_semaphore(%24 : memref<!tpu.dma_semaphore, #tpu.memory_space<semaphore_mem>>)
    %c5 = arith.constant 5 : index
    %25 = memref.load %arg1[%c5] : memref<8xi32, #tpu.memory_space<smem>>
    %c5_i32 = arith.constant 5 : i32
    %c0_i32_15 = arith.constant 0 : i32
    %26 = tpu.memref_slice %arg2[%25, %c0_i32_15] : memref<64x32xf32, #tpu.memory_space<any>> -> memref<1x32xf32, #tpu.memory_space<any>>
    %c5_i32_16 = arith.constant 5 : i32
    %c0_i32_17 = arith.constant 0 : i32
    %27 = tpu.memref_slice %arg9[%c5_i32_16, %c0_i32_17] : memref<8x32xf32, #tpu.memory_space<vmem>> -> memref<1x32xf32, #tpu.memory_space<vmem>>
    %28 = tpu.memref_slice %arg13[%c5_i32] : memref<8x!tpu.dma_semaphore, #tpu.memory_space<semaphore_mem>> -> memref<1x!tpu.dma_semaphore, #tpu.memory_space<semaphore_mem>>
    %29 = tpu.memref_squeeze %28 : memref<1x!tpu.dma_semaphore, #tpu.memory_space<semaphore_mem>> -> memref<!tpu.dma_semaphore, #tpu.memory_space<semaphore_mem>>
    tpu.enqueue_dma source(%26 : memref<1x32xf32, #tpu.memory_space<any>>) target(%27 : memref<1x32xf32, #tpu.memory_space<vmem>>) target_semaphore(%29 : memref<!tpu.dma_semaphore, #tpu.memory_space<semaphore_mem>>)
    %c6 = arith.constant 6 : index
    %30 = memref.load %arg1[%c6] : memref<8xi32, #tpu.memory_space<smem>>
    %c6_i32 = arith.constant 6 : i32
    %c0_i32_18 = arith.constant 0 : i32
    %31 = tpu.memref_slice %arg2[%30, %c0_i32_18] : memref<64x32xf32, #tpu.memory_space<any>> -> memref<1x32xf32, #tpu.memory_space<any>>
    %c6_i32_19 = arith.constant 6 : i32
    %c0_i32_20 = arith.constant 0 : i32
    %32 = tpu.memref_slice %arg9[%c6_i32_19, %c0_i32_20] : memref<8x32xf32, #tpu.memory_space<vmem>> -> memref<1x32xf32, #tpu.memory_space<vmem>>
    %33 = tpu.memref_slice %arg13[%c6_i32] : memref<8x!tpu.dma_semaphore, #tpu.memory_space<semaphore_mem>> -> memref<1x!tpu.dma_semaphore, #tpu.memory_space<semaphore_mem>>
    %34 = tpu.memref_squeeze %33 : memref<1x!tpu.dma_semaphore, #tpu.memory_space<semaphore_mem>> -> memref<!tpu.dma_semaphore, #tpu.memory_space<semaphore_mem>>
    tpu.enqueue_dma source(%31 : memref<1x32xf32, #tpu.memory_space<any>>) target(%32 : memref<1x32xf32, #tpu.memory_space<vmem>>) target_semaphore(%34 : memref<!tpu.dma_semaphore, #tpu.memory_space<semaphore_mem>>)
    %c7 = arith.constant 7 : index
    %35 = memref.load %arg1[%c7] : memref<8xi32, #tpu.memory_space<smem>>
    %c7_i32 = arith.constant 7 : i32
    %c0_i32_21 = arith.constant 0 : i32
    %36 = tpu.memref_slice %arg2[%35, %c0_i32_21] : memref<64x32xf32, #tpu.memory_space<any>> -> memref<1x32xf32, #tpu.memory_space<any>>
    %c7_i32_22 = arith.constant 7 : i32
    %c0_i32_23 = arith.constant 0 : i32
    %37 = tpu.memref_slice %arg9[%c7_i32_22, %c0_i32_23] : memref<8x32xf32, #tpu.memory_space<vmem>> -> memref<1x32xf32, #tpu.memory_space<vmem>>
    %38 = tpu.memref_slice %arg13[%c7_i32] : memref<8x!tpu.dma_semaphore, #tpu.memory_space<semaphore_mem>> -> memref<1x!tpu.dma_semaphore, #tpu.memory_space<semaphore_mem>>
    %39 = tpu.memref_squeeze %38 : memref<1x!tpu.dma_semaphore, #tpu.memory_space<semaphore_mem>> -> memref<!tpu.dma_semaphore, #tpu.memory_space<semaphore_mem>>
    tpu.enqueue_dma source(%36 : memref<1x32xf32, #tpu.memory_space<any>>) target(%37 : memref<1x32xf32, #tpu.memory_space<vmem>>) target_semaphore(%39 : memref<!tpu.dma_semaphore, #tpu.memory_space<semaphore_mem>>)
    %c0_24 = arith.constant 0 : index
    %40 = memref.load %arg1[%c0_24] : memref<8xi32, #tpu.memory_space<smem>>
    %c0_i32_25 = arith.constant 0 : i32
    %c0_i32_26 = arith.constant 0 : i32
    %41 = tpu.memref_slice %arg2[%40, %c0_i32_26] : memref<64x32xf32, #tpu.memory_space<any>> -> memref<1x32xf32, #tpu.memory_space<any>>
    %c0_i32_27 = arith.constant 0 : i32
    %c0_i32_28 = arith.constant 0 : i32
    %42 = tpu.memref_slice %arg9[%c0_i32_27, %c0_i32_28] : memref<8x32xf32, #tpu.memory_space<vmem>> -> memref<1x32xf32, #tpu.memory_space<vmem>>
    %43 = tpu.memref_slice %arg13[%c0_i32_25] : memref<8x!tpu.dma_semaphore, #tpu.memory_space<semaphore_mem>> -> memref<1x!tpu.dma_semaphore, #tpu.memory_space<semaphore_mem>>
    %44 = tpu.memref_squeeze %43 : memref<1x!tpu.dma_semaphore, #tpu.memory_space<semaphore_mem>> -> memref<!tpu.dma_semaphore, #tpu.memory_space<semaphore_mem>>
    tpu.wait_dma2 semaphore(%44 : memref<!tpu.dma_semaphore, #tpu.memory_space<semaphore_mem>>) src(%41 : memref<1x32xf32, #tpu.memory_space<any>>) dst(%42 : memref<1x32xf32, #tpu.memory_space<vmem>>)
    %c1_29 = arith.constant 1 : index
    %45 = memref.load %arg1[%c1_29] : memref<8xi32, #tpu.memory_space<smem>>
    %c1_i32_30 = arith.constant 1 : i32
    %c0_i32_31 = arith.constant 0 : i32
    %46 = tpu.memref_slice %arg2[%45, %c0_i32_31] : memref<64x32xf32, #tpu.memory_space<any>> -> memref<1x32xf32, #tpu.memory_space<any>>
    %c1_i32_32 = arith.constant 1 : i32
    %c0_i32_33 = arith.constant 0 : i32
    %47 = tpu.memref_slice %arg9[%c1_i32_32, %c0_i32_33] : memref<8x32xf32, #tpu.memory_space<vmem>> -> memref<1x32xf32, #tpu.memory_space<vmem>>
    %48 = tpu.memref_slice %arg13[%c1_i32_30] : memref<8x!tpu.dma_semaphore, #tpu.memory_space<semaphore_mem>> -> memref<1x!tpu.dma_semaphore, #tpu.memory_space<semaphore_mem>>
    %49 = tpu.memref_squeeze %48 : memref<1x!tpu.dma_semaphore, #tpu.memory_space<semaphore_mem>> -> memref<!tpu.dma_semaphore, #tpu.memory_space<semaphore_mem>>
    tpu.wait_dma2 semaphore(%49 : memref<!tpu.dma_semaphore, #tpu.memory_space<semaphore_mem>>) src(%46 : memref<1x32xf32, #tpu.memory_space<any>>) dst(%47 : memref<1x32xf32, #tpu.memory_space<vmem>>)
    %c2_34 = arith.constant 2 : index
    %50 = memref.load %arg1[%c2_34] : memref<8xi32, #tpu.memory_space<smem>>
    %c2_i32_35 = arith.constant 2 : i32
    %c0_i32_36 = arith.constant 0 : i32
    %51 = tpu.memref_slice %arg2[%50, %c0_i32_36] : memref<64x32xf32, #tpu.memory_space<any>> -> memref<1x32xf32, #tpu.memory_space<any>>
    %c2_i32_37 = arith.constant 2 : i32
    %c0_i32_38 = arith.constant 0 : i32
    %52 = tpu.memref_slice %arg9[%c2_i32_37, %c0_i32_38] : memref<8x32xf32, #tpu.memory_space<vmem>> -> memref<1x32xf32, #tpu.memory_space<vmem>>
    %53 = tpu.memref_slice %arg13[%c2_i32_35] : memref<8x!tpu.dma_semaphore, #tpu.memory_space<semaphore_mem>> -> memref<1x!tpu.dma_semaphore, #tpu.memory_space<semaphore_mem>>
    %54 = tpu.memref_squeeze %53 : memref<1x!tpu.dma_semaphore, #tpu.memory_space<semaphore_mem>> -> memref<!tpu.dma_semaphore, #tpu.memory_space<semaphore_mem>>
    tpu.wait_dma2 semaphore(%54 : memref<!tpu.dma_semaphore, #tpu.memory_space<semaphore_mem>>) src(%51 : memref<1x32xf32, #tpu.memory_space<any>>) dst(%52 : memref<1x32xf32, #tpu.memory_space<vmem>>)
    %c3_39 = arith.constant 3 : index
    %55 = memref.load %arg1[%c3_39] : memref<8xi32, #tpu.memory_space<smem>>
    %c3_i32_40 = arith.constant 3 : i32
    %c0_i32_41 = arith.constant 0 : i32
    %56 = tpu.memref_slice %arg2[%55, %c0_i32_41] : memref<64x32xf32, #tpu.memory_space<any>> -> memref<1x32xf32, #tpu.memory_space<any>>
    %c3_i32_42 = arith.constant 3 : i32
    %c0_i32_43 = arith.constant 0 : i32
    %57 = tpu.memref_slice %arg9[%c3_i32_42, %c0_i32_43] : memref<8x32xf32, #tpu.memory_space<vmem>> -> memref<1x32xf32, #tpu.memory_space<vmem>>
    %58 = tpu.memref_slice %arg13[%c3_i32_40] : memref<8x!tpu.dma_semaphore, #tpu.memory_space<semaphore_mem>> -> memref<1x!tpu.dma_semaphore, #tpu.memory_space<semaphore_mem>>
    %59 = tpu.memref_squeeze %58 : memref<1x!tpu.dma_semaphore, #tpu.memory_space<semaphore_mem>> -> memref<!tpu.dma_semaphore, #tpu.memory_space<semaphore_mem>>
    tpu.wait_dma2 semaphore(%59 : memref<!tpu.dma_semaphore, #tpu.memory_space<semaphore_mem>>) src(%56 : memref<1x32xf32, #tpu.memory_space<any>>) dst(%57 : memref<1x32xf32, #tpu.memory_space<vmem>>)
    %c4_44 = arith.constant 4 : index
    %60 = memref.load %arg1[%c4_44] : memref<8xi32, #tpu.memory_space<smem>>
    %c4_i32_45 = arith.constant 4 : i32
    %c0_i32_46 = arith.constant 0 : i32
    %61 = tpu.memref_slice %arg2[%60, %c0_i32_46] : memref<64x32xf32, #tpu.memory_space<any>> -> memref<1x32xf32, #tpu.memory_space<any>>
    %c4_i32_47 = arith.constant 4 : i32
    %c0_i32_48 = arith.constant 0 : i32
    %62 = tpu.memref_slice %arg9[%c4_i32_47, %c0_i32_48] : memref<8x32xf32, #tpu.memory_space<vmem>> -> memref<1x32xf32, #tpu.memory_space<vmem>>
    %63 = tpu.memref_slice %arg13[%c4_i32_45] : memref<8x!tpu.dma_semaphore, #tpu.memory_space<semaphore_mem>> -> memref<1x!tpu.dma_semaphore, #tpu.memory_space<semaphore_mem>>
    %64 = tpu.memref_squeeze %63 : memref<1x!tpu.dma_semaphore, #tpu.memory_space<semaphore_mem>> -> memref<!tpu.dma_semaphore, #tpu.memory_space<semaphore_mem>>
    tpu.wait_dma2 semaphore(%64 : memref<!tpu.dma_semaphore, #tpu.memory_space<semaphore_mem>>) src(%61 : memref<1x32xf32, #tpu.memory_space<any>>) dst(%62 : memref<1x32xf32, #tpu.memory_space<vmem>>)
    %c5_49 = arith.constant 5 : index
    %65 = memref.load %arg1[%c5_49] : memref<8xi32, #tpu.memory_space<smem>>
    %c5_i32_50 = arith.constant 5 : i32
    %c0_i32_51 = arith.constant 0 : i32
    %66 = tpu.memref_slice %arg2[%65, %c0_i32_51] : memref<64x32xf32, #tpu.memory_space<any>> -> memref<1x32xf32, #tpu.memory_space<any>>
    %c5_i32_52 = arith.constant 5 : i32
    %c0_i32_53 = arith.constant 0 : i32
    %67 = tpu.memref_slice %arg9[%c5_i32_52, %c0_i32_53] : memref<8x32xf32, #tpu.memory_space<vmem>> -> memref<1x32xf32, #tpu.memory_space<vmem>>
    %68 = tpu.memref_slice %arg13[%c5_i32_50] : memref<8x!tpu.dma_semaphore, #tpu.memory_space<semaphore_mem>> -> memref<1x!tpu.dma_semaphore, #tpu.memory_space<semaphore_mem>>
    %69 = tpu.memref_squeeze %68 : memref<1x!tpu.dma_semaphore, #tpu.memory_space<semaphore_mem>> -> memref<!tpu.dma_semaphore, #tpu.memory_space<semaphore_mem>>
    tpu.wait_dma2 semaphore(%69 : memref<!tpu.dma_semaphore, #tpu.memory_space<semaphore_mem>>) src(%66 : memref<1x32xf32, #tpu.memory_space<any>>) dst(%67 : memref<1x32xf32, #tpu.memory_space<vmem>>)
    %c6_54 = arith.constant 6 : index
    %70 = memref.load %arg1[%c6_54] : memref<8xi32, #tpu.memory_space<smem>>
    %c6_i32_55 = arith.constant 6 : i32
    %c0_i32_56 = arith.constant 0 : i32
    %71 = tpu.memref_slice %arg2[%70, %c0_i32_56] : memref<64x32xf32, #tpu.memory_space<any>> -> memref<1x32xf32, #tpu.memory_space<any>>
    %c6_i32_57 = arith.constant 6 : i32
    %c0_i32_58 = arith.constant 0 : i32
    %72 = tpu.memref_slice %arg9[%c6_i32_57, %c0_i32_58] : memref<8x32xf32, #tpu.memory_space<vmem>> -> memref<1x32xf32, #tpu.memory_space<vmem>>
    %73 = tpu.memref_slice %arg13[%c6_i32_55] : memref<8x!tpu.dma_semaphore, #tpu.memory_space<semaphore_mem>> -> memref<1x!tpu.dma_semaphore, #tpu.memory_space<semaphore_mem>>
    %74 = tpu.memref_squeeze %73 : memref<1x!tpu.dma_semaphore, #tpu.memory_space<semaphore_mem>> -> memref<!tpu.dma_semaphore, #tpu.memory_space<semaphore_mem>>
    tpu.wait_dma2 semaphore(%74 : memref<!tpu.dma_semaphore, #tpu.memory_space<semaphore_mem>>) src(%71 : memref<1x32xf32, #tpu.memory_space<any>>) dst(%72 : memref<1x32xf32, #tpu.memory_space<vmem>>)
    %c7_59 = arith.constant 7 : index
    %75 = memref.load %arg1[%c7_59] : memref<8xi32, #tpu.memory_space<smem>>
    %c7_i32_60 = arith.constant 7 : i32
    %c0_i32_61 = arith.constant 0 : i32
    %76 = tpu.memref_slice %arg2[%75, %c0_i32_61] : memref<64x32xf32, #tpu.memory_space<any>> -> memref<1x32xf32, #tpu.memory_space<any>>
    %c7_i32_62 = arith.constant 7 : i32
    %c0_i32_63 = arith.constant 0 : i32
    %77 = tpu.memref_slice %arg9[%c7_i32_62, %c0_i32_63] : memref<8x32xf32, #tpu.memory_space<vmem>> -> memref<1x32xf32, #tpu.memory_space<vmem>>
    %78 = tpu.memref_slice %arg13[%c7_i32_60] : memref<8x!tpu.dma_semaphore, #tpu.memory_space<semaphore_mem>> -> memref<1x!tpu.dma_semaphore, #tpu.memory_space<semaphore_mem>>
    %79 = tpu.memref_squeeze %78 : memref<1x!tpu.dma_semaphore, #tpu.memory_space<semaphore_mem>> -> memref<!tpu.dma_semaphore, #tpu.memory_space<semaphore_mem>>
    tpu.wait_dma2 semaphore(%79 : memref<!tpu.dma_semaphore, #tpu.memory_space<semaphore_mem>>) src(%76 : memref<1x32xf32, #tpu.memory_space<any>>) dst(%77 : memref<1x32xf32, #tpu.memory_space<vmem>>)
    %c0_64 = arith.constant 0 : index
    %c0_65 = arith.constant 0 : index
    %80 = vector.load %arg9[%c0_64, %c0_65] : memref<8x32xf32, #tpu.memory_space<vmem>>, vector<8x32xf32>
    %c0_66 = arith.constant 0 : index
    %c0_67 = arith.constant 0 : index
    %c0_68 = arith.constant 0 : index
    %81 = vector.load %arg4[%c0_66, %c0_67, %c0_68] : memref<3x32x32xf32, #tpu.memory_space<vmem>>, vector<3x32x32xf32>
    %c0_69 = arith.constant 0 : index
    %c0_70 = arith.constant 0 : index
    %c0_71 = arith.constant 0 : index
    %82 = vector.load %arg6[%c0_69, %c0_70, %c0_71] : memref<3x1x32xf32, #tpu.memory_space<vmem>>, vector<3x1x32xf32>
    %83 = vector.extract_strided_slice %81 {offsets = [0, 0, 0], sizes = [1, 32, 32], strides = [1, 1, 1]} : vector<3x32x32xf32> to vector<1x32x32xf32>
    %84 = vector.shape_cast %83 : vector<1x32x32xf32> to vector<32x32xf32>
    %cst = arith.constant dense<0.000000e+00> : vector<8x32xf32>
    %85 = tpu.matmul %80, %84, %cst {dimension_numbers = #tpu.dot_dimension_numbers<[1], [0], [0], [1], [0, 0, 1, 1], [], []>} : vector<8x32xf32>, vector<32x32xf32>, vector<8x32xf32> -> vector<8x32xf32>
    %86 = vector.extract_strided_slice %82 {offsets = [0, 0, 0], sizes = [1, 1, 32], strides = [1, 1, 1]} : vector<3x1x32xf32> to vector<1x1x32xf32>
    %87 = vector.shape_cast %86 : vector<1x1x32xf32> to vector<1x32xf32>
    %88 = vector.broadcast %87 : vector<1x32xf32> to vector<8x32xf32>
    %89 = arith.addf %85, %88 : vector<8x32xf32>
    %c0_72 = arith.constant 0 : index
    %c0_73 = arith.constant 0 : index
    %90 = vector.load %arg10[%c0_72, %c0_73] : memref<8x32xf32, #tpu.memory_space<vmem>>, vector<8x32xf32>
    tpu.vector_store %arg10[%c0_72, %c0_73], %89 {strides = array<i32>} : memref<8x32xf32, #tpu.memory_space<vmem>>, vector<8x32xf32>,
    %91 = vector.extract_strided_slice %81 {offsets = [1, 0, 0], sizes = [1, 32, 32], strides = [1, 1, 1]} : vector<3x32x32xf32> to vector<1x32x32xf32>
    %92 = vector.shape_cast %91 : vector<1x32x32xf32> to vector<32x32xf32>
    %cst_74 = arith.constant dense<0.000000e+00> : vector<8x32xf32>
    %93 = tpu.matmul %80, %92, %cst_74 {dimension_numbers = #tpu.dot_dimension_numbers<[1], [0], [0], [1], [0, 0, 1, 1], [], []>} : vector<8x32xf32>, vector<32x32xf32>, vector<8x32xf32> -> vector<8x32xf32>
    %94 = vector.extract_strided_slice %82 {offsets = [1, 0, 0], sizes = [1, 1, 32], strides = [1, 1, 1]} : vector<3x1x32xf32> to vector<1x1x32xf32>
    %95 = vector.shape_cast %94 : vector<1x1x32xf32> to vector<1x32xf32>
    %96 = vector.broadcast %95 : vector<1x32xf32> to vector<8x32xf32>
    %97 = arith.addf %93, %96 : vector<8x32xf32>
    %c0_75 = arith.constant 0 : index
    %c0_76 = arith.constant 0 : index
    %98 = vector.load %arg11[%c0_75, %c0_76] : memref<8x32xf32, #tpu.memory_space<vmem>>, vector<8x32xf32>
    tpu.vector_store %arg11[%c0_75, %c0_76], %97 {strides = array<i32>} : memref<8x32xf32, #tpu.memory_space<vmem>>, vector<8x32xf32>,
    %99 = vector.extract_strided_slice %81 {offsets = [2, 0, 0], sizes = [1, 32, 32], strides = [1, 1, 1]} : vector<3x32x32xf32> to vector<1x32x32xf32>
    %100 = vector.shape_cast %99 : vector<1x32x32xf32> to vector<32x32xf32>
    %cst_77 = arith.constant dense<0.000000e+00> : vector<8x32xf32>
    %101 = tpu.matmul %80, %100, %cst_77 {dimension_numbers = #tpu.dot_dimension_numbers<[1], [0], [0], [1], [0, 0, 1, 1], [], []>} : vector<8x32xf32>, vector<32x32xf32>, vector<8x32xf32> -> vector<8x32xf32>
    %102 = vector.extract_strided_slice %82 {offsets = [2, 0, 0], sizes = [1, 1, 32], strides = [1, 1, 1]} : vector<3x1x32xf32> to vector<1x1x32xf32>
    %103 = vector.shape_cast %102 : vector<1x1x32xf32> to vector<1x32xf32>
    %104 = vector.broadcast %103 : vector<1x32xf32> to vector<8x32xf32>
    %105 = arith.addf %101, %104 : vector<8x32xf32>
    %c0_78 = arith.constant 0 : index
    %c0_79 = arith.constant 0 : index
    %106 = vector.load %arg12[%c0_78, %c0_79] : memref<8x32xf32, #tpu.memory_space<vmem>>, vector<8x32xf32>
    tpu.vector_store %arg12[%c0_78, %c0_79], %105 {strides = array<i32>} : memref<8x32xf32, #tpu.memory_space<vmem>>, vector<8x32xf32>,
    %c0_80 = arith.constant 0 : index
    %c0_81 = arith.constant 0 : index
    %c0_82 = arith.constant 0 : index
    %107 = vector.load %arg5[%c0_80, %c0_81, %c0_82] : memref<3x32x32xf32, #tpu.memory_space<vmem>>, vector<3x32x32xf32>
    %c0_83 = arith.constant 0 : index
    %c0_84 = arith.constant 0 : index
    %c0_85 = arith.constant 0 : index
    %108 = vector.load %arg7[%c0_83, %c0_84, %c0_85] : memref<3x1x32xf32, #tpu.memory_space<vmem>>, vector<3x1x32xf32>
    %109 = vector.extract_strided_slice %107 {offsets = [0, 0, 0], sizes = [1, 32, 32], strides = [1, 1, 1]} : vector<3x32x32xf32> to vector<1x32x32xf32>
    %110 = vector.shape_cast %109 : vector<1x32x32xf32> to vector<32x32xf32>
    %111 = vector.extract_strided_slice %107 {offsets = [1, 0, 0], sizes = [1, 32, 32], strides = [1, 1, 1]} : vector<3x32x32xf32> to vector<1x32x32xf32>
    %112 = vector.shape_cast %111 : vector<1x32x32xf32> to vector<32x32xf32>
    %113 = vector.extract_strided_slice %107 {offsets = [2, 0, 0], sizes = [1, 32, 32], strides = [1, 1, 1]} : vector<3x32x32xf32> to vector<1x32x32xf32>
    %114 = vector.shape_cast %113 : vector<1x32x32xf32> to vector<32x32xf32>
    %115 = vector.extract_strided_slice %108 {offsets = [0, 0, 0], sizes = [1, 1, 32], strides = [1, 1, 1]} : vector<3x1x32xf32> to vector<1x1x32xf32>
    %116 = vector.shape_cast %115 : vector<1x1x32xf32> to vector<1x32xf32>
    %117 = vector.extract_strided_slice %108 {offsets = [1, 0, 0], sizes = [1, 1, 32], strides = [1, 1, 1]} : vector<3x1x32xf32> to vector<1x1x32xf32>
    %118 = vector.shape_cast %117 : vector<1x1x32xf32> to vector<1x32xf32>
    %119 = vector.extract_strided_slice %108 {offsets = [2, 0, 0], sizes = [1, 1, 32], strides = [1, 1, 1]} : vector<3x1x32xf32> to vector<1x1x32xf32>
    %120 = vector.shape_cast %119 : vector<1x1x32xf32> to vector<1x32xf32>
    %c0_86 = arith.constant 0 : index
    %c0_87 = arith.constant 0 : index
    %121 = vector.load %arg3[%c0_86, %c0_87] : memref<1x32xf32, #tpu.memory_space<vmem>>, vector<1x32xf32>
    %c0_i32_88 = arith.constant 0 : i32
    %c1_i32_89 = arith.constant 1 : i32
    %122 = arith.muli %c0_i32_88, %c1_i32_89 : i32
    %123 = tpu.assume_multiple %122, 1 : i32
    %124 = arith.index_cast %123 : i32 to index
    %c0_90 = arith.constant 0 : index
    %125 = vector.load %arg10[%124, %c0_90] : memref<8x32xf32, #tpu.memory_space<vmem>>, vector<1x32xf32>
    %126 = arith.index_cast %123 : i32 to index
    %c0_91 = arith.constant 0 : index
    %127 = vector.load %arg11[%126, %c0_91] : memref<8x32xf32, #tpu.memory_space<vmem>>, vector<1x32xf32>
    %128 = arith.index_cast %123 : i32 to index
    %c0_92 = arith.constant 0 : index
    %129 = vector.load %arg12[%128, %c0_92] : memref<8x32xf32, #tpu.memory_space<vmem>>, vector<1x32xf32>
    %cst_93 = arith.constant dense<0.000000e+00> : vector<1x32xf32>
    %130 = tpu.matmul %121, %110, %cst_93 {dimension_numbers = #tpu.dot_dimension_numbers<[1], [0], [0], [1], [0, 0, 1, 1], [], []>} : vector<1x32xf32>, vector<32x32xf32>, vector<1x32xf32> -> vector<1x32xf32>
    %131 = arith.addf %130, %116 : vector<1x32xf32>
    %cst_94 = arith.constant dense<0.000000e+00> : vector<1x32xf32>
    %132 = tpu.matmul %121, %112, %cst_94 {dimension_numbers = #tpu.dot_dimension_numbers<[1], [0], [0], [1], [0, 0, 1, 1], [], []>} : vector<1x32xf32>, vector<32x32xf32>, vector<1x32xf32> -> vector<1x32xf32>
    %133 = arith.addf %132, %118 : vector<1x32xf32>
    %cst_95 = arith.constant dense<0.000000e+00> : vector<1x32xf32>
    %134 = tpu.matmul %121, %114, %cst_95 {dimension_numbers = #tpu.dot_dimension_numbers<[1], [0], [0], [1], [0, 0, 1, 1], [], []>} : vector<1x32xf32>, vector<32x32xf32>, vector<1x32xf32> -> vector<1x32xf32>
    %135 = arith.addf %134, %120 : vector<1x32xf32>
    %136 = arith.addf %125, %131 : vector<1x32xf32>
    %137 = arith.negf %136 : vector<1x32xf32>
    %138 = math.exp %137 : vector<1x32xf32>
    %cst_96 = arith.constant 1.000000e+00 : f32
    %139 = vector.broadcast %cst_96 : f32 to vector<1x32xf32>
    %140 = arith.addf %139, %138 : vector<1x32xf32>
    %141 = arith.divf %139, %140 : vector<1x32xf32>
    %142 = arith.addf %127, %133 : vector<1x32xf32>
    %143 = arith.negf %142 : vector<1x32xf32>
    %144 = math.exp %143 : vector<1x32xf32>
    %cst_97 = arith.constant 1.000000e+00 : f32
    %145 = vector.broadcast %cst_97 : f32 to vector<1x32xf32>
    %146 = arith.addf %145, %144 : vector<1x32xf32>
    %147 = arith.divf %145, %146 : vector<1x32xf32>
    %148 = arith.mulf %141, %135 : vector<1x32xf32>
    %149 = arith.addf %129, %148 : vector<1x32xf32>
    %150 = math.tanh %149 : vector<1x32xf32>
    %cst_98 = arith.constant 1.000000e+00 : f32
    %151 = vector.broadcast %cst_98 : f32 to vector<1x32xf32>
    %152 = arith.subf %151, %147 : vector<1x32xf32>
    %153 = arith.mulf %152, %150 : vector<1x32xf32>
    %154 = arith.mulf %147, %121 : vector<1x32xf32>
    %155 = arith.addf %153, %154 : vector<1x32xf32>
    %156 = arith.index_cast %123 : i32 to index
    %c0_99 = arith.constant 0 : index
    %157 = vector.load %arg8[%156, %c0_99] : memref<8x32xf32, #tpu.memory_space<vmem>>, vector<1x32xf32>
    tpu.vector_store %arg8[%156, %c0_99], %155 {strides = array<i32>} : memref<8x32xf32, #tpu.memory_space<vmem>>, vector<1x32xf32>,
    %c1_i32_100 = arith.constant 1 : i32
    %c1_i32_101 = arith.constant 1 : i32
    %158 = arith.muli %c1_i32_100, %c1_i32_101 : i32
    %159 = tpu.assume_multiple %158, 1 : i32
    %160 = arith.index_cast %159 : i32 to index
    %c0_102 = arith.constant 0 : index
    %161 = vector.load %arg10[%160, %c0_102] : memref<8x32xf32, #tpu.memory_space<vmem>>, vector<1x32xf32>
    %162 = arith.index_cast %159 : i32 to index
    %c0_103 = arith.constant 0 : index
    %163 = vector.load %arg11[%162, %c0_103] : memref<8x32xf32, #tpu.memory_space<vmem>>, vector<1x32xf32>
    %164 = arith.index_cast %159 : i32 to index
    %c0_104 = arith.constant 0 : index
    %165 = vector.load %arg12[%164, %c0_104] : memref<8x32xf32, #tpu.memory_space<vmem>>, vector<1x32xf32>
    %cst_105 = arith.constant dense<0.000000e+00> : vector<1x32xf32>
    %166 = tpu.matmul %155, %110, %cst_105 {dimension_numbers = #tpu.dot_dimension_numbers<[1], [0], [0], [1], [0, 0, 1, 1], [], []>} : vector<1x32xf32>, vector<32x32xf32>, vector<1x32xf32> -> vector<1x32xf32>
    %167 = arith.addf %166, %116 : vector<1x32xf32>
    %cst_106 = arith.constant dense<0.000000e+00> : vector<1x32xf32>
    %168 = tpu.matmul %155, %112, %cst_106 {dimension_numbers = #tpu.dot_dimension_numbers<[1], [0], [0], [1], [0, 0, 1, 1], [], []>} : vector<1x32xf32>, vector<32x32xf32>, vector<1x32xf32> -> vector<1x32xf32>
    %169 = arith.addf %168, %118 : vector<1x32xf32>
    %cst_107 = arith.constant dense<0.000000e+00> : vector<1x32xf32>
    %170 = tpu.matmul %155, %114, %cst_107 {dimension_numbers = #tpu.dot_dimension_numbers<[1], [0], [0], [1], [0, 0, 1, 1], [], []>} : vector<1x32xf32>, vector<32x32xf32>, vector<1x32xf32> -> vector<1x32xf32>
    %171 = arith.addf %170, %120 : vector<1x32xf32>
    %172 = arith.addf %161, %167 : vector<1x32xf32>
    %173 = arith.negf %172 : vector<1x32xf32>
    %174 = math.exp %173 : vector<1x32xf32>
    %cst_108 = arith.constant 1.000000e+00 : f32
    %175 = vector.broadcast %cst_108 : f32 to vector<1x32xf32>
    %176 = arith.addf %175, %174 : vector<1x32xf32>
    %177 = arith.divf %175, %176 : vector<1x32xf32>
    %178 = arith.addf %163, %169 : vector<1x32xf32>
    %179 = arith.negf %178 : vector<1x32xf32>
    %180 = math.exp %179 : vector<1x32xf32>
    %cst_109 = arith.constant 1.000000e+00 : f32
    %181 = vector.broadcast %cst_109 : f32 to vector<1x32xf32>
    %182 = arith.addf %181, %180 : vector<1x32xf32>
    %183 = arith.divf %181, %182 : vector<1x32xf32>
    %184 = arith.mulf %177, %171 : vector<1x32xf32>
    %185 = arith.addf %165, %184 : vector<1x32xf32>
    %186 = math.tanh %185 : vector<1x32xf32>
    %cst_110 = arith.constant 1.000000e+00 : f32
    %187 = vector.broadcast %cst_110 : f32 to vector<1x32xf32>
    %188 = arith.subf %187, %183 : vector<1x32xf32>
    %189 = arith.mulf %188, %186 : vector<1x32xf32>
    %190 = arith.mulf %183, %155 : vector<1x32xf32>
    %191 = arith.addf %189, %190 : vector<1x32xf32>
    %192 = arith.index_cast %159 : i32 to index
    %c0_111 = arith.constant 0 : index
    %193 = vector.load %arg8[%192, %c0_111] : memref<8x32xf32, #tpu.memory_space<vmem>>, vector<1x32xf32>
    tpu.vector_store %arg8[%192, %c0_111], %191 {strides = array<i32>} : memref<8x32xf32, #tpu.memory_space<vmem>>, vector<1x32xf32>,
    %c2_i32_112 = arith.constant 2 : i32
    %c1_i32_113 = arith.constant 1 : i32
    %194 = arith.muli %c2_i32_112, %c1_i32_113 : i32
    %195 = tpu.assume_multiple %194, 1 : i32
    %196 = arith.index_cast %195 : i32 to index
    %c0_114 = arith.constant 0 : index
    %197 = vector.load %arg10[%196, %c0_114] : memref<8x32xf32, #tpu.memory_space<vmem>>, vector<1x32xf32>
    %198 = arith.index_cast %195 : i32 to index
    %c0_115 = arith.constant 0 : index
    %199 = vector.load %arg11[%198, %c0_115] : memref<8x32xf32, #tpu.memory_space<vmem>>, vector<1x32xf32>
    %200 = arith.index_cast %195 : i32 to index
    %c0_116 = arith.constant 0 : index
    %201 = vector.load %arg12[%200, %c0_116] : memref<8x32xf32, #tpu.memory_space<vmem>>, vector<1x32xf32>
    %cst_117 = arith.constant dense<0.000000e+00> : vector<1x32xf32>
    %202 = tpu.matmul %191, %110, %cst_117 {dimension_numbers = #tpu.dot_dimension_numbers<[1], [0], [0], [1], [0, 0, 1, 1], [], []>} : vector<1x32xf32>, vector<32x32xf32>, vector<1x32xf32> -> vector<1x32xf32>
    %203 = arith.addf %202, %116 : vector<1x32xf32>
    %cst_118 = arith.constant dense<0.000000e+00> : vector<1x32xf32>
    %204 = tpu.matmul %191, %112, %cst_118 {dimension_numbers = #tpu.dot_dimension_numbers<[1], [0], [0], [1], [0, 0, 1, 1], [], []>} : vector<1x32xf32>, vector<32x32xf32>, vector<1x32xf32> -> vector<1x32xf32>
    %205 = arith.addf %204, %118 : vector<1x32xf32>
    %cst_119 = arith.constant dense<0.000000e+00> : vector<1x32xf32>
    %206 = tpu.matmul %191, %114, %cst_119 {dimension_numbers = #tpu.dot_dimension_numbers<[1], [0], [0], [1], [0, 0, 1, 1], [], []>} : vector<1x32xf32>, vector<32x32xf32>, vector<1x32xf32> -> vector<1x32xf32>
    %207 = arith.addf %206, %120 : vector<1x32xf32>
    %208 = arith.addf %197, %203 : vector<1x32xf32>
    %209 = arith.negf %208 : vector<1x32xf32>
    %210 = math.exp %209 : vector<1x32xf32>
    %cst_120 = arith.constant 1.000000e+00 : f32
    %211 = vector.broadcast %cst_120 : f32 to vector<1x32xf32>
    %212 = arith.addf %211, %210 : vector<1x32xf32>
    %213 = arith.divf %211, %212 : vector<1x32xf32>
    %214 = arith.addf %199, %205 : vector<1x32xf32>
    %215 = arith.negf %214 : vector<1x32xf32>
    %216 = math.exp %215 : vector<1x32xf32>
    %cst_121 = arith.constant 1.000000e+00 : f32
    %217 = vector.broadcast %cst_121 : f32 to vector<1x32xf32>
    %218 = arith.addf %217, %216 : vector<1x32xf32>
    %219 = arith.divf %217, %218 : vector<1x32xf32>
    %220 = arith.mulf %213, %207 : vector<1x32xf32>
    %221 = arith.addf %201, %220 : vector<1x32xf32>
    %222 = math.tanh %221 : vector<1x32xf32>
    %cst_122 = arith.constant 1.000000e+00 : f32
    %223 = vector.broadcast %cst_122 : f32 to vector<1x32xf32>
    %224 = arith.subf %223, %219 : vector<1x32xf32>
    %225 = arith.mulf %224, %222 : vector<1x32xf32>
    %226 = arith.mulf %219, %191 : vector<1x32xf32>
    %227 = arith.addf %225, %226 : vector<1x32xf32>
    %228 = arith.index_cast %195 : i32 to index
    %c0_123 = arith.constant 0 : index
    %229 = vector.load %arg8[%228, %c0_123] : memref<8x32xf32, #tpu.memory_space<vmem>>, vector<1x32xf32>
    tpu.vector_store %arg8[%228, %c0_123], %227 {strides = array<i32>} : memref<8x32xf32, #tpu.memory_space<vmem>>, vector<1x32xf32>,
    %c3_i32_124 = arith.constant 3 : i32
    %c1_i32_125 = arith.constant 1 : i32
    %230 = arith.muli %c3_i32_124, %c1_i32_125 : i32
    %231 = tpu.assume_multiple %230, 1 : i32
    %232 = arith.index_cast %231 : i32 to index
    %c0_126 = arith.constant 0 : index
    %233 = vector.load %arg10[%232, %c0_126] : memref<8x32xf32, #tpu.memory_space<vmem>>, vector<1x32xf32>
    %234 = arith.index_cast %231 : i32 to index
    %c0_127 = arith.constant 0 : index
    %235 = vector.load %arg11[%234, %c0_127] : memref<8x32xf32, #tpu.memory_space<vmem>>, vector<1x32xf32>
    %236 = arith.index_cast %231 : i32 to index
    %c0_128 = arith.constant 0 : index
    %237 = vector.load %arg12[%236, %c0_128] : memref<8x32xf32, #tpu.memory_space<vmem>>, vector<1x32xf32>
    %cst_129 = arith.constant dense<0.000000e+00> : vector<1x32xf32>
    %238 = tpu.matmul %227, %110, %cst_129 {dimension_numbers = #tpu.dot_dimension_numbers<[1], [0], [0], [1], [0, 0, 1, 1], [], []>} : vector<1x32xf32>, vector<32x32xf32>, vector<1x32xf32> -> vector<1x32xf32>
    %239 = arith.addf %238, %116 : vector<1x32xf32>
    %cst_130 = arith.constant dense<0.000000e+00> : vector<1x32xf32>
    %240 = tpu.matmul %227, %112, %cst_130 {dimension_numbers = #tpu.dot_dimension_numbers<[1], [0], [0], [1], [0, 0, 1, 1], [], []>} : vector<1x32xf32>, vector<32x32xf32>, vector<1x32xf32> -> vector<1x32xf32>
    %241 = arith.addf %240, %118 : vector<1x32xf32>
    %cst_131 = arith.constant dense<0.000000e+00> : vector<1x32xf32>
    %242 = tpu.matmul %227, %114, %cst_131 {dimension_numbers = #tpu.dot_dimension_numbers<[1], [0], [0], [1], [0, 0, 1, 1], [], []>} : vector<1x32xf32>, vector<32x32xf32>, vector<1x32xf32> -> vector<1x32xf32>
    %243 = arith.addf %242, %120 : vector<1x32xf32>
    %244 = arith.addf %233, %239 : vector<1x32xf32>
    %245 = arith.negf %244 : vector<1x32xf32>
    %246 = math.exp %245 : vector<1x32xf32>
    %cst_132 = arith.constant 1.000000e+00 : f32
    %247 = vector.broadcast %cst_132 : f32 to vector<1x32xf32>
    %248 = arith.addf %247, %246 : vector<1x32xf32>
    %249 = arith.divf %247, %248 : vector<1x32xf32>
    %250 = arith.addf %235, %241 : vector<1x32xf32>
    %251 = arith.negf %250 : vector<1x32xf32>
    %252 = math.exp %251 : vector<1x32xf32>
    %cst_133 = arith.constant 1.000000e+00 : f32
    %253 = vector.broadcast %cst_133 : f32 to vector<1x32xf32>
    %254 = arith.addf %253, %252 : vector<1x32xf32>
    %255 = arith.divf %253, %254 : vector<1x32xf32>
    %256 = arith.mulf %249, %243 : vector<1x32xf32>
    %257 = arith.addf %237, %256 : vector<1x32xf32>
    %258 = math.tanh %257 : vector<1x32xf32>
    %cst_134 = arith.constant 1.000000e+00 : f32
    %259 = vector.broadcast %cst_134 : f32 to vector<1x32xf32>
    %260 = arith.subf %259, %255 : vector<1x32xf32>
    %261 = arith.mulf %260, %258 : vector<1x32xf32>
    %262 = arith.mulf %255, %227 : vector<1x32xf32>
    %263 = arith.addf %261, %262 : vector<1x32xf32>
    %264 = arith.index_cast %231 : i32 to index
    %c0_135 = arith.constant 0 : index
    %265 = vector.load %arg8[%264, %c0_135] : memref<8x32xf32, #tpu.memory_space<vmem>>, vector<1x32xf32>
    tpu.vector_store %arg8[%264, %c0_135], %263 {strides = array<i32>} : memref<8x32xf32, #tpu.memory_space<vmem>>, vector<1x32xf32>,
    %c4_i32_136 = arith.constant 4 : i32
    %c1_i32_137 = arith.constant 1 : i32
    %266 = arith.muli %c4_i32_136, %c1_i32_137 : i32
    %267 = tpu.assume_multiple %266, 1 : i32
    %268 = arith.index_cast %267 : i32 to index
    %c0_138 = arith.constant 0 : index
    %269 = vector.load %arg10[%268, %c0_138] : memref<8x32xf32, #tpu.memory_space<vmem>>, vector<1x32xf32>
    %270 = arith.index_cast %267 : i32 to index
    %c0_139 = arith.constant 0 : index
    %271 = vector.load %arg11[%270, %c0_139] : memref<8x32xf32, #tpu.memory_space<vmem>>, vector<1x32xf32>
    %272 = arith.index_cast %267 : i32 to index
    %c0_140 = arith.constant 0 : index
    %273 = vector.load %arg12[%272, %c0_140] : memref<8x32xf32, #tpu.memory_space<vmem>>, vector<1x32xf32>
    %cst_141 = arith.constant dense<0.000000e+00> : vector<1x32xf32>
    %274 = tpu.matmul %263, %110, %cst_141 {dimension_numbers = #tpu.dot_dimension_numbers<[1], [0], [0], [1], [0, 0, 1, 1], [], []>} : vector<1x32xf32>, vector<32x32xf32>, vector<1x32xf32> -> vector<1x32xf32>
    %275 = arith.addf %274, %116 : vector<1x32xf32>
    %cst_142 = arith.constant dense<0.000000e+00> : vector<1x32xf32>
    %276 = tpu.matmul %263, %112, %cst_142 {dimension_numbers = #tpu.dot_dimension_numbers<[1], [0], [0], [1], [0, 0, 1, 1], [], []>} : vector<1x32xf32>, vector<32x32xf32>, vector<1x32xf32> -> vector<1x32xf32>
    %277 = arith.addf %276, %118 : vector<1x32xf32>
    %cst_143 = arith.constant dense<0.000000e+00> : vector<1x32xf32>
    %278 = tpu.matmul %263, %114, %cst_143 {dimension_numbers = #tpu.dot_dimension_numbers<[1], [0], [0], [1], [0, 0, 1, 1], [], []>} : vector<1x32xf32>, vector<32x32xf32>, vector<1x32xf32> -> vector<1x32xf32>
    %279 = arith.addf %278, %120 : vector<1x32xf32>
    %280 = arith.addf %269, %275 : vector<1x32xf32>
    %281 = arith.negf %280 : vector<1x32xf32>
    %282 = math.exp %281 : vector<1x32xf32>
    %cst_144 = arith.constant 1.000000e+00 : f32
    %283 = vector.broadcast %cst_144 : f32 to vector<1x32xf32>
    %284 = arith.addf %283, %282 : vector<1x32xf32>
    %285 = arith.divf %283, %284 : vector<1x32xf32>
    %286 = arith.addf %271, %277 : vector<1x32xf32>
    %287 = arith.negf %286 : vector<1x32xf32>
    %288 = math.exp %287 : vector<1x32xf32>
    %cst_145 = arith.constant 1.000000e+00 : f32
    %289 = vector.broadcast %cst_145 : f32 to vector<1x32xf32>
    %290 = arith.addf %289, %288 : vector<1x32xf32>
    %291 = arith.divf %289, %290 : vector<1x32xf32>
    %292 = arith.mulf %285, %279 : vector<1x32xf32>
    %293 = arith.addf %273, %292 : vector<1x32xf32>
    %294 = math.tanh %293 : vector<1x32xf32>
    %cst_146 = arith.constant 1.000000e+00 : f32
    %295 = vector.broadcast %cst_146 : f32 to vector<1x32xf32>
    %296 = arith.subf %295, %291 : vector<1x32xf32>
    %297 = arith.mulf %296, %294 : vector<1x32xf32>
    %298 = arith.mulf %291, %263 : vector<1x32xf32>
    %299 = arith.addf %297, %298 : vector<1x32xf32>
    %300 = arith.index_cast %267 : i32 to index
    %c0_147 = arith.constant 0 : index
    %301 = vector.load %arg8[%300, %c0_147] : memref<8x32xf32, #tpu.memory_space<vmem>>, vector<1x32xf32>
    tpu.vector_store %arg8[%300, %c0_147], %299 {strides = array<i32>} : memref<8x32xf32, #tpu.memory_space<vmem>>, vector<1x32xf32>,
    %c5_i32_148 = arith.constant 5 : i32
    %c1_i32_149 = arith.constant 1 : i32
    %302 = arith.muli %c5_i32_148, %c1_i32_149 : i32
    %303 = tpu.assume_multiple %302, 1 : i32
    %304 = arith.index_cast %303 : i32 to index
    %c0_150 = arith.constant 0 : index
    %305 = vector.load %arg10[%304, %c0_150] : memref<8x32xf32, #tpu.memory_space<vmem>>, vector<1x32xf32>
    %306 = arith.index_cast %303 : i32 to index
    %c0_151 = arith.constant 0 : index
    %307 = vector.load %arg11[%306, %c0_151] : memref<8x32xf32, #tpu.memory_space<vmem>>, vector<1x32xf32>
    %308 = arith.index_cast %303 : i32 to index
    %c0_152 = arith.constant 0 : index
    %309 = vector.load %arg12[%308, %c0_152] : memref<8x32xf32, #tpu.memory_space<vmem>>, vector<1x32xf32>
    %cst_153 = arith.constant dense<0.000000e+00> : vector<1x32xf32>
    %310 = tpu.matmul %299, %110, %cst_153 {dimension_numbers = #tpu.dot_dimension_numbers<[1], [0], [0], [1], [0, 0, 1, 1], [], []>} : vector<1x32xf32>, vector<32x32xf32>, vector<1x32xf32> -> vector<1x32xf32>
    %311 = arith.addf %310, %116 : vector<1x32xf32>
    %cst_154 = arith.constant dense<0.000000e+00> : vector<1x32xf32>
    %312 = tpu.matmul %299, %112, %cst_154 {dimension_numbers = #tpu.dot_dimension_numbers<[1], [0], [0], [1], [0, 0, 1, 1], [], []>} : vector<1x32xf32>, vector<32x32xf32>, vector<1x32xf32> -> vector<1x32xf32>
    %313 = arith.addf %312, %118 : vector<1x32xf32>
    %cst_155 = arith.constant dense<0.000000e+00> : vector<1x32xf32>
    %314 = tpu.matmul %299, %114, %cst_155 {dimension_numbers = #tpu.dot_dimension_numbers<[1], [0], [0], [1], [0, 0, 1, 1], [], []>} : vector<1x32xf32>, vector<32x32xf32>, vector<1x32xf32> -> vector<1x32xf32>
    %315 = arith.addf %314, %120 : vector<1x32xf32>
    %316 = arith.addf %305, %311 : vector<1x32xf32>
    %317 = arith.negf %316 : vector<1x32xf32>
    %318 = math.exp %317 : vector<1x32xf32>
    %cst_156 = arith.constant 1.000000e+00 : f32
    %319 = vector.broadcast %cst_156 : f32 to vector<1x32xf32>
    %320 = arith.addf %319, %318 : vector<1x32xf32>
    %321 = arith.divf %319, %320 : vector<1x32xf32>
    %322 = arith.addf %307, %313 : vector<1x32xf32>
    %323 = arith.negf %322 : vector<1x32xf32>
    %324 = math.exp %323 : vector<1x32xf32>
    %cst_157 = arith.constant 1.000000e+00 : f32
    %325 = vector.broadcast %cst_157 : f32 to vector<1x32xf32>
    %326 = arith.addf %325, %324 : vector<1x32xf32>
    %327 = arith.divf %325, %326 : vector<1x32xf32>
    %328 = arith.mulf %321, %315 : vector<1x32xf32>
    %329 = arith.addf %309, %328 : vector<1x32xf32>
    %330 = math.tanh %329 : vector<1x32xf32>
    %cst_158 = arith.constant 1.000000e+00 : f32
    %331 = vector.broadcast %cst_158 : f32 to vector<1x32xf32>
    %332 = arith.subf %331, %327 : vector<1x32xf32>
    %333 = arith.mulf %332, %330 : vector<1x32xf32>
    %334 = arith.mulf %327, %299 : vector<1x32xf32>
    %335 = arith.addf %333, %334 : vector<1x32xf32>
    %336 = arith.index_cast %303 : i32 to index
    %c0_159 = arith.constant 0 : index
    %337 = vector.load %arg8[%336, %c0_159] : memref<8x32xf32, #tpu.memory_space<vmem>>, vector<1x32xf32>
    tpu.vector_store %arg8[%336, %c0_159], %335 {strides = array<i32>} : memref<8x32xf32, #tpu.memory_space<vmem>>, vector<1x32xf32>,
    %c6_i32_160 = arith.constant 6 : i32
    %c1_i32_161 = arith.constant 1 : i32
    %338 = arith.muli %c6_i32_160, %c1_i32_161 : i32
    %339 = tpu.assume_multiple %338, 1 : i32
    %340 = arith.index_cast %339 : i32 to index
    %c0_162 = arith.constant 0 : index
    %341 = vector.load %arg10[%340, %c0_162] : memref<8x32xf32, #tpu.memory_space<vmem>>, vector<1x32xf32>
    %342 = arith.index_cast %339 : i32 to index
    %c0_163 = arith.constant 0 : index
    %343 = vector.load %arg11[%342, %c0_163] : memref<8x32xf32, #tpu.memory_space<vmem>>, vector<1x32xf32>
    %344 = arith.index_cast %339 : i32 to index
    %c0_164 = arith.constant 0 : index
    %345 = vector.load %arg12[%344, %c0_164] : memref<8x32xf32, #tpu.memory_space<vmem>>, vector<1x32xf32>
    %cst_165 = arith.constant dense<0.000000e+00> : vector<1x32xf32>
    %346 = tpu.matmul %335, %110, %cst_165 {dimension_numbers = #tpu.dot_dimension_numbers<[1], [0], [0], [1], [0, 0, 1, 1], [], []>} : vector<1x32xf32>, vector<32x32xf32>, vector<1x32xf32> -> vector<1x32xf32>
    %347 = arith.addf %346, %116 : vector<1x32xf32>
    %cst_166 = arith.constant dense<0.000000e+00> : vector<1x32xf32>
    %348 = tpu.matmul %335, %112, %cst_166 {dimension_numbers = #tpu.dot_dimension_numbers<[1], [0], [0], [1], [0, 0, 1, 1], [], []>} : vector<1x32xf32>, vector<32x32xf32>, vector<1x32xf32> -> vector<1x32xf32>
    %349 = arith.addf %348, %118 : vector<1x32xf32>
    %cst_167 = arith.constant dense<0.000000e+00> : vector<1x32xf32>
    %350 = tpu.matmul %335, %114, %cst_167 {dimension_numbers = #tpu.dot_dimension_numbers<[1], [0], [0], [1], [0, 0, 1, 1], [], []>} : vector<1x32xf32>, vector<32x32xf32>, vector<1x32xf32> -> vector<1x32xf32>
    %351 = arith.addf %350, %120 : vector<1x32xf32>
    %352 = arith.addf %341, %347 : vector<1x32xf32>
    %353 = arith.negf %352 : vector<1x32xf32>
    %354 = math.exp %353 : vector<1x32xf32>
    %cst_168 = arith.constant 1.000000e+00 : f32
    %355 = vector.broadcast %cst_168 : f32 to vector<1x32xf32>
    %356 = arith.addf %355, %354 : vector<1x32xf32>
    %357 = arith.divf %355, %356 : vector<1x32xf32>
    %358 = arith.addf %343, %349 : vector<1x32xf32>
    %359 = arith.negf %358 : vector<1x32xf32>
    %360 = math.exp %359 : vector<1x32xf32>
    %cst_169 = arith.constant 1.000000e+00 : f32
    %361 = vector.broadcast %cst_169 : f32 to vector<1x32xf32>
    %362 = arith.addf %361, %360 : vector<1x32xf32>
    %363 = arith.divf %361, %362 : vector<1x32xf32>
    %364 = arith.mulf %357, %351 : vector<1x32xf32>
    %365 = arith.addf %345, %364 : vector<1x32xf32>
    %366 = math.tanh %365 : vector<1x32xf32>
    %cst_170 = arith.constant 1.000000e+00 : f32
    %367 = vector.broadcast %cst_170 : f32 to vector<1x32xf32>
    %368 = arith.subf %367, %363 : vector<1x32xf32>
    %369 = arith.mulf %368, %366 : vector<1x32xf32>
    %370 = arith.mulf %363, %335 : vector<1x32xf32>
    %371 = arith.addf %369, %370 : vector<1x32xf32>
    %372 = arith.index_cast %339 : i32 to index
    %c0_171 = arith.constant 0 : index
    %373 = vector.load %arg8[%372, %c0_171] : memref<8x32xf32, #tpu.memory_space<vmem>>, vector<1x32xf32>
    tpu.vector_store %arg8[%372, %c0_171], %371 {strides = array<i32>} : memref<8x32xf32, #tpu.memory_space<vmem>>, vector<1x32xf32>,
    %c7_i32_172 = arith.constant 7 : i32
    %c1_i32_173 = arith.constant 1 : i32
    %374 = arith.muli %c7_i32_172, %c1_i32_173 : i32
    %375 = tpu.assume_multiple %374, 1 : i32
    %376 = arith.index_cast %375 : i32 to index
    %c0_174 = arith.constant 0 : index
    %377 = vector.load %arg10[%376, %c0_174] : memref<8x32xf32, #tpu.memory_space<vmem>>, vector<1x32xf32>
    %378 = arith.index_cast %375 : i32 to index
    %c0_175 = arith.constant 0 : index
    %379 = vector.load %arg11[%378, %c0_175] : memref<8x32xf32, #tpu.memory_space<vmem>>, vector<1x32xf32>
    %380 = arith.index_cast %375 : i32 to index
    %c0_176 = arith.constant 0 : index
    %381 = vector.load %arg12[%380, %c0_176] : memref<8x32xf32, #tpu.memory_space<vmem>>, vector<1x32xf32>
    %cst_177 = arith.constant dense<0.000000e+00> : vector<1x32xf32>
    %382 = tpu.matmul %371, %110, %cst_177 {dimension_numbers = #tpu.dot_dimension_numbers<[1], [0], [0], [1], [0, 0, 1, 1], [], []>} : vector<1x32xf32>, vector<32x32xf32>, vector<1x32xf32> -> vector<1x32xf32>
    %383 = arith.addf %382, %116 : vector<1x32xf32>
    %cst_178 = arith.constant dense<0.000000e+00> : vector<1x32xf32>
    %384 = tpu.matmul %371, %112, %cst_178 {dimension_numbers = #tpu.dot_dimension_numbers<[1], [0], [0], [1], [0, 0, 1, 1], [], []>} : vector<1x32xf32>, vector<32x32xf32>, vector<1x32xf32> -> vector<1x32xf32>
    %385 = arith.addf %384, %118 : vector<1x32xf32>
    %cst_179 = arith.constant dense<0.000000e+00> : vector<1x32xf32>
    %386 = tpu.matmul %371, %114, %cst_179 {dimension_numbers = #tpu.dot_dimension_numbers<[1], [0], [0], [1], [0, 0, 1, 1], [], []>} : vector<1x32xf32>, vector<32x32xf32>, vector<1x32xf32> -> vector<1x32xf32>
    %387 = arith.addf %386, %120 : vector<1x32xf32>
    %388 = arith.addf %377, %383 : vector<1x32xf32>
    %389 = arith.negf %388 : vector<1x32xf32>
    %390 = math.exp %389 : vector<1x32xf32>
    %cst_180 = arith.constant 1.000000e+00 : f32
    %391 = vector.broadcast %cst_180 : f32 to vector<1x32xf32>
    %392 = arith.addf %391, %390 : vector<1x32xf32>
    %393 = arith.divf %391, %392 : vector<1x32xf32>
    %394 = arith.addf %379, %385 : vector<1x32xf32>
    %395 = arith.negf %394 : vector<1x32xf32>
    %396 = math.exp %395 : vector<1x32xf32>
    %cst_181 = arith.constant 1.000000e+00 : f32
    %397 = vector.broadcast %cst_181 : f32 to vector<1x32xf32>
    %398 = arith.addf %397, %396 : vector<1x32xf32>
    %399 = arith.divf %397, %398 : vector<1x32xf32>
    %400 = arith.mulf %393, %387 : vector<1x32xf32>
    %401 = arith.addf %381, %400 : vector<1x32xf32>
    %402 = math.tanh %401 : vector<1x32xf32>
    %cst_182 = arith.constant 1.000000e+00 : f32
    %403 = vector.broadcast %cst_182 : f32 to vector<1x32xf32>
    %404 = arith.subf %403, %399 : vector<1x32xf32>
    %405 = arith.mulf %404, %402 : vector<1x32xf32>
    %406 = arith.mulf %399, %371 : vector<1x32xf32>
    %407 = arith.addf %405, %406 : vector<1x32xf32>
    %408 = arith.index_cast %375 : i32 to index
    %c0_183 = arith.constant 0 : index
    %409 = vector.load %arg8[%408, %c0_183] : memref<8x32xf32, #tpu.memory_space<vmem>>, vector<1x32xf32>
    tpu.vector_store %arg8[%408, %c0_183], %407 {strides = array<i32>} : memref<8x32xf32, #tpu.memory_space<vmem>>, vector<1x32xf32>,
    %c8_i32 = arith.constant 8 : i32
    return
  }
  func.func @transform_1(%arg0: i32, %arg1: memref<8xi32, #tpu.memory_space<smem>>) -> (i32, i32) {
    %c0_i32 = arith.constant 0 : i32
    %c0_i32_0 = arith.constant 0 : i32
    %c0_i32_1 = arith.constant 0 : i32
    return %c0_i32, %c0_i32_0 : i32, i32
  }
  func.func @transform_2(%arg0: i32, %arg1: memref<8xi32, #tpu.memory_space<smem>>) -> (i32, i32, i32) {
    %c0_i32 = arith.constant 0 : i32
    %c0_i32_0 = arith.constant 0 : i32
    %c0_i32_1 = arith.constant 0 : i32
    %c0_i32_2 = arith.constant 0 : i32
    return %c0_i32, %c0_i32_0, %c0_i32_1 : i32, i32, i32
  }
  func.func @transform_3(%arg0: i32, %arg1: memref<8xi32, #tpu.memory_space<smem>>) -> (i32, i32, i32) {
    %c0_i32 = arith.constant 0 : i32
    %c0_i32_0 = arith.constant 0 : i32
    %c0_i32_1 = arith.constant 0 : i32
    %c0_i32_2 = arith.constant 0 : i32
    return %c0_i32, %c0_i32_0, %c0_i32_1 : i32, i32, i32
  }
  func.func @transform_4(%arg0: i32, %arg1: memref<8xi32, #tpu.memory_space<smem>>) -> (i32, i32, i32) {
    %c0_i32 = arith.constant 0 : i32
    %c0_i32_0 = arith.constant 0 : i32
    %c0_i32_1 = arith.constant 0 : i32
    %c0_i32_2 = arith.constant 0 : i32
    return %c0_i32, %c0_i32_0, %c0_i32_1 : i32, i32, i32
  }
  func.func @transform_5(%arg0: i32, %arg1: memref<8xi32, #tpu.memory_space<smem>>) -> (i32, i32, i32) {
    %c0_i32 = arith.constant 0 : i32
    %c0_i32_0 = arith.constant 0 : i32
    %c0_i32_1 = arith.constant 0 : i32
    %c0_i32_2 = arith.constant 0 : i32
    return %c0_i32, %c0_i32_0, %c0_i32_1 : i32, i32, i32
  }
  func.func @transform_6(%arg0: i32, %arg1: memref<8xi32, #tpu.memory_space<smem>>) -> (i32, i32) {
    %c0_i32 = arith.constant 0 : i32
    %c0_i32_0 = arith.constant 0 : i32
    %c0_i32_1 = arith.constant 0 : i32
    return %c0_i32, %c0_i32_0 : i32, i32
  }
}

</mosaic_0001>

<llo_original>
// kernel: tpu_custom_call.1
$region0: #{tpu_custom_call.1}
  #allocation0 [shape = 'u32[]', space=smem, size = 0x4, offset = 0x4, fixed_abs, tag = 'smem constant byte address 0x4 - core index']
  #allocation1 [shape = 'u32[144,128]{1,0:T(1,128)}', space=vmem, size = 0x12000, scoped, tag = 'internal scratch']
  #allocation2 [shape = 'f32[8,32]{1,0:T(8,128)}', space=vmem, size = 0x1000, scoped, tag = 'scratch operand']
  #allocation3 [shape = 'f32[8,32]{1,0:T(8,128)}', space=vmem, size = 0x1000, scoped, tag = 'scratch operand']
  #allocation4 [shape = 'f32[8,32]{1,0:T(8,128)}', space=vmem, size = 0x1000, scoped, tag = 'scratch operand']
  #allocation5 [shape = 'f32[8,32]{1,0:T(8,128)}', space=vmem, size = 0x1000, scoped, tag = 'scratch operand']
  #allocation6 [shape = 's32[8]{0}', space=sflag, size = 0x20, scoped, tag = 'scratch operand']
  #allocation7 [shape = 's32[1]{0}', space=sflag, size = 0x4, scoped, tag = 'scoped memory for tpu_custom_call.1']
  #allocation8 [shape = 'u8[512]{0}', space=smem, size = 0x200, scoped, tag = 'prefetched SMEM operand 0']
  #allocation15 [shape = 's32[]', space=sflag, size = 0x4, offset = 0, fixed_abs, tag = 'sflag constant byte address 0x0 - dummy sync flag']
  #allocation16 [shape = 's32[]', space=sflag, size = 0x4, offset = 0, fixed_abs, tag = 'sflag constant byte address 0x0 - dummy sync flag']
  #allocation17 [shape = 's32[]', space=sflag, size = 0x4, offset = 0, fixed_abs, tag = 'sflag constant byte address 0x0 - dummy sync flag']
  #allocation18 [shape = 's32[]', space=sflag, size = 0x4, offset = 0, fixed_abs, tag = 'sflag constant byte address 0x0 - dummy sync flag']
  #allocation19 [shape = 's32[]', space=sflag, size = 0x4, offset = 0, fixed_abs, tag = 'sflag constant byte address 0x0 - dummy sync flag']
  #allocation20 [shape = 's32[]', space=sflag, size = 0x4, offset = 0, fixed_abs, tag = 'sflag constant byte address 0x0 - dummy sync flag']
  #allocation21 [shape = 's32[]', space=sflag, size = 0x4, offset = 0, fixed_abs, tag = 'sflag constant byte address 0x0 - dummy sync flag']
  #allocation22 [shape = 's32[]', space=sflag, size = 0x4, offset = 0, fixed_abs, tag = 'sflag constant byte address 0x0 - dummy sync flag']
  %s0 = inlined_call_operand.vmem [shape: s32[8], index: 0, kind: input, shape index: {}]
  %s1 = inlined_call_operand.vmem [shape: f32[64,32], index: 1, kind: input, shape index: {}]
  %s2 = inlined_call_operand.hbm [shape: f32[1,32], index: 2, kind: input, shape index: {}]
  %s3 = inlined_call_operand.vmem [shape: f32[3,32,32], index: 3, kind: input, shape index: {}]
  %s4 = inlined_call_operand.hbm [shape: f32[3,32,32], index: 4, kind: input, shape index: {}]
  %s5 = inlined_call_operand.vmem [shape: f32[3,1,32], index: 5, kind: input, shape index: {}]
  %s6 = inlined_call_operand.vmem [shape: f32[3,1,32], index: 6, kind: input, shape index: {}]
  %s7 = inlined_call_operand.hbm [shape: f32[8,32], index: 7, kind: output, shape index: {}]
  %s8 = sld [smem:[#allocation0]]
  $region278: #{tpu_custom_call.1} parent=0
    _
  %s10 = ssub.s32 1, %s8
  %s11 = scalar_select 0, %s10, %s8
  %s12 = sshll.u32 %s0, 4
  %s13 = int_to_ptr.vmem [resolvable:$true] %s12
  %15 = dma.vmem_to_smem %s13, 16, [#allocation8], [#allocation7]
  %16 = dma.done [#allocation7], 16
  %17 = sfence
  $region1: #{tpu_custom_call.1} parent=0
    #allocation9 [shape = 'u8[512]{0}', space=vmem, size = 0x400, scoped, tag = 'input window, operand 2, single buffered']
    #allocation10 [shape = 's32[1]{0}', space=sflag, size = 0x4, scoped, tag = 'scoped memory for tpu_custom_call.1']
    #allocation11 [shape = 's32[1]{0}', space=sflag, size = 0x4, scoped, tag = 'scoped memory for tpu_custom_call.1']
    #allocation12 [shape = 'u8[49152]{0}', space=vmem, size = 0xc000, scoped, tag = 'input window, operand 4, single buffered']
    #allocation13 [shape = 's32[1]{0}', space=sflag, size = 0x4, scoped, tag = 'scoped memory for tpu_custom_call.1']
    #allocation14 [shape = 'u8[4096]{0}', space=vmem, size = 0x1000, scoped, tag = 'output window, operand 0, single buffered']
    %18 = vsyncpa [#allocation10], 0
    %19 = vsyncpa [#allocation13], 0
    %20 = vsyncpa [#allocation11], 0
    // Predicated region
    $region2: #{tpu_custom_call.1} parent=1 // pred_check
      _
    $region3: #{tpu_custom_call.1} parent=1 // pred_check_branch
      %22 = sbr.rel (0) target = $region5
    $region4: #{tpu_custom_call.1} parent=1 // pred_region
      %s24 = ssub.s32 16, 16
      %25 = vsyncadd [#allocation10], %s24
      %s27 = sshll.u32 [#allocation9], 4
      %s28 = int_to_ptr.vmem [resolvable:$true] %s27
      %30 = dma.hbm_to_vmem [thread:$0]  %s2, 16, %s28, [#allocation10]
    $region5: #{tpu_custom_call.1} parent=1 // pred_fallthru
      _
    // Predicated region
    $region6: #{tpu_custom_call.1} parent=1 // pred_check
      _
    $region7: #{tpu_custom_call.1} parent=1 // pred_check_branch
      %32 = sbr.rel (0) target = $region9
    $region8: #{tpu_custom_call.1} parent=1 // pred_region
      _
    $region9: #{tpu_custom_call.1} parent=1 // pred_fallthru
      _
    // Predicated region
    $region10: #{tpu_custom_call.1} parent=1 // pred_check
      _
    $region11: #{tpu_custom_call.1} parent=1 // pred_check_branch
      %34 = sbr.rel (0) target = $region13
    $region12: #{tpu_custom_call.1} parent=1 // pred_region
      %s36 = ssub.s32 1536, 1536
      %37 = vsyncadd [#allocation13], %s36
      %s38 = sshll.u32 [#allocation12], 4
      %s39 = int_to_ptr.vmem [resolvable:$true] %s38
      %44 = dma.hbm_to_vmem [thread:$0]  %s4, 1536, %s39, [#allocation13], 128, 128, 8
    $region13: #{tpu_custom_call.1} parent=1 // pred_fallthru
      _
    // Predicated region
    $region14: #{tpu_custom_call.1} parent=1 // pred_check
      _
    $region15: #{tpu_custom_call.1} parent=1 // pred_check_branch
      %46 = sbr.rel (0) target = $region17
    $region16: #{tpu_custom_call.1} parent=1 // pred_region
      _
    $region17: #{tpu_custom_call.1} parent=1 // pred_fallthru
      _
    // Predicated region
    $region18: #{tpu_custom_call.1} parent=1 // pred_check
      _
    $region19: #{tpu_custom_call.1} parent=1 // pred_check_branch
      %48 = sbr.rel (0) target = $region21
    $region20: #{tpu_custom_call.1} parent=1 // pred_region
      _
    $region21: #{tpu_custom_call.1} parent=1 // pred_fallthru
      _
    // Predicated region
    $region22: #{tpu_custom_call.1} parent=1 // pred_check
      _
    $region23: #{tpu_custom_call.1} parent=1 // pred_check_branch
      %50 = sbr.rel (0) target = $region25
    $region24: #{tpu_custom_call.1} parent=1 // pred_region
      %51 = dma.done [#allocation10], 16
    $region25: #{tpu_custom_call.1} parent=1 // pred_fallthru
      _
    // Predicated region
    $region26: #{tpu_custom_call.1} parent=1 // pred_check
      _
    $region27: #{tpu_custom_call.1} parent=1 // pred_check_branch
      %53 = sbr.rel (0) target = $region29
    $region28: #{tpu_custom_call.1} parent=1 // pred_region
      %54 = dma.done [#allocation13], 1536
    $region29: #{tpu_custom_call.1} parent=1 // pred_fallthru
      _
    %s55 = sld [smem:[#allocation8]]
    %s56 = scalar_lea.vmem %s1, %s55
    %p58 = scmp.lt.u32.totalorder 1, 8
    %p59 = pneg %p58
    // Predicated region
    $region30: #{tpu_custom_call.1} parent=1 // pred_check
      _
    $region31: #{tpu_custom_call.1} parent=1 // pred_check_branch
      %61 = sbr.rel (%p58) target = $region33
    $region32: #{tpu_custom_call.1} parent=1 // pred_region
      %s77 = sand.u32 1, 7
      %p78 = scmp.eq.s32.totalorder %s77, 0
      %p79 = pneg %p78
      // Predicated region
      $region45: #{tpu_custom_call.1} parent=32 // pred_check
        _
      $region46: #{tpu_custom_call.1} parent=32 // pred_check_branch
        %81 = sbr.rel (%p78) target = $region48
      $region47: #{tpu_custom_call.1} parent=32 // pred_region
        %s82 = sand.u32 1, 7
        %s83 = ssub.s32 1, %s82
        %s84 = scalar_lea.vmem %s56, %s83
        %s85 = ssub.s32 1, %s82
        %s86 = scalar_lea.vmem [#allocation2], %s85
        %s87 = sshll.u32 1, %s82
        %s88 = ssub.s32 %s87, 1
        loop: start=0, step=1, limit=1
        $region49: #{tpu_custom_call.1} parent=47 // loop_pre_header
          _
        $region50: #{tpu_custom_call.1} parent=47 // loop_header
          %s90 = sphi 0, %s94
          %p91 = scmp.ge.s32.totalorder %s90, 1
          %s95 = sphi %s84, %s84
          %s96 = sphi %s86, %s86
        $region51: #{tpu_custom_call.1} parent=47 // loop_header_branch
          %93 = sbr.rel (%p91) target = $region55
        $region52: #{tpu_custom_call.1} parent=47 // loop_body
          %v97 = vld [vmem:[%s95] sm:%s88]
          %98 = vst [vmem:[%s96] sm:%s88] %v97
        $region53: #{tpu_custom_call.1} parent=47 // loop_footer
          %s94 = sadd.s32 1, %s90
        $region54: #{tpu_custom_call.1} parent=47 // loop_footer_branch
          %89 = sbr.rel target = $region50
        $region55: #{tpu_custom_call.1} parent=47 // loop_exit
          _
      $region48: #{tpu_custom_call.1} parent=32 // pred_fallthru
        _
    $region33: #{tpu_custom_call.1} parent=1 // pred_fallthru
      _
    // Predicated region
    $region34: #{tpu_custom_call.1} parent=1 // pred_check
      %p62 = pneg %p58
    $region35: #{tpu_custom_call.1} parent=1 // pred_check_branch
      %64 = sbr.rel (%p62) target = $region37
    $region36: #{tpu_custom_call.1} parent=1 // pred_region
      %s65 = sshll.u32 1, 1
      %s66 = ssub.s32 %s65, 1
      loop: start=0, step=1, limit=1
      $region38: #{tpu_custom_call.1} parent=36 // loop_pre_header
        _
      $region39: #{tpu_custom_call.1} parent=36 // loop_header
        %s68 = sphi 0, %s72
        %p69 = scmp.ge.s32.totalorder %s68, 1
        %s73 = sphi %s56, %s56
        %s74 = sphi [#allocation2], [#allocation2]
      $region40: #{tpu_custom_call.1} parent=36 // loop_header_branch
        %71 = sbr.rel (%p69) target = $region44
      $region41: #{tpu_custom_call.1} parent=36 // loop_body
        %v75 = vld [vmem:[%s73] sm:%s66]
        %76 = vst [vmem:[%s74] sm:%s66] %v75
      $region42: #{tpu_custom_call.1} parent=36 // loop_footer
        %s72 = sadd.s32 1, %s68
      $region43: #{tpu_custom_call.1} parent=36 // loop_footer_branch
        %67 = sbr.rel target = $region39
      $region44: #{tpu_custom_call.1} parent=36 // loop_exit
        _
    $region37: #{tpu_custom_call.1} parent=1 // pred_fallthru
      _
    // Predicated region
    $region56: #{tpu_custom_call.1} parent=1 // pred_check
      _
    $region57: #{tpu_custom_call.1} parent=1 // pred_check_branch
      %101 = sbr.rel (0) target = $region59
    $region58: #{tpu_custom_call.1} parent=1 // pred_region
      %102 = vsyncadd [#allocation6], 16
    $region59: #{tpu_custom_call.1} parent=1 // pred_fallthru
      _
    %s103 = sld [smem:[#allocation8 + $0x1]]
    %s104 = scalar_lea.vmem %s1, %s103
    %s105 = scalar_lea.vmem [#allocation2], 1
    %s106 = scalar_lea.sflag [#allocation6], 1
    %p108 = scmp.lt.u32.totalorder 1, 8
    %p109 = pneg %p108
    // Predicated region
    $region60: #{tpu_custom_call.1} parent=1 // pred_check
      _
    $region61: #{tpu_custom_call.1} parent=1 // pred_check_branch
      %111 = sbr.rel (%p108) target = $region63
    $region62: #{tpu_custom_call.1} parent=1 // pred_region
      %s127 = sand.u32 1, 7
      %p128 = scmp.eq.s32.totalorder %s127, 0
      %p129 = pneg %p128
      // Predicated region
      $region75: #{tpu_custom_call.1} parent=62 // pred_check
        _
      $region76: #{tpu_custom_call.1} parent=62 // pred_check_branch
        %131 = sbr.rel (%p128) target = $region78
      $region77: #{tpu_custom_call.1} parent=62 // pred_region
        %s132 = sand.u32 1, 7
        %s133 = ssub.s32 1, %s132
        %s134 = scalar_lea.vmem %s104, %s133
        %s135 = ssub.s32 1, %s132
        %s136 = scalar_lea.vmem %s105, %s135 [#allocation2]
        %s137 = sshll.u32 1, %s132
        %s138 = ssub.s32 %s137, 1
        loop: start=0, step=1, limit=1
        $region79: #{tpu_custom_call.1} parent=77 // loop_pre_header
          _
        $region80: #{tpu_custom_call.1} parent=77 // loop_header
          %s140 = sphi 0, %s144
          %p141 = scmp.ge.s32.totalorder %s140, 1
          %s145 = sphi %s134, %s134
          %s146 = sphi %s136, %s136
        $region81: #{tpu_custom_call.1} parent=77 // loop_header_branch
          %143 = sbr.rel (%p141) target = $region85
        $region82: #{tpu_custom_call.1} parent=77 // loop_body
          %v147 = vld [vmem:[%s145] sm:%s138]
          %148 = vst [vmem:[%s146] sm:%s138] %v147
        $region83: #{tpu_custom_call.1} parent=77 // loop_footer
          %s144 = sadd.s32 1, %s140
        $region84: #{tpu_custom_call.1} parent=77 // loop_footer_branch
          %139 = sbr.rel target = $region80
        $region85: #{tpu_custom_call.1} parent=77 // loop_exit
          _
      $region78: #{tpu_custom_call.1} parent=62 // pred_fallthru
        _
    $region63: #{tpu_custom_call.1} parent=1 // pred_fallthru
      _
    // Predicated region
    $region64: #{tpu_custom_call.1} parent=1 // pred_check
      %p112 = pneg %p108
    $region65: #{tpu_custom_call.1} parent=1 // pred_check_branch
      %114 = sbr.rel (%p112) target = $region67
    $region66: #{tpu_custom_call.1} parent=1 // pred_region
      %s115 = sshll.u32 1, 1
      %s116 = ssub.s32 %s115, 1
      loop: start=0, step=1, limit=1
      $region68: #{tpu_custom_call.1} parent=66 // loop_pre_header
        _
      $region69: #{tpu_custom_call.1} parent=66 // loop_header
        %s118 = sphi 0, %s122
        %p119 = scmp.ge.s32.totalorder %s118, 1
        %s123 = sphi %s104, %s104
        %s124 = sphi %s105, %s105
      $region70: #{tpu_custom_call.1} parent=66 // loop_header_branch
        %121 = sbr.rel (%p119) target = $region74
      $region71: #{tpu_custom_call.1} parent=66 // loop_body
        %v125 = vld [vmem:[%s123] sm:%s116]
        %126 = vst [vmem:[%s124] sm:%s116] %v125
      $region72: #{tpu_custom_call.1} parent=66 // loop_footer
        %s122 = sadd.s32 1, %s118
      $region73: #{tpu_custom_call.1} parent=66 // loop_footer_branch
        %117 = sbr.rel target = $region69
      $region74: #{tpu_custom_call.1} parent=66 // loop_exit
        _
    $region67: #{tpu_custom_call.1} parent=1 // pred_fallthru
      _
    // Predicated region
    $region86: #{tpu_custom_call.1} parent=1 // pred_check
      _
    $region87: #{tpu_custom_call.1} parent=1 // pred_check_branch
      %151 = sbr.rel (0) target = $region89
    $region88: #{tpu_custom_call.1} parent=1 // pred_region
      %152 = vsyncadd %s106, 16
    $region89: #{tpu_custom_call.1} parent=1 // pred_fallthru
      _
    %s153 = sld [smem:[#allocation8 + $0x2]]
    %s154 = scalar_lea.vmem %s1, %s153
    %s155 = scalar_lea.vmem [#allocation2], 2
    %s156 = scalar_lea.sflag [#allocation6], 2
    %p158 = scmp.lt.u32.totalorder 1, 8
    %p159 = pneg %p158
    // Predicated region
    $region90: #{tpu_custom_call.1} parent=1 // pred_check
      _
    $region91: #{tpu_custom_call.1} parent=1 // pred_check_branch
      %161 = sbr.rel (%p158) target = $region93
    $region92: #{tpu_custom_call.1} parent=1 // pred_region
      %s177 = sand.u32 1, 7
      %p178 = scmp.eq.s32.totalorder %s177, 0
      %p179 = pneg %p178
      // Predicated region
      $region105: #{tpu_custom_call.1} parent=92 // pred_check
        _
      $region106: #{tpu_custom_call.1} parent=92 // pred_check_branch
        %181 = sbr.rel (%p178) target = $region108
      $region107: #{tpu_custom_call.1} parent=92 // pred_region
        %s182 = sand.u32 1, 7
        %s183 = ssub.s32 1, %s182
        %s184 = scalar_lea.vmem %s154, %s183
        %s185 = ssub.s32 1, %s182
        %s186 = scalar_lea.vmem %s155, %s185 [#allocation2]
        %s187 = sshll.u32 1, %s182
        %s188 = ssub.s32 %s187, 1
        loop: start=0, step=1, limit=1
        $region109: #{tpu_custom_call.1} parent=107 // loop_pre_header
          _
        $region110: #{tpu_custom_call.1} parent=107 // loop_header
          %s190 = sphi 0, %s194
          %p191 = scmp.ge.s32.totalorder %s190, 1
          %s195 = sphi %s184, %s184
          %s196 = sphi %s186, %s186
        $region111: #{tpu_custom_call.1} parent=107 // loop_header_branch
          %193 = sbr.rel (%p191) target = $region115
        $region112: #{tpu_custom_call.1} parent=107 // loop_body
          %v197 = vld [vmem:[%s195] sm:%s188]
          %198 = vst [vmem:[%s196] sm:%s188] %v197
        $region113: #{tpu_custom_call.1} parent=107 // loop_footer
          %s194 = sadd.s32 1, %s190
        $region114: #{tpu_custom_call.1} parent=107 // loop_footer_branch
          %189 = sbr.rel target = $region110
        $region115: #{tpu_custom_call.1} parent=107 // loop_exit
          _
      $region108: #{tpu_custom_call.1} parent=92 // pred_fallthru
        _
    $region93: #{tpu_custom_call.1} parent=1 // pred_fallthru
      _
    // Predicated region
    $region94: #{tpu_custom_call.1} parent=1 // pred_check
      %p162 = pneg %p158
    $region95: #{tpu_custom_call.1} parent=1 // pred_check_branch
      %164 = sbr.rel (%p162) target = $region97
    $region96: #{tpu_custom_call.1} parent=1 // pred_region
      %s165 = sshll.u32 1, 1
      %s166 = ssub.s32 %s165, 1
      loop: start=0, step=1, limit=1
      $region98: #{tpu_custom_call.1} parent=96 // loop_pre_header
        _
      $region99: #{tpu_custom_call.1} parent=96 // loop_header
        %s168 = sphi 0, %s172
        %p169 = scmp.ge.s32.totalorder %s168, 1
        %s173 = sphi %s154, %s154
        %s174 = sphi %s155, %s155
      $region100: #{tpu_custom_call.1} parent=96 // loop_header_branch
        %171 = sbr.rel (%p169) target = $region104
      $region101: #{tpu_custom_call.1} parent=96 // loop_body
        %v175 = vld [vmem:[%s173] sm:%s166]
        %176 = vst [vmem:[%s174] sm:%s166] %v175
      $region102: #{tpu_custom_call.1} parent=96 // loop_footer
        %s172 = sadd.s32 1, %s168
      $region103: #{tpu_custom_call.1} parent=96 // loop_footer_branch
        %167 = sbr.rel target = $region99
      $region104: #{tpu_custom_call.1} parent=96 // loop_exit
        _
    $region97: #{tpu_custom_call.1} parent=1 // pred_fallthru
      _
    // Predicated region
    $region116: #{tpu_custom_call.1} parent=1 // pred_check
      _
    $region117: #{tpu_custom_call.1} parent=1 // pred_check_branch
      %201 = sbr.rel (0) target = $region119
    $region118: #{tpu_custom_call.1} parent=1 // pred_region
      %202 = vsyncadd %s156, 16
    $region119: #{tpu_custom_call.1} parent=1 // pred_fallthru
      _
    %s203 = sld [smem:[#allocation8 + $0x3]]
    %s204 = scalar_lea.vmem %s1, %s203
    %s205 = scalar_lea.vmem [#allocation2], 3
    %s206 = scalar_lea.sflag [#allocation6], 3
    %p208 = scmp.lt.u32.totalorder 1, 8
    %p209 = pneg %p208
    // Predicated region
    $region120: #{tpu_custom_call.1} parent=1 // pred_check
      _
    $region121: #{tpu_custom_call.1} parent=1 // pred_check_branch
      %211 = sbr.rel (%p208) target = $region123
    $region122: #{tpu_custom_call.1} parent=1 // pred_region
      %s227 = sand.u32 1, 7
      %p228 = scmp.eq.s32.totalorder %s227, 0
      %p229 = pneg %p228
      // Predicated region
      $region135: #{tpu_custom_call.1} parent=122 // pred_check
        _
      $region136: #{tpu_custom_call.1} parent=122 // pred_check_branch
        %231 = sbr.rel (%p228) target = $region138
      $region137: #{tpu_custom_call.1} parent=122 // pred_region
        %s232 = sand.u32 1, 7
        %s233 = ssub.s32 1, %s232
        %s234 = scalar_lea.vmem %s204, %s233
        %s235 = ssub.s32 1, %s232
        %s236 = scalar_lea.vmem %s205, %s235 [#allocation2]
        %s237 = sshll.u32 1, %s232
        %s238 = ssub.s32 %s237, 1
        loop: start=0, step=1, limit=1
        $region139: #{tpu_custom_call.1} parent=137 // loop_pre_header
          _
        $region140: #{tpu_custom_call.1} parent=137 // loop_header
          %s240 = sphi 0, %s244
          %p241 = scmp.ge.s32.totalorder %s240, 1
          %s245 = sphi %s234, %s234
          %s246 = sphi %s236, %s236
        $region141: #{tpu_custom_call.1} parent=137 // loop_header_branch
          %243 = sbr.rel (%p241) target = $region145
        $region142: #{tpu_custom_call.1} parent=137 // loop_body
          %v247 = vld [vmem:[%s245] sm:%s238]
          %248 = vst [vmem:[%s246] sm:%s238] %v247
        $region143: #{tpu_custom_call.1} parent=137 // loop_footer
          %s244 = sadd.s32 1, %s240
        $region144: #{tpu_custom_call.1} parent=137 // loop_footer_branch
          %239 = sbr.rel target = $region140
        $region145: #{tpu_custom_call.1} parent=137 // loop_exit
          _
      $region138: #{tpu_custom_call.1} parent=122 // pred_fallthru
        _
    $region123: #{tpu_custom_call.1} parent=1 // pred_fallthru
      _
    // Predicated region
    $region124: #{tpu_custom_call.1} parent=1 // pred_check
      %p212 = pneg %p208
    $region125: #{tpu_custom_call.1} parent=1 // pred_check_branch
      %214 = sbr.rel (%p212) target = $region127
    $region126: #{tpu_custom_call.1} parent=1 // pred_region
      %s215 = sshll.u32 1, 1
      %s216 = ssub.s32 %s215, 1
      loop: start=0, step=1, limit=1
      $region128: #{tpu_custom_call.1} parent=126 // loop_pre_header
        _
      $region129: #{tpu_custom_call.1} parent=126 // loop_header
        %s218 = sphi 0, %s222
        %p219 = scmp.ge.s32.totalorder %s218, 1
        %s223 = sphi %s204, %s204
        %s224 = sphi %s205, %s205
      $region130: #{tpu_custom_call.1} parent=126 // loop_header_branch
        %221 = sbr.rel (%p219) target = $region134
      $region131: #{tpu_custom_call.1} parent=126 // loop_body
        %v225 = vld [vmem:[%s223] sm:%s216]
        %226 = vst [vmem:[%s224] sm:%s216] %v225
      $region132: #{tpu_custom_call.1} parent=126 // loop_footer
        %s222 = sadd.s32 1, %s218
      $region133: #{tpu_custom_call.1} parent=126 // loop_footer_branch
        %217 = sbr.rel target = $region129
      $region134: #{tpu_custom_call.1} parent=126 // loop_exit
        _
    $region127: #{tpu_custom_call.1} parent=1 // pred_fallthru
      _
    // Predicated region
    $region146: #{tpu_custom_call.1} parent=1 // pred_check
      _
    $region147: #{tpu_custom_call.1} parent=1 // pred_check_branch
      %251 = sbr.rel (0) target = $region149
    $region148: #{tpu_custom_call.1} parent=1 // pred_region
      %252 = vsyncadd %s206, 16
    $region149: #{tpu_custom_call.1} parent=1 // pred_fallthru
      _
    %s253 = sld [smem:[#allocation8 + $0x4]]
    %s254 = scalar_lea.vmem %s1, %s253
    %s255 = scalar_lea.vmem [#allocation2], 4
    %s256 = scalar_lea.sflag [#allocation6], 4
    %p258 = scmp.lt.u32.totalorder 1, 8
    %p259 = pneg %p258
    // Predicated region
    $region150: #{tpu_custom_call.1} parent=1 // pred_check
      _
    $region151: #{tpu_custom_call.1} parent=1 // pred_check_branch
      %261 = sbr.rel (%p258) target = $region153
    $region152: #{tpu_custom_call.1} parent=1 // pred_region
      %s277 = sand.u32 1, 7
      %p278 = scmp.eq.s32.totalorder %s277, 0
      %p279 = pneg %p278
      // Predicated region
      $region165: #{tpu_custom_call.1} parent=152 // pred_check
        _
      $region166: #{tpu_custom_call.1} parent=152 // pred_check_branch
        %281 = sbr.rel (%p278) target = $region168
      $region167: #{tpu_custom_call.1} parent=152 // pred_region
        %s282 = sand.u32 1, 7
        %s283 = ssub.s32 1, %s282
        %s284 = scalar_lea.vmem %s254, %s283
        %s285 = ssub.s32 1, %s282
        %s286 = scalar_lea.vmem %s255, %s285 [#allocation2]
        %s287 = sshll.u32 1, %s282
        %s288 = ssub.s32 %s287, 1
        loop: start=0, step=1, limit=1
        $region169: #{tpu_custom_call.1} parent=167 // loop_pre_header
          _
        $region170: #{tpu_custom_call.1} parent=167 // loop_header
          %s290 = sphi 0, %s294
          %p291 = scmp.ge.s32.totalorder %s290, 1
          %s295 = sphi %s284, %s284
          %s296 = sphi %s286, %s286
        $region171: #{tpu_custom_call.1} parent=167 // loop_header_branch
          %293 = sbr.rel (%p291) target = $region175
        $region172: #{tpu_custom_call.1} parent=167 // loop_body
          %v297 = vld [vmem:[%s295] sm:%s288]
          %298 = vst [vmem:[%s296] sm:%s288] %v297
        $region173: #{tpu_custom_call.1} parent=167 // loop_footer
          %s294 = sadd.s32 1, %s290
        $region174: #{tpu_custom_call.1} parent=167 // loop_footer_branch
          %289 = sbr.rel target = $region170
        $region175: #{tpu_custom_call.1} parent=167 // loop_exit
          _
      $region168: #{tpu_custom_call.1} parent=152 // pred_fallthru
        _
    $region153: #{tpu_custom_call.1} parent=1 // pred_fallthru
      _
    // Predicated region
    $region154: #{tpu_custom_call.1} parent=1 // pred_check
      %p262 = pneg %p258
    $region155: #{tpu_custom_call.1} parent=1 // pred_check_branch
      %264 = sbr.rel (%p262) target = $region157
    $region156: #{tpu_custom_call.1} parent=1 // pred_region
      %s265 = sshll.u32 1, 1
      %s266 = ssub.s32 %s265, 1
      loop: start=0, step=1, limit=1
      $region158: #{tpu_custom_call.1} parent=156 // loop_pre_header
        _
      $region159: #{tpu_custom_call.1} parent=156 // loop_header
        %s268 = sphi 0, %s272
        %p269 = scmp.ge.s32.totalorder %s268, 1
        %s273 = sphi %s254, %s254
        %s274 = sphi %s255, %s255
      $region160: #{tpu_custom_call.1} parent=156 // loop_header_branch
        %271 = sbr.rel (%p269) target = $region164
      $region161: #{tpu_custom_call.1} parent=156 // loop_body
        %v275 = vld [vmem:[%s273] sm:%s266]
        %276 = vst [vmem:[%s274] sm:%s266] %v275
      $region162: #{tpu_custom_call.1} parent=156 // loop_footer
        %s272 = sadd.s32 1, %s268
      $region163: #{tpu_custom_call.1} parent=156 // loop_footer_branch
        %267 = sbr.rel target = $region159
      $region164: #{tpu_custom_call.1} parent=156 // loop_exit
        _
    $region157: #{tpu_custom_call.1} parent=1 // pred_fallthru
      _
    // Predicated region
    $region176: #{tpu_custom_call.1} parent=1 // pred_check
      _
    $region177: #{tpu_custom_call.1} parent=1 // pred_check_branch
      %301 = sbr.rel (0) target = $region179
    $region178: #{tpu_custom_call.1} parent=1 // pred_region
      %302 = vsyncadd %s256, 16
    $region179: #{tpu_custom_call.1} parent=1 // pred_fallthru
      _
    %s303 = sld [smem:[#allocation8 + $0x5]]
    %s304 = scalar_lea.vmem %s1, %s303
    %s305 = scalar_lea.vmem [#allocation2], 5
    %s306 = scalar_lea.sflag [#allocation6], 5
    %p308 = scmp.lt.u32.totalorder 1, 8
    %p309 = pneg %p308
    // Predicated region
    $region180: #{tpu_custom_call.1} parent=1 // pred_check
      _
    $region181: #{tpu_custom_call.1} parent=1 // pred_check_branch
      %311 = sbr.rel (%p308) target = $region183
    $region182: #{tpu_custom_call.1} parent=1 // pred_region
      %s327 = sand.u32 1, 7
      %p328 = scmp.eq.s32.totalorder %s327, 0
      %p329 = pneg %p328
      // Predicated region
      $region195: #{tpu_custom_call.1} parent=182 // pred_check
        _
      $region196: #{tpu_custom_call.1} parent=182 // pred_check_branch
        %331 = sbr.rel (%p328) target = $region198
      $region197: #{tpu_custom_call.1} parent=182 // pred_region
        %s332 = sand.u32 1, 7
        %s333 = ssub.s32 1, %s332
        %s334 = scalar_lea.vmem %s304, %s333
        %s335 = ssub.s32 1, %s332
        %s336 = scalar_lea.vmem %s305, %s335 [#allocation2]
        %s337 = sshll.u32 1, %s332
        %s338 = ssub.s32 %s337, 1
        loop: start=0, step=1, limit=1
        $region199: #{tpu_custom_call.1} parent=197 // loop_pre_header
          _
        $region200: #{tpu_custom_call.1} parent=197 // loop_header
          %s340 = sphi 0, %s344
          %p341 = scmp.ge.s32.totalorder %s340, 1
          %s345 = sphi %s334, %s334
          %s346 = sphi %s336, %s336
        $region201: #{tpu_custom_call.1} parent=197 // loop_header_branch
          %343 = sbr.rel (%p341) target = $region205
        $region202: #{tpu_custom_call.1} parent=197 // loop_body
          %v347 = vld [vmem:[%s345] sm:%s338]
          %348 = vst [vmem:[%s346] sm:%s338] %v347
        $region203: #{tpu_custom_call.1} parent=197 // loop_footer
          %s344 = sadd.s32 1, %s340
        $region204: #{tpu_custom_call.1} parent=197 // loop_footer_branch
          %339 = sbr.rel target = $region200
        $region205: #{tpu_custom_call.1} parent=197 // loop_exit
          _
      $region198: #{tpu_custom_call.1} parent=182 // pred_fallthru
        _
    $region183: #{tpu_custom_call.1} parent=1 // pred_fallthru
      _
    // Predicated region
    $region184: #{tpu_custom_call.1} parent=1 // pred_check
      %p312 = pneg %p308
    $region185: #{tpu_custom_call.1} parent=1 // pred_check_branch
      %314 = sbr.rel (%p312) target = $region187
    $region186: #{tpu_custom_call.1} parent=1 // pred_region
      %s315 = sshll.u32 1, 1
      %s316 = ssub.s32 %s315, 1
      loop: start=0, step=1, limit=1
      $region188: #{tpu_custom_call.1} parent=186 // loop_pre_header
        _
      $region189: #{tpu_custom_call.1} parent=186 // loop_header
        %s318 = sphi 0, %s322
        %p319 = scmp.ge.s32.totalorder %s318, 1
        %s323 = sphi %s304, %s304
        %s324 = sphi %s305, %s305
      $region190: #{tpu_custom_call.1} parent=186 // loop_header_branch
        %321 = sbr.rel (%p319) target = $region194
      $region191: #{tpu_custom_call.1} parent=186 // loop_body
        %v325 = vld [vmem:[%s323] sm:%s316]
        %326 = vst [vmem:[%s324] sm:%s316] %v325
      $region192: #{tpu_custom_call.1} parent=186 // loop_footer
        %s322 = sadd.s32 1, %s318
      $region193: #{tpu_custom_call.1} parent=186 // loop_footer_branch
        %317 = sbr.rel target = $region189
      $region194: #{tpu_custom_call.1} parent=186 // loop_exit
        _
    $region187: #{tpu_custom_call.1} parent=1 // pred_fallthru
      _
    // Predicated region
    $region206: #{tpu_custom_call.1} parent=1 // pred_check
      _
    $region207: #{tpu_custom_call.1} parent=1 // pred_check_branch
      %351 = sbr.rel (0) target = $region209
    $region208: #{tpu_custom_call.1} parent=1 // pred_region
      %352 = vsyncadd %s306, 16
    $region209: #{tpu_custom_call.1} parent=1 // pred_fallthru
      _
    %s353 = sld [smem:[#allocation8 + $0x6]]
    %s354 = scalar_lea.vmem %s1, %s353
    %s355 = scalar_lea.vmem [#allocation2], 6
    %s356 = scalar_lea.sflag [#allocation6], 6
    %p358 = scmp.lt.u32.totalorder 1, 8
    %p359 = pneg %p358
    // Predicated region
    $region210: #{tpu_custom_call.1} parent=1 // pred_check
      _
    $region211: #{tpu_custom_call.1} parent=1 // pred_check_branch
      %361 = sbr.rel (%p358) target = $region213
    $region212: #{tpu_custom_call.1} parent=1 // pred_region
      %s377 = sand.u32 1, 7
      %p378 = scmp.eq.s32.totalorder %s377, 0
      %p379 = pneg %p378
      // Predicated region
      $region225: #{tpu_custom_call.1} parent=212 // pred_check
        _
      $region226: #{tpu_custom_call.1} parent=212 // pred_check_branch
        %381 = sbr.rel (%p378) target = $region228
      $region227: #{tpu_custom_call.1} parent=212 // pred_region
        %s382 = sand.u32 1, 7
        %s383 = ssub.s32 1, %s382
        %s384 = scalar_lea.vmem %s354, %s383
        %s385 = ssub.s32 1, %s382
        %s386 = scalar_lea.vmem %s355, %s385 [#allocation2]
        %s387 = sshll.u32 1, %s382
        %s388 = ssub.s32 %s387, 1
        loop: start=0, step=1, limit=1
        $region229: #{tpu_custom_call.1} parent=227 // loop_pre_header
          _
        $region230: #{tpu_custom_call.1} parent=227 // loop_header
          %s390 = sphi 0, %s394
          %p391 = scmp.ge.s32.totalorder %s390, 1
          %s395 = sphi %s384, %s384
          %s396 = sphi %s386, %s386
        $region231: #{tpu_custom_call.1} parent=227 // loop_header_branch
          %393 = sbr.rel (%p391) target = $region235
        $region232: #{tpu_custom_call.1} parent=227 // loop_body
          %v397 = vld [vmem:[%s395] sm:%s388]
          %398 = vst [vmem:[%s396] sm:%s388] %v397
        $region233: #{tpu_custom_call.1} parent=227 // loop_footer
          %s394 = sadd.s32 1, %s390
        $region234: #{tpu_custom_call.1} parent=227 // loop_footer_branch
          %389 = sbr.rel target = $region230
        $region235: #{tpu_custom_call.1} parent=227 // loop_exit
          _
      $region228: #{tpu_custom_call.1} parent=212 // pred_fallthru
        _
    $region213: #{tpu_custom_call.1} parent=1 // pred_fallthru
      _
    // Predicated region
    $region214: #{tpu_custom_call.1} parent=1 // pred_check
      %p362 = pneg %p358
    $region215: #{tpu_custom_call.1} parent=1 // pred_check_branch
      %364 = sbr.rel (%p362) target = $region217
    $region216: #{tpu_custom_call.1} parent=1 // pred_region
      %s365 = sshll.u32 1, 1
      %s366 = ssub.s32 %s365, 1
      loop: start=0, step=1, limit=1
      $region218: #{tpu_custom_call.1} parent=216 // loop_pre_header
        _
      $region219: #{tpu_custom_call.1} parent=216 // loop_header
        %s368 = sphi 0, %s372
        %p369 = scmp.ge.s32.totalorder %s368, 1
        %s373 = sphi %s354, %s354
        %s374 = sphi %s355, %s355
      $region220: #{tpu_custom_call.1} parent=216 // loop_header_branch
        %371 = sbr.rel (%p369) target = $region224
      $region221: #{tpu_custom_call.1} parent=216 // loop_body
        %v375 = vld [vmem:[%s373] sm:%s366]
        %376 = vst [vmem:[%s374] sm:%s366] %v375
      $region222: #{tpu_custom_call.1} parent=216 // loop_footer
        %s372 = sadd.s32 1, %s368
      $region223: #{tpu_custom_call.1} parent=216 // loop_footer_branch
        %367 = sbr.rel target = $region219
      $region224: #{tpu_custom_call.1} parent=216 // loop_exit
        _
    $region217: #{tpu_custom_call.1} parent=1 // pred_fallthru
      _
    // Predicated region
    $region236: #{tpu_custom_call.1} parent=1 // pred_check
      _
    $region237: #{tpu_custom_call.1} parent=1 // pred_check_branch
      %401 = sbr.rel (0) target = $region239
    $region238: #{tpu_custom_call.1} parent=1 // pred_region
      %402 = vsyncadd %s356, 16
    $region239: #{tpu_custom_call.1} parent=1 // pred_fallthru
      _
    %s403 = sld [smem:[#allocation8 + $0x7]]
    %s404 = scalar_lea.vmem %s1, %s403
    %s405 = scalar_lea.vmem [#allocation2], 7
    %s406 = scalar_lea.sflag [#allocation6], 7
    %p408 = scmp.lt.u32.totalorder 1, 8
    %p409 = pneg %p408
    // Predicated region
    $region240: #{tpu_custom_call.1} parent=1 // pred_check
      _
    $region241: #{tpu_custom_call.1} parent=1 // pred_check_branch
      %411 = sbr.rel (%p408) target = $region243
    $region242: #{tpu_custom_call.1} parent=1 // pred_region
      %s427 = sand.u32 1, 7
      %p428 = scmp.eq.s32.totalorder %s427, 0
      %p429 = pneg %p428
      // Predicated region
      $region255: #{tpu_custom_call.1} parent=242 // pred_check
        _
      $region256: #{tpu_custom_call.1} parent=242 // pred_check_branch
        %431 = sbr.rel (%p428) target = $region258
      $region257: #{tpu_custom_call.1} parent=242 // pred_region
        %s432 = sand.u32 1, 7
        %s433 = ssub.s32 1, %s432
        %s434 = scalar_lea.vmem %s404, %s433
        %s435 = ssub.s32 1, %s432
        %s436 = scalar_lea.vmem %s405, %s435 [#allocation2]
        %s437 = sshll.u32 1, %s432
        %s438 = ssub.s32 %s437, 1
        loop: start=0, step=1, limit=1
        $region259: #{tpu_custom_call.1} parent=257 // loop_pre_header
          _
        $region260: #{tpu_custom_call.1} parent=257 // loop_header
          %s440 = sphi 0, %s444
          %p441 = scmp.ge.s32.totalorder %s440, 1
          %s445 = sphi %s434, %s434
          %s446 = sphi %s436, %s436
        $region261: #{tpu_custom_call.1} parent=257 // loop_header_branch
          %443 = sbr.rel (%p441) target = $region265
        $region262: #{tpu_custom_call.1} parent=257 // loop_body
          %v447 = vld [vmem:[%s445] sm:%s438]
          %448 = vst [vmem:[%s446] sm:%s438] %v447
        $region263: #{tpu_custom_call.1} parent=257 // loop_footer
          %s444 = sadd.s32 1, %s440
        $region264: #{tpu_custom_call.1} parent=257 // loop_footer_branch
          %439 = sbr.rel target = $region260
        $region265: #{tpu_custom_call.1} parent=257 // loop_exit
          _
      $region258: #{tpu_custom_call.1} parent=242 // pred_fallthru
        _
    $region243: #{tpu_custom_call.1} parent=1 // pred_fallthru
      _
    // Predicated region
    $region244: #{tpu_custom_call.1} parent=1 // pred_check
      %p412 = pneg %p408
    $region245: #{tpu_custom_call.1} parent=1 // pred_check_branch
      %414 = sbr.rel (%p412) target = $region247
    $region246: #{tpu_custom_call.1} parent=1 // pred_region
      %s415 = sshll.u32 1, 1
      %s416 = ssub.s32 %s415, 1
      loop: start=0, step=1, limit=1
      $region248: #{tpu_custom_call.1} parent=246 // loop_pre_header
        _
      $region249: #{tpu_custom_call.1} parent=246 // loop_header
        %s418 = sphi 0, %s422
        %p419 = scmp.ge.s32.totalorder %s418, 1
        %s423 = sphi %s404, %s404
        %s424 = sphi %s405, %s405
      $region250: #{tpu_custom_call.1} parent=246 // loop_header_branch
        %421 = sbr.rel (%p419) target = $region254
      $region251: #{tpu_custom_call.1} parent=246 // loop_body
        %v425 = vld [vmem:[%s423] sm:%s416]
        %426 = vst [vmem:[%s424] sm:%s416] %v425
      $region252: #{tpu_custom_call.1} parent=246 // loop_footer
        %s422 = sadd.s32 1, %s418
      $region253: #{tpu_custom_call.1} parent=246 // loop_footer_branch
        %417 = sbr.rel target = $region249
      $region254: #{tpu_custom_call.1} parent=246 // loop_exit
        _
    $region247: #{tpu_custom_call.1} parent=1 // pred_fallthru
      _
    // Predicated region
    $region266: #{tpu_custom_call.1} parent=1 // pred_check
      _
    $region267: #{tpu_custom_call.1} parent=1 // pred_check_branch
      %451 = sbr.rel (0) target = $region269
    $region268: #{tpu_custom_call.1} parent=1 // pred_region
      %452 = vsyncadd %s406, 16
    $region269: #{tpu_custom_call.1} parent=1 // pred_fallthru
      _
    %s453 = sld [smem:[#allocation8]]
    %s454 = smul.u32 1, 1
    %s455 = sshll.u32 %s454, 4
    %456 = dma.done [#allocation6], %s455
    %s457 = sld [smem:[#allocation8 + $0x1]]
    %s458 = sshll.u32 %s454, 4
    %459 = dma.done %s106, %s458
    %s460 = sld [smem:[#allocation8 + $0x2]]
    %s461 = sshll.u32 %s454, 4
    %462 = dma.done %s156, %s461
    %s463 = sld [smem:[#allocation8 + $0x3]]
    %s464 = sshll.u32 %s454, 4
    %465 = dma.done %s206, %s464
    %s466 = sld [smem:[#allocation8 + $0x4]]
    %s467 = sshll.u32 %s454, 4
    %468 = dma.done %s256, %s467
    %s469 = sld [smem:[#allocation8 + $0x5]]
    %s470 = sshll.u32 %s454, 4
    %471 = dma.done %s306, %s470
    %s472 = sld [smem:[#allocation8 + $0x6]]
    %s473 = sshll.u32 %s454, 4
    %474 = dma.done %s356, %s473
    %s475 = sld [smem:[#allocation8 + $0x7]]
    %s476 = sshll.u32 %s454, 4
    %477 = dma.done %s406, %s476
    %v478 = vld [vmem:[#allocation2] sm:$0xff]
    %v479 = vld [vmem:[%s3] sm:$0xff]
    %v480 = vld [vmem:[%s3 + $0x8] sm:$0xff]
    %v481 = vld [vmem:[%s3 + $0x10] sm:$0xff]
    %v482 = vld [vmem:[%s3 + $0x18] sm:$0xff]
    %v483 = vld [vmem:[%s3 + $0x20] sm:$0xff]
    %v484 = vld [vmem:[%s3 + $0x28] sm:$0xff]
    %v485 = vld [vmem:[%s3 + $0x30] sm:$0xff]
    %v486 = vld [vmem:[%s3 + $0x38] sm:$0xff]
    %v487 = vld [vmem:[%s3 + $0x40] sm:$0xff]
    %v488 = vld [vmem:[%s3 + $0x48] sm:$0xff]
    %v489 = vld [vmem:[%s3 + $0x50] sm:$0xff]
    %v490 = vld [vmem:[%s3 + $0x58] sm:$0xff]
    %v491 = vld [vmem:[%s5] sm:$0x1]
    %v492 = vld [vmem:[%s5 + $0x1] sm:$0x1]
    %v493 = vld [vmem:[%s5 + $0x2] sm:$0x1]
    %v495 = vlaneseq
    %v496 = vshrl.u32 %v495, 7
    %v497 = vsub.s32 0, %v496
    %v498 = vrot.slane %v491, %v497
    %vm500 = vcmask 261120
    %v502 = vsel %vm500, %v478, 0
    %504 = vmatprep.subr.mxu0 0.0
    %505 = vmatpush1.msra.mxu0 0.0
    %506 = vmatprep.subr.mxu0 0.0
    %507 = vmatpush1.msra.mxu0 0.0
    %508 = vmatprep.subr.mxu0 0.0
    %509 = vmatpush1.msra.mxu0 0.0
    %510 = vmatprep.subr.mxu0 0.0
    %511 = vmatpush1.msra.mxu0 0.0
    %512 = vmatprep.subr.mxu0 0.0
    %513 = vmatpush1.msra.mxu0 0.0
    %514 = vmatprep.subr.mxu0 0.0
    %515 = vmatpush1.msra.mxu0 0.0
    %516 = vmatprep.subr.mxu0 0.0
    %517 = vmatpush1.msra.mxu0 0.0
    %518 = vmatprep.subr.mxu0 0.0
    %519 = vmatpush1.msra.mxu0 0.0
    %520 = vmatprep.subr.mxu0 0.0
    %521 = vmatpush1.msra.mxu0 0.0
    %522 = vmatprep.subr.mxu0 0.0
    %523 = vmatpush1.msra.mxu0 0.0
    %524 = vmatprep.subr.mxu0 0.0
    %525 = vmatpush1.msra.mxu0 0.0
    %526 = vmatprep.subr.mxu0 0.0
    %527 = vmatpush1.msra.mxu0 0.0
    %528 = vmatprep.subr.mxu0 0.0
    %529 = vmatpush1.msra.mxu0 %v482
    %530 = vmatprep.subr.mxu0 0.0
    %531 = vmatpush1.msra.mxu0 %v481
    %532 = vmatprep.subr.mxu0 0.0
    %533 = vmatpush1.msra.mxu0 %v480
    %534 = vmatprep.subr.mxu0 0.0
    %535 = vmatpush1.msra.mxu0 %v479
    %536 = vmatprep.subr.mxu0 0.0
    %537 = vmatpush2.msra.mxu0 0.0
    %538 = vmatprep.subr.mxu0 0.0
    %539 = vmatpush2.msra.mxu0 0.0
    %540 = vmatprep.subr.mxu0 0.0
    %541 = vmatpush2.msra.mxu0 0.0
    %542 = vmatprep.subr.mxu0 0.0
    %543 = vmatpush2.msra.mxu0 0.0
    %544 = vmatprep.subr.mxu0 0.0
    %545 = vmatpush2.msra.mxu0 0.0
    %546 = vmatprep.subr.mxu0 0.0
    %547 = vmatpush2.msra.mxu0 0.0
    %548 = vmatprep.subr.mxu0 0.0
    %549 = vmatpush2.msra.mxu0 0.0
    %550 = vmatprep.subr.mxu0 0.0
    %551 = vmatpush2.msra.mxu0 0.0
    %552 = vmatprep.subr.mxu0 0.0
    %553 = vmatpush2.msra.mxu0 0.0
    %554 = vmatprep.subr.mxu0 0.0
    %555 = vmatpush2.msra.mxu0 0.0
    %556 = vmatprep.subr.mxu0 0.0
    %557 = vmatpush2.msra.mxu0 0.0
    %558 = vmatprep.subr.mxu0 0.0
    %559 = vmatpush2.msra.mxu0 0.0
    %560 = vmatprep.subr.mxu0 0.0
    %561 = vmatpush2.msra.mxu0 0.0
    %562 = vmatprep.subr.mxu0 0.0
    %563 = vmatpush2.msra.mxu0 0.0
    %564 = vmatprep.subr.mxu0 0.0
    %565 = vmatpush2.msra.mxu0 0.0
    %566 = vmatprep.subr.mxu0 0.0
    %567 = vmatpush2.msra.mxu0 0.0
    %568 = vmatprep.mubr.f32.mxu0 0.0
    %569 = vmatmul.mubr.f32.gmra.mxu0 %v502
    %v570 = vpop.f32.mrf.mxu0
    %v571 = vadd.f32 %v498, %v570
    %v572 = vpop.f32.mrf.mxu0
    %573 = vdwg.mxu0
    %574 = vst.msk [vmem:[#allocation3] sm:$0xff] %vm500, %v571
    %v576 = vlaneseq
    %v577 = vshrl.u32 %v576, 7
    %v578 = vsub.s32 0, %v577
    %v579 = vrot.slane %v492, %v578
    %581 = vmatprep.subr.mxu0 0.0
    %582 = vmatpush1.msra.mxu0 0.0
    %583 = vmatprep.subr.mxu0 0.0
    %584 = vmatpush1.msra.mxu0 0.0
    %585 = vmatprep.subr.mxu0 0.0
    %586 = vmatpush1.msra.mxu0 0.0
    %587 = vmatprep.subr.mxu0 0.0
    %588 = vmatpush1.msra.mxu0 0.0
    %589 = vmatprep.subr.mxu0 0.0
    %590 = vmatpush1.msra.mxu0 0.0
    %591 = vmatprep.subr.mxu0 0.0
    %592 = vmatpush1.msra.mxu0 0.0
    %593 = vmatprep.subr.mxu0 0.0
    %594 = vmatpush1.msra.mxu0 0.0
    %595 = vmatprep.subr.mxu0 0.0
    %596 = vmatpush1.msra.mxu0 0.0
    %597 = vmatprep.subr.mxu0 0.0
    %598 = vmatpush1.msra.mxu0 0.0
    %599 = vmatprep.subr.mxu0 0.0
    %600 = vmatpush1.msra.mxu0 0.0
    %601 = vmatprep.subr.mxu0 0.0
    %602 = vmatpush1.msra.mxu0 0.0
    %603 = vmatprep.subr.mxu0 0.0
    %604 = vmatpush1.msra.mxu0 0.0
    %605 = vmatprep.subr.mxu0 0.0
    %606 = vmatpush1.msra.mxu0 %v486
    %607 = vmatprep.subr.mxu0 0.0
    %608 = vmatpush1.msra.mxu0 %v485
    %609 = vmatprep.subr.mxu0 0.0
    %610 = vmatpush1.msra.mxu0 %v484
    %611 = vmatprep.subr.mxu0 0.0
    %612 = vmatpush1.msra.mxu0 %v483
    %613 = vmatprep.subr.mxu0 0.0
    %614 = vmatpush2.msra.mxu0 0.0
    %615 = vmatprep.subr.mxu0 0.0
    %616 = vmatpush2.msra.mxu0 0.0
    %617 = vmatprep.subr.mxu0 0.0
    %618 = vmatpush2.msra.mxu0 0.0
    %619 = vmatprep.subr.mxu0 0.0
    %620 = vmatpush2.msra.mxu0 0.0
    %621 = vmatprep.subr.mxu0 0.0
    %622 = vmatpush2.msra.mxu0 0.0
    %623 = vmatprep.subr.mxu0 0.0
    %624 = vmatpush2.msra.mxu0 0.0
    %625 = vmatprep.subr.mxu0 0.0
    %626 = vmatpush2.msra.mxu0 0.0
    %627 = vmatprep.subr.mxu0 0.0
    %628 = vmatpush2.msra.mxu0 0.0
    %629 = vmatprep.subr.mxu0 0.0
    %630 = vmatpush2.msra.mxu0 0.0
    %631 = vmatprep.subr.mxu0 0.0
    %632 = vmatpush2.msra.mxu0 0.0
    %633 = vmatprep.subr.mxu0 0.0
    %634 = vmatpush2.msra.mxu0 0.0
    %635 = vmatprep.subr.mxu0 0.0
    %636 = vmatpush2.msra.mxu0 0.0
    %637 = vmatprep.subr.mxu0 0.0
    %638 = vmatpush2.msra.mxu0 0.0
    %639 = vmatprep.subr.mxu0 0.0
    %640 = vmatpush2.msra.mxu0 0.0
    %641 = vmatprep.subr.mxu0 0.0
    %642 = vmatpush2.msra.mxu0 0.0
    %643 = vmatprep.subr.mxu0 0.0
    %644 = vmatpush2.msra.mxu0 0.0
    %645 = vmatprep.mubr.f32.mxu0 0.0
    %646 = vmatmul.mubr.f32.gmra.mxu0 %v502
    %v647 = vpop.f32.mrf.mxu0
    %v648 = vadd.f32 %v579, %v647
    %v649 = vpop.f32.mrf.mxu0
    %650 = vdwg.mxu0
    %651 = vst.msk [vmem:[#allocation4] sm:$0xff] %vm500, %v648
    %v653 = vlaneseq
    %v654 = vshrl.u32 %v653, 7
    %v655 = vsub.s32 0, %v654
    %v656 = vrot.slane %v493, %v655
    %658 = vmatprep.subr.mxu0 0.0
    %659 = vmatpush1.msra.mxu0 0.0
    %660 = vmatprep.subr.mxu0 0.0
    %661 = vmatpush1.msra.mxu0 0.0
    %662 = vmatprep.subr.mxu0 0.0
    %663 = vmatpush1.msra.mxu0 0.0
    %664 = vmatprep.subr.mxu0 0.0
    %665 = vmatpush1.msra.mxu0 0.0
    %666 = vmatprep.subr.mxu0 0.0
    %667 = vmatpush1.msra.mxu0 0.0
    %668 = vmatprep.subr.mxu0 0.0
    %669 = vmatpush1.msra.mxu0 0.0
    %670 = vmatprep.subr.mxu0 0.0
    %671 = vmatpush1.msra.mxu0 0.0
    %672 = vmatprep.subr.mxu0 0.0
    %673 = vmatpush1.msra.mxu0 0.0
    %674 = vmatprep.subr.mxu0 0.0
    %675 = vmatpush1.msra.mxu0 0.0
    %676 = vmatprep.subr.mxu0 0.0
    %677 = vmatpush1.msra.mxu0 0.0
    %678 = vmatprep.subr.mxu0 0.0
    %679 = vmatpush1.msra.mxu0 0.0
    %680 = vmatprep.subr.mxu0 0.0
    %681 = vmatpush1.msra.mxu0 0.0
    %682 = vmatprep.subr.mxu0 0.0
    %683 = vmatpush1.msra.mxu0 %v490
    %684 = vmatprep.subr.mxu0 0.0
    %685 = vmatpush1.msra.mxu0 %v489
    %686 = vmatprep.subr.mxu0 0.0
    %687 = vmatpush1.msra.mxu0 %v488
    %688 = vmatprep.subr.mxu0 0.0
    %689 = vmatpush1.msra.mxu0 %v487
    %690 = vmatprep.subr.mxu0 0.0
    %691 = vmatpush2.msra.mxu0 0.0
    %692 = vmatprep.subr.mxu0 0.0
    %693 = vmatpush2.msra.mxu0 0.0
    %694 = vmatprep.subr.mxu0 0.0
    %695 = vmatpush2.msra.mxu0 0.0
    %696 = vmatprep.subr.mxu0 0.0
    %697 = vmatpush2.msra.mxu0 0.0
    %698 = vmatprep.subr.mxu0 0.0
    %699 = vmatpush2.msra.mxu0 0.0
    %700 = vmatprep.subr.mxu0 0.0
    %701 = vmatpush2.msra.mxu0 0.0
    %702 = vmatprep.subr.mxu0 0.0
    %703 = vmatpush2.msra.mxu0 0.0
    %704 = vmatprep.subr.mxu0 0.0
    %705 = vmatpush2.msra.mxu0 0.0
    %706 = vmatprep.subr.mxu0 0.0
    %707 = vmatpush2.msra.mxu0 0.0
    %708 = vmatprep.subr.mxu0 0.0
    %709 = vmatpush2.msra.mxu0 0.0
    %710 = vmatprep.subr.mxu0 0.0
    %711 = vmatpush2.msra.mxu0 0.0
    %712 = vmatprep.subr.mxu0 0.0
    %713 = vmatpush2.msra.mxu0 0.0
    %714 = vmatprep.subr.mxu0 0.0
    %715 = vmatpush2.msra.mxu0 0.0
    %716 = vmatprep.subr.mxu0 0.0
    %717 = vmatpush2.msra.mxu0 0.0
    %718 = vmatprep.subr.mxu0 0.0
    %719 = vmatpush2.msra.mxu0 0.0
    %720 = vmatprep.subr.mxu0 0.0
    %721 = vmatpush2.msra.mxu0 0.0
    %722 = vmatprep.mubr.f32.mxu0 0.0
    %723 = vmatmul.mubr.f32.gmra.mxu0 %v502
    %v724 = vpop.f32.mrf.mxu0
    %v725 = vadd.f32 %v656, %v724
    %v726 = vpop.f32.mrf.mxu0
    %727 = vdwg.mxu0
    %728 = vst.msk [vmem:[#allocation5] sm:$0xff] %vm500, %v725
    %v729 = vld [vmem:[#allocation12] sm:$0xff]
    %v730 = vld [vmem:[#allocation12 + $0x8] sm:$0xff]
    %v731 = vld [vmem:[#allocation12 + $0x10] sm:$0xff]
    %v732 = vld [vmem:[#allocation12 + $0x18] sm:$0xff]
    %v733 = vld [vmem:[#allocation12 + $0x20] sm:$0xff]
    %v734 = vld [vmem:[#allocation12 + $0x28] sm:$0xff]
    %v735 = vld [vmem:[#allocation12 + $0x30] sm:$0xff]
    %v736 = vld [vmem:[#allocation12 + $0x38] sm:$0xff]
    %v737 = vld [vmem:[#allocation12 + $0x40] sm:$0xff]
    %v738 = vld [vmem:[#allocation12 + $0x48] sm:$0xff]
    %v739 = vld [vmem:[#allocation12 + $0x50] sm:$0xff]
    %v740 = vld [vmem:[#allocation12 + $0x58] sm:$0xff]
    %v741 = vld [vmem:[%s6] sm:$0x1]
    %v742 = vld [vmem:[%s6 + $0x1] sm:$0x1]
    %v743 = vld [vmem:[%s6 + $0x2] sm:$0x1]
    %v744 = vld [vmem:[#allocation9] sm:$0x1]
    %v745 = vld [vmem:[#allocation3] sm:$0x1]
    %v746 = vld [vmem:[#allocation4] sm:$0x1]
    %v747 = vld [vmem:[#allocation5] sm:$0x1]
    %v749 = vsel %vm500, %v744, 0
    %751 = vmatprep.subr.mxu0 0.0
    %752 = vmatpush1.msra.mxu0 0.0
    %753 = vmatprep.subr.mxu0 0.0
    %754 = vmatpush1.msra.mxu0 0.0
    %755 = vmatprep.subr.mxu0 0.0
    %756 = vmatpush1.msra.mxu0 0.0
    %757 = vmatprep.subr.mxu0 0.0
    %758 = vmatpush1.msra.mxu0 0.0
    %759 = vmatprep.subr.mxu0 0.0
    %760 = vmatpush1.msra.mxu0 0.0
    %761 = vmatprep.subr.mxu0 0.0
    %762 = vmatpush1.msra.mxu0 0.0
    %763 = vmatprep.subr.mxu0 0.0
    %764 = vmatpush1.msra.mxu0 0.0
    %765 = vmatprep.subr.mxu0 0.0
    %766 = vmatpush1.msra.mxu0 0.0
    %767 = vmatprep.subr.mxu0 0.0
    %768 = vmatpush1.msra.mxu0 0.0
    %769 = vmatprep.subr.mxu0 0.0
    %770 = vmatpush1.msra.mxu0 0.0
    %771 = vmatprep.subr.mxu0 0.0
    %772 = vmatpush1.msra.mxu0 0.0
    %773 = vmatprep.subr.mxu0 0.0
    %774 = vmatpush1.msra.mxu0 0.0
    %775 = vmatprep.subr.mxu0 0.0
    %776 = vmatpush1.msra.mxu0 %v732
    %777 = vmatprep.subr.mxu0 0.0
    %778 = vmatpush1.msra.mxu0 %v731
    %779 = vmatprep.subr.mxu0 0.0
    %780 = vmatpush1.msra.mxu0 %v730
    %781 = vmatprep.subr.mxu0 0.0
    %782 = vmatpush1.msra.mxu0 %v729
    %783 = vmatprep.subr.mxu0 0.0
    %784 = vmatpush2.msra.mxu0 0.0
    %785 = vmatprep.subr.mxu0 0.0
    %786 = vmatpush2.msra.mxu0 0.0
    %787 = vmatprep.subr.mxu0 0.0
    %788 = vmatpush2.msra.mxu0 0.0
    %789 = vmatprep.subr.mxu0 0.0
    %790 = vmatpush2.msra.mxu0 0.0
    %791 = vmatprep.subr.mxu0 0.0
    %792 = vmatpush2.msra.mxu0 0.0
    %793 = vmatprep.subr.mxu0 0.0
    %794 = vmatpush2.msra.mxu0 0.0
    %795 = vmatprep.subr.mxu0 0.0
    %796 = vmatpush2.msra.mxu0 0.0
    %797 = vmatprep.subr.mxu0 0.0
    %798 = vmatpush2.msra.mxu0 0.0
    %799 = vmatprep.subr.mxu0 0.0
    %800 = vmatpush2.msra.mxu0 0.0
    %801 = vmatprep.subr.mxu0 0.0
    %802 = vmatpush2.msra.mxu0 0.0
    %803 = vmatprep.subr.mxu0 0.0
    %804 = vmatpush2.msra.mxu0 0.0
    %805 = vmatprep.subr.mxu0 0.0
    %806 = vmatpush2.msra.mxu0 0.0
    %807 = vmatprep.subr.mxu0 0.0
    %808 = vmatpush2.msra.mxu0 0.0
    %809 = vmatprep.subr.mxu0 0.0
    %810 = vmatpush2.msra.mxu0 0.0
    %811 = vmatprep.subr.mxu0 0.0
    %812 = vmatpush2.msra.mxu0 0.0
    %813 = vmatprep.subr.mxu0 0.0
    %814 = vmatpush2.msra.mxu0 0.0
    %815 = vmatprep.mubr.f32.mxu0 0.0
    %816 = vmatmul.mubr.f32.gmra.mxu0 %v749
    %v817 = vpop.f32.mrf.mxu0
    %v818 = vadd.f32 %v741, %v817
    %v819 = vpop.f32.mrf.mxu0
    %820 = vdwg.mxu0
    %821 = vmatprep.subr.mxu0 0.0
    %822 = vmatpush1.msra.mxu0 0.0
    %823 = vmatprep.subr.mxu0 0.0
    %824 = vmatpush1.msra.mxu0 0.0
    %825 = vmatprep.subr.mxu0 0.0
    %826 = vmatpush1.msra.mxu0 0.0
    %827 = vmatprep.subr.mxu0 0.0
    %828 = vmatpush1.msra.mxu0 0.0
    %829 = vmatprep.subr.mxu0 0.0
    %830 = vmatpush1.msra.mxu0 0.0
    %831 = vmatprep.subr.mxu0 0.0
    %832 = vmatpush1.msra.mxu0 0.0
    %833 = vmatprep.subr.mxu0 0.0
    %834 = vmatpush1.msra.mxu0 0.0
    %835 = vmatprep.subr.mxu0 0.0
    %836 = vmatpush1.msra.mxu0 0.0
    %837 = vmatprep.subr.mxu0 0.0
    %838 = vmatpush1.msra.mxu0 0.0
    %839 = vmatprep.subr.mxu0 0.0
    %840 = vmatpush1.msra.mxu0 0.0
    %841 = vmatprep.subr.mxu0 0.0
    %842 = vmatpush1.msra.mxu0 0.0
    %843 = vmatprep.subr.mxu0 0.0
    %844 = vmatpush1.msra.mxu0 0.0
    %845 = vmatprep.subr.mxu0 0.0
    %846 = vmatpush1.msra.mxu0 %v736
    %847 = vmatprep.subr.mxu0 0.0
    %848 = vmatpush1.msra.mxu0 %v735
    %849 = vmatprep.subr.mxu0 0.0
    %850 = vmatpush1.msra.mxu0 %v734
    %851 = vmatprep.subr.mxu0 0.0
    %852 = vmatpush1.msra.mxu0 %v733
    %853 = vmatprep.subr.mxu0 0.0
    %854 = vmatpush2.msra.mxu0 0.0
    %855 = vmatprep.subr.mxu0 0.0
    %856 = vmatpush2.msra.mxu0 0.0
    %857 = vmatprep.subr.mxu0 0.0
    %858 = vmatpush2.msra.mxu0 0.0
    %859 = vmatprep.subr.mxu0 0.0
    %860 = vmatpush2.msra.mxu0 0.0
    %861 = vmatprep.subr.mxu0 0.0
    %862 = vmatpush2.msra.mxu0 0.0
    %863 = vmatprep.subr.mxu0 0.0
    %864 = vmatpush2.msra.mxu0 0.0
    %865 = vmatprep.subr.mxu0 0.0
    %866 = vmatpush2.msra.mxu0 0.0
    %867 = vmatprep.subr.mxu0 0.0
    %868 = vmatpush2.msra.mxu0 0.0
    %869 = vmatprep.subr.mxu0 0.0
    %870 = vmatpush2.msra.mxu0 0.0
    %871 = vmatprep.subr.mxu0 0.0
    %872 = vmatpush2.msra.mxu0 0.0
    %873 = vmatprep.subr.mxu0 0.0
    %874 = vmatpush2.msra.mxu0 0.0
    %875 = vmatprep.subr.mxu0 0.0
    %876 = vmatpush2.msra.mxu0 0.0
    %877 = vmatprep.subr.mxu0 0.0
    %878 = vmatpush2.msra.mxu0 0.0
    %879 = vmatprep.subr.mxu0 0.0
    %880 = vmatpush2.msra.mxu0 0.0
    %881 = vmatprep.subr.mxu0 0.0
    %882 = vmatpush2.msra.mxu0 0.0
    %883 = vmatprep.subr.mxu0 0.0
    %884 = vmatpush2.msra.mxu0 0.0
    %885 = vmatprep.mubr.f32.mxu0 0.0
    %886 = vmatmul.mubr.f32.gmra.mxu0 %v749
    %v887 = vpop.f32.mrf.mxu0
    %v888 = vadd.f32 %v742, %v887
    %v889 = vpop.f32.mrf.mxu0
    %890 = vdwg.mxu0
    %891 = vmatprep.subr.mxu0 0.0
    %892 = vmatpush1.msra.mxu0 0.0
    %893 = vmatprep.subr.mxu0 0.0
    %894 = vmatpush1.msra.mxu0 0.0
    %895 = vmatprep.subr.mxu0 0.0
    %896 = vmatpush1.msra.mxu0 0.0
    %897 = vmatprep.subr.mxu0 0.0
    %898 = vmatpush1.msra.mxu0 0.0
    %899 = vmatprep.subr.mxu0 0.0
    %900 = vmatpush1.msra.mxu0 0.0
    %901 = vmatprep.subr.mxu0 0.0
    %902 = vmatpush1.msra.mxu0 0.0
    %903 = vmatprep.subr.mxu0 0.0
    %904 = vmatpush1.msra.mxu0 0.0
    %905 = vmatprep.subr.mxu0 0.0
    %906 = vmatpush1.msra.mxu0 0.0
    %907 = vmatprep.subr.mxu0 0.0
    %908 = vmatpush1.msra.mxu0 0.0
    %909 = vmatprep.subr.mxu0 0.0
    %910 = vmatpush1.msra.mxu0 0.0
    %911 = vmatprep.subr.mxu0 0.0
    %912 = vmatpush1.msra.mxu0 0.0
    %913 = vmatprep.subr.mxu0 0.0
    %914 = vmatpush1.msra.mxu0 0.0
    %915 = vmatprep.subr.mxu0 0.0
    %916 = vmatpush1.msra.mxu0 %v740
    %917 = vmatprep.subr.mxu0 0.0
    %918 = vmatpush1.msra.mxu0 %v739
    %919 = vmatprep.subr.mxu0 0.0
    %920 = vmatpush1.msra.mxu0 %v738
    %921 = vmatprep.subr.mxu0 0.0
    %922 = vmatpush1.msra.mxu0 %v737
    %923 = vmatprep.subr.mxu0 0.0
    %924 = vmatpush2.msra.mxu0 0.0
    %925 = vmatprep.subr.mxu0 0.0
    %926 = vmatpush2.msra.mxu0 0.0
    %927 = vmatprep.subr.mxu0 0.0
    %928 = vmatpush2.msra.mxu0 0.0
    %929 = vmatprep.subr.mxu0 0.0
    %930 = vmatpush2.msra.mxu0 0.0
    %931 = vmatprep.subr.mxu0 0.0
    %932 = vmatpush2.msra.mxu0 0.0
    %933 = vmatprep.subr.mxu0 0.0
    %934 = vmatpush2.msra.mxu0 0.0
    %935 = vmatprep.subr.mxu0 0.0
    %936 = vmatpush2.msra.mxu0 0.0
    %937 = vmatprep.subr.mxu0 0.0
    %938 = vmatpush2.msra.mxu0 0.0
    %939 = vmatprep.subr.mxu0 0.0
    %940 = vmatpush2.msra.mxu0 0.0
    %941 = vmatprep.subr.mxu0 0.0
    %942 = vmatpush2.msra.mxu0 0.0
    %943 = vmatprep.subr.mxu0 0.0
    %944 = vmatpush2.msra.mxu0 0.0
    %945 = vmatprep.subr.mxu0 0.0
    %946 = vmatpush2.msra.mxu0 0.0
    %947 = vmatprep.subr.mxu0 0.0
    %948 = vmatpush2.msra.mxu0 0.0
    %949 = vmatprep.subr.mxu0 0.0
    %950 = vmatpush2.msra.mxu0 0.0
    %951 = vmatprep.subr.mxu0 0.0
    %952 = vmatpush2.msra.mxu0 0.0
    %953 = vmatprep.subr.mxu0 0.0
    %954 = vmatpush2.msra.mxu0 0.0
    %955 = vmatprep.mubr.f32.mxu0 0.0
    %956 = vmatmul.mubr.f32.gmra.mxu0 %v749
    %v957 = vpop.f32.mrf.mxu0
    %v958 = vadd.f32 %v743, %v957
    %v959 = vpop.f32.mrf.mxu0
    %960 = vdwg.mxu0
    %v961 = vadd.f32 %v745, %v818
    %v962 = vxor.u32 %v961, 2147483648
    %v963 = vmul.f32 %v962, 1.442695
    %v964 = vpow.pop %v963
    %v965 = vadd.f32 %v964, 1.0
    %v966 = vrcp.pop %v965
    %v967 = vmul.f32 1.0, %v966
    %v968 = vadd.f32 %v746, %v888
    %v969 = vxor.u32 %v968, 2147483648
    %v970 = vmul.f32 %v969, 1.442695
    %v971 = vpow.pop %v970
    %v972 = vadd.f32 %v971, 1.0
    %v973 = vrcp.pop %v972
    %v974 = vmul.f32 1.0, %v973
    %v975 = vmul.f32 %v967, %v958
    %v976 = vadd.f32 %v747, %v975
    %v977 = vtanh.pop %v976
    %v978 = vsub.f32 1.0, %v974
    %v979 = vmul.f32 %v978, %v977
    %v980 = vmul.f32 %v974, %v744
    %v981 = vadd.f32 %v979, %v980
    %vm982 = vcmask 253952
    %983 = vst.msk [vmem:[#allocation14] sm:$0x1] %vm982, %v981
    %s984 = scalar_lea.vmem [#allocation3], 1
    %v985 = vld [vmem:[%s984] sm:$0x1]
    %s986 = scalar_lea.vmem [#allocation4], 1
    %v987 = vld [vmem:[%s986] sm:$0x1]
    %s988 = scalar_lea.vmem [#allocation5], 1
    %v989 = vld [vmem:[%s988] sm:$0x1]
    %v991 = vsel %vm500, %v981, 0
    %993 = vmatprep.subr.mxu0 0.0
    %994 = vmatpush1.msra.mxu0 0.0
    %995 = vmatprep.subr.mxu0 0.0
    %996 = vmatpush1.msra.mxu0 0.0
    %997 = vmatprep.subr.mxu0 0.0
    %998 = vmatpush1.msra.mxu0 0.0
    %999 = vmatprep.subr.mxu0 0.0
    %1000 = vmatpush1.msra.mxu0 0.0
    %1001 = vmatprep.subr.mxu0 0.0
    %1002 = vmatpush1.msra.mxu0 0.0
    %1003 = vmatprep.subr.mxu0 0.0
    %1004 = vmatpush1.msra.mxu0 0.0
    %1005 = vmatprep.subr.mxu0 0.0
    %1006 = vmatpush1.msra.mxu0 0.0
    %1007 = vmatprep.subr.mxu0 0.0
    %1008 = vmatpush1.msra.mxu0 0.0
    %1009 = vmatprep.subr.mxu0 0.0
    %1010 = vmatpush1.msra.mxu0 0.0
    %1011 = vmatprep.subr.mxu0 0.0
    %1012 = vmatpush1.msra.mxu0 0.0
    %1013 = vmatprep.subr.mxu0 0.0
    %1014 = vmatpush1.msra.mxu0 0.0
    %1015 = vmatprep.subr.mxu0 0.0
    %1016 = vmatpush1.msra.mxu0 0.0
    %1017 = vmatprep.subr.mxu0 0.0
    %1018 = vmatpush1.msra.mxu0 %v732
    %1019 = vmatprep.subr.mxu0 0.0
    %1020 = vmatpush1.msra.mxu0 %v731
    %1021 = vmatprep.subr.mxu0 0.0
    %1022 = vmatpush1.msra.mxu0 %v730
    %1023 = vmatprep.subr.mxu0 0.0
    %1024 = vmatpush1.msra.mxu0 %v729
    %1025 = vmatprep.subr.mxu0 0.0
    %1026 = vmatpush2.msra.mxu0 0.0
    %1027 = vmatprep.subr.mxu0 0.0
    %1028 = vmatpush2.msra.mxu0 0.0
    %1029 = vmatprep.subr.mxu0 0.0
    %1030 = vmatpush2.msra.mxu0 0.0
    %1031 = vmatprep.subr.mxu0 0.0
    %1032 = vmatpush2.msra.mxu0 0.0
    %1033 = vmatprep.subr.mxu0 0.0
    %1034 = vmatpush2.msra.mxu0 0.0
    %1035 = vmatprep.subr.mxu0 0.0
    %1036 = vmatpush2.msra.mxu0 0.0
    %1037 = vmatprep.subr.mxu0 0.0
    %1038 = vmatpush2.msra.mxu0 0.0
    %1039 = vmatprep.subr.mxu0 0.0
    %1040 = vmatpush2.msra.mxu0 0.0
    %1041 = vmatprep.subr.mxu0 0.0
    %1042 = vmatpush2.msra.mxu0 0.0
    %1043 = vmatprep.subr.mxu0 0.0
    %1044 = vmatpush2.msra.mxu0 0.0
    %1045 = vmatprep.subr.mxu0 0.0
    %1046 = vmatpush2.msra.mxu0 0.0
    %1047 = vmatprep.subr.mxu0 0.0
    %1048 = vmatpush2.msra.mxu0 0.0
    %1049 = vmatprep.subr.mxu0 0.0
    %1050 = vmatpush2.msra.mxu0 0.0
    %1051 = vmatprep.subr.mxu0 0.0
    %1052 = vmatpush2.msra.mxu0 0.0
    %1053 = vmatprep.subr.mxu0 0.0
    %1054 = vmatpush2.msra.mxu0 0.0
    %1055 = vmatprep.subr.mxu0 0.0
    %1056 = vmatpush2.msra.mxu0 0.0
    %1057 = vmatprep.mubr.f32.mxu0 0.0
    %1058 = vmatmul.mubr.f32.gmra.mxu0 %v991
    %v1059 = vpop.f32.mrf.mxu0
    %v1060 = vadd.f32 %v741, %v1059
    %v1061 = vpop.f32.mrf.mxu0
    %1062 = vdwg.mxu0
    %1063 = vmatprep.subr.mxu0 0.0
    %1064 = vmatpush1.msra.mxu0 0.0
    %1065 = vmatprep.subr.mxu0 0.0
    %1066 = vmatpush1.msra.mxu0 0.0
    %1067 = vmatprep.subr.mxu0 0.0
    %1068 = vmatpush1.msra.mxu0 0.0
    %1069 = vmatprep.subr.mxu0 0.0
    %1070 = vmatpush1.msra.mxu0 0.0
    %1071 = vmatprep.subr.mxu0 0.0
    %1072 = vmatpush1.msra.mxu0 0.0
    %1073 = vmatprep.subr.mxu0 0.0
    %1074 = vmatpush1.msra.mxu0 0.0
    %1075 = vmatprep.subr.mxu0 0.0
    %1076 = vmatpush1.msra.mxu0 0.0
    %1077 = vmatprep.subr.mxu0 0.0
    %1078 = vmatpush1.msra.mxu0 0.0
    %1079 = vmatprep.subr.mxu0 0.0
    %1080 = vmatpush1.msra.mxu0 0.0
    %1081 = vmatprep.subr.mxu0 0.0
    %1082 = vmatpush1.msra.mxu0 0.0
    %1083 = vmatprep.subr.mxu0 0.0
    %1084 = vmatpush1.msra.mxu0 0.0
    %1085 = vmatprep.subr.mxu0 0.0
    %1086 = vmatpush1.msra.mxu0 0.0
    %1087 = vmatprep.subr.mxu0 0.0
    %1088 = vmatpush1.msra.mxu0 %v736
    %1089 = vmatprep.subr.mxu0 0.0
    %1090 = vmatpush1.msra.mxu0 %v735
    %1091 = vmatprep.subr.mxu0 0.0
    %1092 = vmatpush1.msra.mxu0 %v734
    %1093 = vmatprep.subr.mxu0 0.0
    %1094 = vmatpush1.msra.mxu0 %v733
    %1095 = vmatprep.subr.mxu0 0.0
    %1096 = vmatpush2.msra.mxu0 0.0
    %1097 = vmatprep.subr.mxu0 0.0
    %1098 = vmatpush2.msra.mxu0 0.0
    %1099 = vmatprep.subr.mxu0 0.0
    %1100 = vmatpush2.msra.mxu0 0.0
    %1101 = vmatprep.subr.mxu0 0.0
    %1102 = vmatpush2.msra.mxu0 0.0
    %1103 = vmatprep.subr.mxu0 0.0
    %1104 = vmatpush2.msra.mxu0 0.0
    %1105 = vmatprep.subr.mxu0 0.0
    %1106 = vmatpush2.msra.mxu0 0.0
    %1107 = vmatprep.subr.mxu0 0.0
    %1108 = vmatpush2.msra.mxu0 0.0
    %1109 = vmatprep.subr.mxu0 0.0
    %1110 = vmatpush2.msra.mxu0 0.0
    %1111 = vmatprep.subr.mxu0 0.0
    %1112 = vmatpush2.msra.mxu0 0.0
    %1113 = vmatprep.subr.mxu0 0.0
    %1114 = vmatpush2.msra.mxu0 0.0
    %1115 = vmatprep.subr.mxu0 0.0
    %1116 = vmatpush2.msra.mxu0 0.0
    %1117 = vmatprep.subr.mxu0 0.0
    %1118 = vmatpush2.msra.mxu0 0.0
    %1119 = vmatprep.subr.mxu0 0.0
    %1120 = vmatpush2.msra.mxu0 0.0
    %1121 = vmatprep.subr.mxu0 0.0
    %1122 = vmatpush2.msra.mxu0 0.0
    %1123 = vmatprep.subr.mxu0 0.0
    %1124 = vmatpush2.msra.mxu0 0.0
    %1125 = vmatprep.subr.mxu0 0.0
    %1126 = vmatpush2.msra.mxu0 0.0
    %1127 = vmatprep.mubr.f32.mxu0 0.0
    %1128 = vmatmul.mubr.f32.gmra.mxu0 %v991
    %v1129 = vpop.f32.mrf.mxu0
    %v1130 = vadd.f32 %v742, %v1129
    %v1131 = vpop.f32.mrf.mxu0
    %1132 = vdwg.mxu0
    %1133 = vmatprep.subr.mxu0 0.0
    %1134 = vmatpush1.msra.mxu0 0.0
    %1135 = vmatprep.subr.mxu0 0.0
    %1136 = vmatpush1.msra.mxu0 0.0
    %1137 = vmatprep.subr.mxu0 0.0
    %1138 = vmatpush1.msra.mxu0 0.0
    %1139 = vmatprep.subr.mxu0 0.0
    %1140 = vmatpush1.msra.mxu0 0.0
    %1141 = vmatprep.subr.mxu0 0.0
    %1142 = vmatpush1.msra.mxu0 0.0
    %1143 = vmatprep.subr.mxu0 0.0
    %1144 = vmatpush1.msra.mxu0 0.0
    %1145 = vmatprep.subr.mxu0 0.0
    %1146 = vmatpush1.msra.mxu0 0.0
    %1147 = vmatprep.subr.mxu0 0.0
    %1148 = vmatpush1.msra.mxu0 0.0
    %1149 = vmatprep.subr.mxu0 0.0
    %1150 = vmatpush1.msra.mxu0 0.0
    %1151 = vmatprep.subr.mxu0 0.0
    %1152 = vmatpush1.msra.mxu0 0.0
    %1153 = vmatprep.subr.mxu0 0.0
    %1154 = vmatpush1.msra.mxu0 0.0
    %1155 = vmatprep.subr.mxu0 0.0
    %1156 = vmatpush1.msra.mxu0 0.0
    %1157 = vmatprep.subr.mxu0 0.0
    %1158 = vmatpush1.msra.mxu0 %v740
    %1159 = vmatprep.subr.mxu0 0.0
    %1160 = vmatpush1.msra.mxu0 %v739
    %1161 = vmatprep.subr.mxu0 0.0
    %1162 = vmatpush1.msra.mxu0 %v738
    %1163 = vmatprep.subr.mxu0 0.0
    %1164 = vmatpush1.msra.mxu0 %v737
    %1165 = vmatprep.subr.mxu0 0.0
    %1166 = vmatpush2.msra.mxu0 0.0
    %1167 = vmatprep.subr.mxu0 0.0
    %1168 = vmatpush2.msra.mxu0 0.0
    %1169 = vmatprep.subr.mxu0 0.0
    %1170 = vmatpush2.msra.mxu0 0.0
    %1171 = vmatprep.subr.mxu0 0.0
    %1172 = vmatpush2.msra.mxu0 0.0
    %1173 = vmatprep.subr.mxu0 0.0
    %1174 = vmatpush2.msra.mxu0 0.0
    %1175 = vmatprep.subr.mxu0 0.0
    %1176 = vmatpush2.msra.mxu0 0.0
    %1177 = vmatprep.subr.mxu0 0.0
    %1178 = vmatpush2.msra.mxu0 0.0
    %1179 = vmatprep.subr.mxu0 0.0
    %1180 = vmatpush2.msra.mxu0 0.0
    %1181 = vmatprep.subr.mxu0 0.0
    %1182 = vmatpush2.msra.mxu0 0.0
    %1183 = vmatprep.subr.mxu0 0.0
    %1184 = vmatpush2.msra.mxu0 0.0
    %1185 = vmatprep.subr.mxu0 0.0
    %1186 = vmatpush2.msra.mxu0 0.0
    %1187 = vmatprep.subr.mxu0 0.0
    %1188 = vmatpush2.msra.mxu0 0.0
    %1189 = vmatprep.subr.mxu0 0.0
    %1190 = vmatpush2.msra.mxu0 0.0
    %1191 = vmatprep.subr.mxu0 0.0
    %1192 = vmatpush2.msra.mxu0 0.0
    %1193 = vmatprep.subr.mxu0 0.0
    %1194 = vmatpush2.msra.mxu0 0.0
    %1195 = vmatprep.subr.mxu0 0.0
    %1196 = vmatpush2.msra.mxu0 0.0
    %1197 = vmatprep.mubr.f32.mxu0 0.0
    %1198 = vmatmul.mubr.f32.gmra.mxu0 %v991
    %v1199 = vpop.f32.mrf.mxu0
    %v1200 = vadd.f32 %v743, %v1199
    %v1201 = vpop.f32.mrf.mxu0
    %1202 = vdwg.mxu0
    %v1203 = vadd.f32 %v985, %v1060
    %v1204 = vxor.u32 %v1203, 2147483648
    %v1205 = vmul.f32 %v1204, 1.442695
    %v1206 = vpow.pop %v1205
    %v1207 = vadd.f32 %v1206, 1.0
    %v1208 = vrcp.pop %v1207
    %v1209 = vmul.f32 1.0, %v1208
    %v1210 = vadd.f32 %v987, %v1130
    %v1211 = vxor.u32 %v1210, 2147483648
    %v1212 = vmul.f32 %v1211, 1.442695
    %v1213 = vpow.pop %v1212
    %v1214 = vadd.f32 %v1213, 1.0
    %v1215 = vrcp.pop %v1214
    %v1216 = vmul.f32 1.0, %v1215
    %v1217 = vmul.f32 %v1209, %v1200
    %v1218 = vadd.f32 %v989, %v1217
    %v1219 = vtanh.pop %v1218
    %v1220 = vsub.f32 1.0, %v1216
    %v1221 = vmul.f32 %v1220, %v1219
    %v1222 = vmul.f32 %v1216, %v981
    %v1223 = vadd.f32 %v1221, %v1222
    %s1224 = scalar_lea.vmem [#allocation14], 1
    %1225 = vst.msk [vmem:[%s1224] sm:$0x1] %vm982, %v1223
    %s1226 = scalar_lea.vmem [#allocation3], 2
    %v1227 = vld [vmem:[%s1226] sm:$0x1]
    %s1228 = scalar_lea.vmem [#allocation4], 2
    %v1229 = vld [vmem:[%s1228] sm:$0x1]
    %s1230 = scalar_lea.vmem [#allocation5], 2
    %v1231 = vld [vmem:[%s1230] sm:$0x1]
    %v1233 = vsel %vm500, %v1223, 0
    %1235 = vmatprep.subr.mxu0 0.0
    %1236 = vmatpush1.msra.mxu0 0.0
    %1237 = vmatprep.subr.mxu0 0.0
    %1238 = vmatpush1.msra.mxu0 0.0
    %1239 = vmatprep.subr.mxu0 0.0
    %1240 = vmatpush1.msra.mxu0 0.0
    %1241 = vmatprep.subr.mxu0 0.0
    %1242 = vmatpush1.msra.mxu0 0.0
    %1243 = vmatprep.subr.mxu0 0.0
    %1244 = vmatpush1.msra.mxu0 0.0
    %1245 = vmatprep.subr.mxu0 0.0
    %1246 = vmatpush1.msra.mxu0 0.0
    %1247 = vmatprep.subr.mxu0 0.0
    %1248 = vmatpush1.msra.mxu0 0.0
    %1249 = vmatprep.subr.mxu0 0.0
    %1250 = vmatpush1.msra.mxu0 0.0
    %1251 = vmatprep.subr.mxu0 0.0
    %1252 = vmatpush1.msra.mxu0 0.0
    %1253 = vmatprep.subr.mxu0 0.0
    %1254 = vmatpush1.msra.mxu0 0.0
    %1255 = vmatprep.subr.mxu0 0.0
    %1256 = vmatpush1.msra.mxu0 0.0
    %1257 = vmatprep.subr.mxu0 0.0
    %1258 = vmatpush1.msra.mxu0 0.0
    %1259 = vmatprep.subr.mxu0 0.0
    %1260 = vmatpush1.msra.mxu0 %v732
    %1261 = vmatprep.subr.mxu0 0.0
    %1262 = vmatpush1.msra.mxu0 %v731
    %1263 = vmatprep.subr.mxu0 0.0
    %1264 = vmatpush1.msra.mxu0 %v730
    %1265 = vmatprep.subr.mxu0 0.0
    %1266 = vmatpush1.msra.mxu0 %v729
    %1267 = vmatprep.subr.mxu0 0.0
    %1268 = vmatpush2.msra.mxu0 0.0
    %1269 = vmatprep.subr.mxu0 0.0
    %1270 = vmatpush2.msra.mxu0 0.0
    %1271 = vmatprep.subr.mxu0 0.0
    %1272 = vmatpush2.msra.mxu0 0.0
    %1273 = vmatprep.subr.mxu0 0.0
    %1274 = vmatpush2.msra.mxu0 0.0
    %1275 = vmatprep.subr.mxu0 0.0
    %1276 = vmatpush2.msra.mxu0 0.0
    %1277 = vmatprep.subr.mxu0 0.0
    %1278 = vmatpush2.msra.mxu0 0.0
    %1279 = vmatprep.subr.mxu0 0.0
    %1280 = vmatpush2.msra.mxu0 0.0
    %1281 = vmatprep.subr.mxu0 0.0
    %1282 = vmatpush2.msra.mxu0 0.0
    %1283 = vmatprep.subr.mxu0 0.0
    %1284 = vmatpush2.msra.mxu0 0.0
    %1285 = vmatprep.subr.mxu0 0.0
    %1286 = vmatpush2.msra.mxu0 0.0
    %1287 = vmatprep.subr.mxu0 0.0
    %1288 = vmatpush2.msra.mxu0 0.0
    %1289 = vmatprep.subr.mxu0 0.0
    %1290 = vmatpush2.msra.mxu0 0.0
    %1291 = vmatprep.subr.mxu0 0.0
    %1292 = vmatpush2.msra.mxu0 0.0
    %1293 = vmatprep.subr.mxu0 0.0
    %1294 = vmatpush2.msra.mxu0 0.0
    %1295 = vmatprep.subr.mxu0 0.0
    %1296 = vmatpush2.msra.mxu0 0.0
    %1297 = vmatprep.subr.mxu0 0.0
    %1298 = vmatpush2.msra.mxu0 0.0
    %1299 = vmatprep.mubr.f32.mxu0 0.0
    %1300 = vmatmul.mubr.f32.gmra.mxu0 %v1233
    %v1301 = vpop.f32.mrf.mxu0
    %v1302 = vadd.f32 %v741, %v1301
    %v1303 = vpop.f32.mrf.mxu0
    %1304 = vdwg.mxu0
    %1305 = vmatprep.subr.mxu0 0.0
    %1306 = vmatpush1.msra.mxu0 0.0
    %1307 = vmatprep.subr.mxu0 0.0
    %1308 = vmatpush1.msra.mxu0 0.0
    %1309 = vmatprep.subr.mxu0 0.0
    %1310 = vmatpush1.msra.mxu0 0.0
    %1311 = vmatprep.subr.mxu0 0.0
    %1312 = vmatpush1.msra.mxu0 0.0
    %1313 = vmatprep.subr.mxu0 0.0
    %1314 = vmatpush1.msra.mxu0 0.0
    %1315 = vmatprep.subr.mxu0 0.0
    %1316 = vmatpush1.msra.mxu0 0.0
    %1317 = vmatprep.subr.mxu0 0.0
    %1318 = vmatpush1.msra.mxu0 0.0
    %1319 = vmatprep.subr.mxu0 0.0
    %1320 = vmatpush1.msra.mxu0 0.0
    %1321 = vmatprep.subr.mxu0 0.0
    %1322 = vmatpush1.msra.mxu0 0.0
    %1323 = vmatprep.subr.mxu0 0.0
    %1324 = vmatpush1.msra.mxu0 0.0
    %1325 = vmatprep.subr.mxu0 0.0
    %1326 = vmatpush1.msra.mxu0 0.0
    %1327 = vmatprep.subr.mxu0 0.0
    %1328 = vmatpush1.msra.mxu0 0.0
    %1329 = vmatprep.subr.mxu0 0.0
    %1330 = vmatpush1.msra.mxu0 %v736
    %1331 = vmatprep.subr.mxu0 0.0
    %1332 = vmatpush1.msra.mxu0 %v735
    %1333 = vmatprep.subr.mxu0 0.0
    %1334 = vmatpush1.msra.mxu0 %v734
    %1335 = vmatprep.subr.mxu0 0.0
    %1336 = vmatpush1.msra.mxu0 %v733
    %1337 = vmatprep.subr.mxu0 0.0
    %1338 = vmatpush2.msra.mxu0 0.0
    %1339 = vmatprep.subr.mxu0 0.0
    %1340 = vmatpush2.msra.mxu0 0.0
    %1341 = vmatprep.subr.mxu0 0.0
    %1342 = vmatpush2.msra.mxu0 0.0
    %1343 = vmatprep.subr.mxu0 0.0
    %1344 = vmatpush2.msra.mxu0 0.0
    %1345 = vmatprep.subr.mxu0 0.0
    %1346 = vmatpush2.msra.mxu0 0.0
    %1347 = vmatprep.subr.mxu0 0.0
    %1348 = vmatpush2.msra.mxu0 0.0
    %1349 = vmatprep.subr.mxu0 0.0
    %1350 = vmatpush2.msra.mxu0 0.0
    %1351 = vmatprep.subr.mxu0 0.0
    %1352 = vmatpush2.msra.mxu0 0.0
    %1353 = vmatprep.subr.mxu0 0.0
    %1354 = vmatpush2.msra.mxu0 0.0
    %1355 = vmatprep.subr.mxu0 0.0
    %1356 = vmatpush2.msra.mxu0 0.0
    %1357 = vmatprep.subr.mxu0 0.0
    %1358 = vmatpush2.msra.mxu0 0.0
    %1359 = vmatprep.subr.mxu0 0.0
    %1360 = vmatpush2.msra.mxu0 0.0
    %1361 = vmatprep.subr.mxu0 0.0
    %1362 = vmatpush2.msra.mxu0 0.0
    %1363 = vmatprep.subr.mxu0 0.0
    %1364 = vmatpush2.msra.mxu0 0.0
    %1365 = vmatprep.subr.mxu0 0.0
    %1366 = vmatpush2.msra.mxu0 0.0
    %1367 = vmatprep.subr.mxu0 0.0
    %1368 = vmatpush2.msra.mxu0 0.0
    %1369 = vmatprep.mubr.f32.mxu0 0.0
    %1370 = vmatmul.mubr.f32.gmra.mxu0 %v1233
    %v1371 = vpop.f32.mrf.mxu0
    %v1372 = vadd.f32 %v742, %v1371
    %v1373 = vpop.f32.mrf.mxu0
    %1374 = vdwg.mxu0
    %1375 = vmatprep.subr.mxu0 0.0
    %1376 = vmatpush1.msra.mxu0 0.0
    %1377 = vmatprep.subr.mxu0 0.0
    %1378 = vmatpush1.msra.mxu0 0.0
    %1379 = vmatprep.subr.mxu0 0.0
    %1380 = vmatpush1.msra.mxu0 0.0
    %1381 = vmatprep.subr.mxu0 0.0
    %1382 = vmatpush1.msra.mxu0 0.0
    %1383 = vmatprep.subr.mxu0 0.0
    %1384 = vmatpush1.msra.mxu0 0.0
    %1385 = vmatprep.subr.mxu0 0.0
    %1386 = vmatpush1.msra.mxu0 0.0
    %1387 = vmatprep.subr.mxu0 0.0
    %1388 = vmatpush1.msra.mxu0 0.0
    %1389 = vmatprep.subr.mxu0 0.0
    %1390 = vmatpush1.msra.mxu0 0.0
    %1391 = vmatprep.subr.mxu0 0.0
    %1392 = vmatpush1.msra.mxu0 0.0
    %1393 = vmatprep.subr.mxu0 0.0
    %1394 = vmatpush1.msra.mxu0 0.0
    %1395 = vmatprep.subr.mxu0 0.0
    %1396 = vmatpush1.msra.mxu0 0.0
    %1397 = vmatprep.subr.mxu0 0.0
    %1398 = vmatpush1.msra.mxu0 0.0
    %1399 = vmatprep.subr.mxu0 0.0
    %1400 = vmatpush1.msra.mxu0 %v740
    %1401 = vmatprep.subr.mxu0 0.0
    %1402 = vmatpush1.msra.mxu0 %v739
    %1403 = vmatprep.subr.mxu0 0.0
    %1404 = vmatpush1.msra.mxu0 %v738
    %1405 = vmatprep.subr.mxu0 0.0
    %1406 = vmatpush1.msra.mxu0 %v737
    %1407 = vmatprep.subr.mxu0 0.0
    %1408 = vmatpush2.msra.mxu0 0.0
    %1409 = vmatprep.subr.mxu0 0.0
    %1410 = vmatpush2.msra.mxu0 0.0
    %1411 = vmatprep.subr.mxu0 0.0
    %1412 = vmatpush2.msra.mxu0 0.0
    %1413 = vmatprep.subr.mxu0 0.0
    %1414 = vmatpush2.msra.mxu0 0.0
    %1415 = vmatprep.subr.mxu0 0.0
    %1416 = vmatpush2.msra.mxu0 0.0
    %1417 = vmatprep.subr.mxu0 0.0
    %1418 = vmatpush2.msra.mxu0 0.0
    %1419 = vmatprep.subr.mxu0 0.0
    %1420 = vmatpush2.msra.mxu0 0.0
    %1421 = vmatprep.subr.mxu0 0.0
    %1422 = vmatpush2.msra.mxu0 0.0
    %1423 = vmatprep.subr.mxu0 0.0
    %1424 = vmatpush2.msra.mxu0 0.0
    %1425 = vmatprep.subr.mxu0 0.0
    %1426 = vmatpush2.msra.mxu0 0.0
    %1427 = vmatprep.subr.mxu0 0.0
    %1428 = vmatpush2.msra.mxu0 0.0
    %1429 = vmatprep.subr.mxu0 0.0
    %1430 = vmatpush2.msra.mxu0 0.0
    %1431 = vmatprep.subr.mxu0 0.0
    %1432 = vmatpush2.msra.mxu0 0.0
    %1433 = vmatprep.subr.mxu0 0.0
    %1434 = vmatpush2.msra.mxu0 0.0
    %1435 = vmatprep.subr.mxu0 0.0
    %1436 = vmatpush2.msra.mxu0 0.0
    %1437 = vmatprep.subr.mxu0 0.0
    %1438 = vmatpush2.msra.mxu0 0.0
    %1439 = vmatprep.mubr.f32.mxu0 0.0
    %1440 = vmatmul.mubr.f32.gmra.mxu0 %v1233
    %v1441 = vpop.f32.mrf.mxu0
    %v1442 = vadd.f32 %v743, %v1441
    %v1443 = vpop.f32.mrf.mxu0
    %1444 = vdwg.mxu0
    %v1445 = vadd.f32 %v1227, %v1302
    %v1446 = vxor.u32 %v1445, 2147483648
    %v1447 = vmul.f32 %v1446, 1.442695
    %v1448 = vpow.pop %v1447
    %v1449 = vadd.f32 %v1448, 1.0
    %v1450 = vrcp.pop %v1449
    %v1451 = vmul.f32 1.0, %v1450
    %v1452 = vadd.f32 %v1229, %v1372
    %v1453 = vxor.u32 %v1452, 2147483648
    %v1454 = vmul.f32 %v1453, 1.442695
    %v1455 = vpow.pop %v1454
    %v1456 = vadd.f32 %v1455, 1.0
    %v1457 = vrcp.pop %v1456
    %v1458 = vmul.f32 1.0, %v1457
    %v1459 = vmul.f32 %v1451, %v1442
    %v1460 = vadd.f32 %v1231, %v1459
    %v1461 = vtanh.pop %v1460
    %v1462 = vsub.f32 1.0, %v1458
    %v1463 = vmul.f32 %v1462, %v1461
    %v1464 = vmul.f32 %v1458, %v1223
    %v1465 = vadd.f32 %v1463, %v1464
    %s1466 = scalar_lea.vmem [#allocation14], 2
    %1467 = vst.msk [vmem:[%s1466] sm:$0x1] %vm982, %v1465
    %s1468 = scalar_lea.vmem [#allocation3], 3
    %v1469 = vld [vmem:[%s1468] sm:$0x1]
    %s1470 = scalar_lea.vmem [#allocation4], 3
    %v1471 = vld [vmem:[%s1470] sm:$0x1]
    %s1472 = scalar_lea.vmem [#allocation5], 3
    %v1473 = vld [vmem:[%s1472] sm:$0x1]
    %v1475 = vsel %vm500, %v1465, 0
    %1477 = vmatprep.subr.mxu0 0.0
    %1478 = vmatpush1.msra.mxu0 0.0
    %1479 = vmatprep.subr.mxu0 0.0
    %1480 = vmatpush1.msra.mxu0 0.0
    %1481 = vmatprep.subr.mxu0 0.0
    %1482 = vmatpush1.msra.mxu0 0.0
    %1483 = vmatprep.subr.mxu0 0.0
    %1484 = vmatpush1.msra.mxu0 0.0
    %1485 = vmatprep.subr.mxu0 0.0
    %1486 = vmatpush1.msra.mxu0 0.0
    %1487 = vmatprep.subr.mxu0 0.0
    %1488 = vmatpush1.msra.mxu0 0.0
    %1489 = vmatprep.subr.mxu0 0.0
    %1490 = vmatpush1.msra.mxu0 0.0
    %1491 = vmatprep.subr.mxu0 0.0
    %1492 = vmatpush1.msra.mxu0 0.0
    %1493 = vmatprep.subr.mxu0 0.0
    %1494 = vmatpush1.msra.mxu0 0.0
    %1495 = vmatprep.subr.mxu0 0.0
    %1496 = vmatpush1.msra.mxu0 0.0
    %1497 = vmatprep.subr.mxu0 0.0
    %1498 = vmatpush1.msra.mxu0 0.0
    %1499 = vmatprep.subr.mxu0 0.0
    %1500 = vmatpush1.msra.mxu0 0.0
    %1501 = vmatprep.subr.mxu0 0.0
    %1502 = vmatpush1.msra.mxu0 %v732
    %1503 = vmatprep.subr.mxu0 0.0
    %1504 = vmatpush1.msra.mxu0 %v731
    %1505 = vmatprep.subr.mxu0 0.0
    %1506 = vmatpush1.msra.mxu0 %v730
    %1507 = vmatprep.subr.mxu0 0.0
    %1508 = vmatpush1.msra.mxu0 %v729
    %1509 = vmatprep.subr.mxu0 0.0
    %1510 = vmatpush2.msra.mxu0 0.0
    %1511 = vmatprep.subr.mxu0 0.0
    %1512 = vmatpush2.msra.mxu0 0.0
    %1513 = vmatprep.subr.mxu0 0.0
    %1514 = vmatpush2.msra.mxu0 0.0
    %1515 = vmatprep.subr.mxu0 0.0
    %1516 = vmatpush2.msra.mxu0 0.0
    %1517 = vmatprep.subr.mxu0 0.0
    %1518 = vmatpush2.msra.mxu0 0.0
    %1519 = vmatprep.subr.mxu0 0.0
    %1520 = vmatpush2.msra.mxu0 0.0
    %1521 = vmatprep.subr.mxu0 0.0
    %1522 = vmatpush2.msra.mxu0 0.0
    %1523 = vmatprep.subr.mxu0 0.0
    %1524 = vmatpush2.msra.mxu0 0.0
    %1525 = vmatprep.subr.mxu0 0.0
    %1526 = vmatpush2.msra.mxu0 0.0
    %1527 = vmatprep.subr.mxu0 0.0
    %1528 = vmatpush2.msra.mxu0 0.0
    %1529 = vmatprep.subr.mxu0 0.0
    %1530 = vmatpush2.msra.mxu0 0.0
    %1531 = vmatprep.subr.mxu0 0.0
    %1532 = vmatpush2.msra.mxu0 0.0
    %1533 = vmatprep.subr.mxu0 0.0
    %1534 = vmatpush2.msra.mxu0 0.0
    %1535 = vmatprep.subr.mxu0 0.0
    %1536 = vmatpush2.msra.mxu0 0.0
    %1537 = vmatprep.subr.mxu0 0.0
    %1538 = vmatpush2.msra.mxu0 0.0
    %1539 = vmatprep.subr.mxu0 0.0
    %1540 = vmatpush2.msra.mxu0 0.0
    %1541 = vmatprep.mubr.f32.mxu0 0.0
    %1542 = vmatmul.mubr.f32.gmra.mxu0 %v1475
    %v1543 = vpop.f32.mrf.mxu0
    %v1544 = vadd.f32 %v741, %v1543
    %v1545 = vpop.f32.mrf.mxu0
    %1546 = vdwg.mxu0
    %1547 = vmatprep.subr.mxu0 0.0
    %1548 = vmatpush1.msra.mxu0 0.0
    %1549 = vmatprep.subr.mxu0 0.0
    %1550 = vmatpush1.msra.mxu0 0.0
    %1551 = vmatprep.subr.mxu0 0.0
    %1552 = vmatpush1.msra.mxu0 0.0
    %1553 = vmatprep.subr.mxu0 0.0
    %1554 = vmatpush1.msra.mxu0 0.0
    %1555 = vmatprep.subr.mxu0 0.0
    %1556 = vmatpush1.msra.mxu0 0.0
    %1557 = vmatprep.subr.mxu0 0.0
    %1558 = vmatpush1.msra.mxu0 0.0
    %1559 = vmatprep.subr.mxu0 0.0
    %1560 = vmatpush1.msra.mxu0 0.0
    %1561 = vmatprep.subr.mxu0 0.0
    %1562 = vmatpush1.msra.mxu0 0.0
    %1563 = vmatprep.subr.mxu0 0.0
    %1564 = vmatpush1.msra.mxu0 0.0
    %1565 = vmatprep.subr.mxu0 0.0
    %1566 = vmatpush1.msra.mxu0 0.0
    %1567 = vmatprep.subr.mxu0 0.0
    %1568 = vmatpush1.msra.mxu0 0.0
    %1569 = vmatprep.subr.mxu0 0.0
    %1570 = vmatpush1.msra.mxu0 0.0
    %1571 = vmatprep.subr.mxu0 0.0
    %1572 = vmatpush1.msra.mxu0 %v736
    %1573 = vmatprep.subr.mxu0 0.0
    %1574 = vmatpush1.msra.mxu0 %v735
    %1575 = vmatprep.subr.mxu0 0.0
    %1576 = vmatpush1.msra.mxu0 %v734
    %1577 = vmatprep.subr.mxu0 0.0
    %1578 = vmatpush1.msra.mxu0 %v733
    %1579 = vmatprep.subr.mxu0 0.0
    %1580 = vmatpush2.msra.mxu0 0.0
    %1581 = vmatprep.subr.mxu0 0.0
    %1582 = vmatpush2.msra.mxu0 0.0
    %1583 = vmatprep.subr.mxu0 0.0
    %1584 = vmatpush2.msra.mxu0 0.0
    %1585 = vmatprep.subr.mxu0 0.0
    %1586 = vmatpush2.msra.mxu0 0.0
    %1587 = vmatprep.subr.mxu0 0.0
    %1588 = vmatpush2.msra.mxu0 0.0
    %1589 = vmatprep.subr.mxu0 0.0
    %1590 = vmatpush2.msra.mxu0 0.0
    %1591 = vmatprep.subr.mxu0 0.0
    %1592 = vmatpush2.msra.mxu0 0.0
    %1593 = vmatprep.subr.mxu0 0.0
    %1594 = vmatpush2.msra.mxu0 0.0
    %1595 = vmatprep.subr.mxu0 0.0
    %1596 = vmatpush2.msra.mxu0 0.0
    %1597 = vmatprep.subr.mxu0 0.0
    %1598 = vmatpush2.msra.mxu0 0.0
    %1599 = vmatprep.subr.mxu0 0.0
    %1600 = vmatpush2.msra.mxu0 0.0
    %1601 = vmatprep.subr.mxu0 0.0
    %1602 = vmatpush2.msra.mxu0 0.0
    %1603 = vmatprep.subr.mxu0 0.0
    %1604 = vmatpush2.msra.mxu0 0.0
    %1605 = vmatprep.subr.mxu0 0.0
    %1606 = vmatpush2.msra.mxu0 0.0
    %1607 = vmatprep.subr.mxu0 0.0
    %1608 = vmatpush2.msra.mxu0 0.0
    %1609 = vmatprep.subr.mxu0 0.0
    %1610 = vmatpush2.msra.mxu0 0.0
    %1611 = vmatprep.mubr.f32.mxu0 0.0
    %1612 = vmatmul.mubr.f32.gmra.mxu0 %v1475
    %v1613 = vpop.f32.mrf.mxu0
    %v1614 = vadd.f32 %v742, %v1613
    %v1615 = vpop.f32.mrf.mxu0
    %1616 = vdwg.mxu0
    %1617 = vmatprep.subr.mxu0 0.0
    %1618 = vmatpush1.msra.mxu0 0.0
    %1619 = vmatprep.subr.mxu0 0.0
    %1620 = vmatpush1.msra.mxu0 0.0
    %1621 = vmatprep.subr.mxu0 0.0
    %1622 = vmatpush1.msra.mxu0 0.0
    %1623 = vmatprep.subr.mxu0 0.0
    %1624 = vmatpush1.msra.mxu0 0.0
    %1625 = vmatprep.subr.mxu0 0.0
    %1626 = vmatpush1.msra.mxu0 0.0
    %1627 = vmatprep.subr.mxu0 0.0
    %1628 = vmatpush1.msra.mxu0 0.0
    %1629 = vmatprep.subr.mxu0 0.0
    %1630 = vmatpush1.msra.mxu0 0.0
    %1631 = vmatprep.subr.mxu0 0.0
    %1632 = vmatpush1.msra.mxu0 0.0
    %1633 = vmatprep.subr.mxu0 0.0
    %1634 = vmatpush1.msra.mxu0 0.0
    %1635 = vmatprep.subr.mxu0 0.0
    %1636 = vmatpush1.msra.mxu0 0.0
    %1637 = vmatprep.subr.mxu0 0.0
    %1638 = vmatpush1.msra.mxu0 0.0
    %1639 = vmatprep.subr.mxu0 0.0
    %1640 = vmatpush1.msra.mxu0 0.0
    %1641 = vmatprep.subr.mxu0 0.0
    %1642 = vmatpush1.msra.mxu0 %v740
    %1643 = vmatprep.subr.mxu0 0.0
    %1644 = vmatpush1.msra.mxu0 %v739
    %1645 = vmatprep.subr.mxu0 0.0
    %1646 = vmatpush1.msra.mxu0 %v738
    %1647 = vmatprep.subr.mxu0 0.0
    %1648 = vmatpush1.msra.mxu0 %v737
    %1649 = vmatprep.subr.mxu0 0.0
    %1650 = vmatpush2.msra.mxu0 0.0
    %1651 = vmatprep.subr.mxu0 0.0
    %1652 = vmatpush2.msra.mxu0 0.0
    %1653 = vmatprep.subr.mxu0 0.0
    %1654 = vmatpush2.msra.mxu0 0.0
    %1655 = vmatprep.subr.mxu0 0.0
    %1656 = vmatpush2.msra.mxu0 0.0
    %1657 = vmatprep.subr.mxu0 0.0
    %1658 = vmatpush2.msra.mxu0 0.0
    %1659 = vmatprep.subr.mxu0 0.0
    %1660 = vmatpush2.msra.mxu0 0.0
    %1661 = vmatprep.subr.mxu0 0.0
    %1662 = vmatpush2.msra.mxu0 0.0
    %1663 = vmatprep.subr.mxu0 0.0
    %1664 = vmatpush2.msra.mxu0 0.0
    %1665 = vmatprep.subr.mxu0 0.0
    %1666 = vmatpush2.msra.mxu0 0.0
    %1667 = vmatprep.subr.mxu0 0.0
    %1668 = vmatpush2.msra.mxu0 0.0
    %1669 = vmatprep.subr.mxu0 0.0
    %1670 = vmatpush2.msra.mxu0 0.0
    %1671 = vmatprep.subr.mxu0 0.0
    %1672 = vmatpush2.msra.mxu0 0.0
    %1673 = vmatprep.subr.mxu0 0.0
    %1674 = vmatpush2.msra.mxu0 0.0
    %1675 = vmatprep.subr.mxu0 0.0
    %1676 = vmatpush2.msra.mxu0 0.0
    %1677 = vmatprep.subr.mxu0 0.0
    %1678 = vmatpush2.msra.mxu0 0.0
    %1679 = vmatprep.subr.mxu0 0.0
    %1680 = vmatpush2.msra.mxu0 0.0
    %1681 = vmatprep.mubr.f32.mxu0 0.0
    %1682 = vmatmul.mubr.f32.gmra.mxu0 %v1475
    %v1683 = vpop.f32.mrf.mxu0
    %v1684 = vadd.f32 %v743, %v1683
    %v1685 = vpop.f32.mrf.mxu0
    %1686 = vdwg.mxu0
    %v1687 = vadd.f32 %v1469, %v1544
    %v1688 = vxor.u32 %v1687, 2147483648
    %v1689 = vmul.f32 %v1688, 1.442695
    %v1690 = vpow.pop %v1689
    %v1691 = vadd.f32 %v1690, 1.0
    %v1692 = vrcp.pop %v1691
    %v1693 = vmul.f32 1.0, %v1692
    %v1694 = vadd.f32 %v1471, %v1614
    %v1695 = vxor.u32 %v1694, 2147483648
    %v1696 = vmul.f32 %v1695, 1.442695
    %v1697 = vpow.pop %v1696
    %v1698 = vadd.f32 %v1697, 1.0
    %v1699 = vrcp.pop %v1698
    %v1700 = vmul.f32 1.0, %v1699
    %v1701 = vmul.f32 %v1693, %v1684
    %v1702 = vadd.f32 %v1473, %v1701
    %v1703 = vtanh.pop %v1702
    %v1704 = vsub.f32 1.0, %v1700
    %v1705 = vmul.f32 %v1704, %v1703
    %v1706 = vmul.f32 %v1700, %v1465
    %v1707 = vadd.f32 %v1705, %v1706
    %s1708 = scalar_lea.vmem [#allocation14], 3
    %1709 = vst.msk [vmem:[%s1708] sm:$0x1] %vm982, %v1707
    %s1710 = scalar_lea.vmem [#allocation3], 4
    %v1711 = vld [vmem:[%s1710] sm:$0x1]
    %s1712 = scalar_lea.vmem [#allocation4], 4
    %v1713 = vld [vmem:[%s1712] sm:$0x1]
    %s1714 = scalar_lea.vmem [#allocation5], 4
    %v1715 = vld [vmem:[%s1714] sm:$0x1]
    %v1717 = vsel %vm500, %v1707, 0
    %1719 = vmatprep.subr.mxu0 0.0
    %1720 = vmatpush1.msra.mxu0 0.0
    %1721 = vmatprep.subr.mxu0 0.0
    %1722 = vmatpush1.msra.mxu0 0.0
    %1723 = vmatprep.subr.mxu0 0.0
    %1724 = vmatpush1.msra.mxu0 0.0
    %1725 = vmatprep.subr.mxu0 0.0
    %1726 = vmatpush1.msra.mxu0 0.0
    %1727 = vmatprep.subr.mxu0 0.0
    %1728 = vmatpush1.msra.mxu0 0.0
    %1729 = vmatprep.subr.mxu0 0.0
    %1730 = vmatpush1.msra.mxu0 0.0
    %1731 = vmatprep.subr.mxu0 0.0
    %1732 = vmatpush1.msra.mxu0 0.0
    %1733 = vmatprep.subr.mxu0 0.0
    %1734 = vmatpush1.msra.mxu0 0.0
    %1735 = vmatprep.subr.mxu0 0.0
    %1736 = vmatpush1.msra.mxu0 0.0
    %1737 = vmatprep.subr.mxu0 0.0
    %1738 = vmatpush1.msra.mxu0 0.0
    %1739 = vmatprep.subr.mxu0 0.0
    %1740 = vmatpush1.msra.mxu0 0.0
    %1741 = vmatprep.subr.mxu0 0.0
    %1742 = vmatpush1.msra.mxu0 0.0
    %1743 = vmatprep.subr.mxu0 0.0
    %1744 = vmatpush1.msra.mxu0 %v732
    %1745 = vmatprep.subr.mxu0 0.0
    %1746 = vmatpush1.msra.mxu0 %v731
    %1747 = vmatprep.subr.mxu0 0.0
    %1748 = vmatpush1.msra.mxu0 %v730
    %1749 = vmatprep.subr.mxu0 0.0
    %1750 = vmatpush1.msra.mxu0 %v729
    %1751 = vmatprep.subr.mxu0 0.0
    %1752 = vmatpush2.msra.mxu0 0.0
    %1753 = vmatprep.subr.mxu0 0.0
    %1754 = vmatpush2.msra.mxu0 0.0
    %1755 = vmatprep.subr.mxu0 0.0
    %1756 = vmatpush2.msra.mxu0 0.0
    %1757 = vmatprep.subr.mxu0 0.0
    %1758 = vmatpush2.msra.mxu0 0.0
    %1759 = vmatprep.subr.mxu0 0.0
    %1760 = vmatpush2.msra.mxu0 0.0
    %1761 = vmatprep.subr.mxu0 0.0
    %1762 = vmatpush2.msra.mxu0 0.0
    %1763 = vmatprep.subr.mxu0 0.0
    %1764 = vmatpush2.msra.mxu0 0.0
    %1765 = vmatprep.subr.mxu0 0.0
    %1766 = vmatpush2.msra.mxu0 0.0
    %1767 = vmatprep.subr.mxu0 0.0
    %1768 = vmatpush2.msra.mxu0 0.0
    %1769 = vmatprep.subr.mxu0 0.0
    %1770 = vmatpush2.msra.mxu0 0.0
    %1771 = vmatprep.subr.mxu0 0.0
    %1772 = vmatpush2.msra.mxu0 0.0
    %1773 = vmatprep.subr.mxu0 0.0
    %1774 = vmatpush2.msra.mxu0 0.0
    %1775 = vmatprep.subr.mxu0 0.0
    %1776 = vmatpush2.msra.mxu0 0.0
    %1777 = vmatprep.subr.mxu0 0.0
    %1778 = vmatpush2.msra.mxu0 0.0
    %1779 = vmatprep.subr.mxu0 0.0
    %1780 = vmatpush2.msra.mxu0 0.0
    %1781 = vmatprep.subr.mxu0 0.0
    %1782 = vmatpush2.msra.mxu0 0.0
    %1783 = vmatprep.mubr.f32.mxu0 0.0
    %1784 = vmatmul.mubr.f32.gmra.mxu0 %v1717
    %v1785 = vpop.f32.mrf.mxu0
    %v1786 = vadd.f32 %v741, %v1785
    %v1787 = vpop.f32.mrf.mxu0
    %1788 = vdwg.mxu0
    %1789 = vmatprep.subr.mxu0 0.0
    %1790 = vmatpush1.msra.mxu0 0.0
    %1791 = vmatprep.subr.mxu0 0.0
    %1792 = vmatpush1.msra.mxu0 0.0
    %1793 = vmatprep.subr.mxu0 0.0
    %1794 = vmatpush1.msra.mxu0 0.0
    %1795 = vmatprep.subr.mxu0 0.0
    %1796 = vmatpush1.msra.mxu0 0.0
    %1797 = vmatprep.subr.mxu0 0.0
    %1798 = vmatpush1.msra.mxu0 0.0
    %1799 = vmatprep.subr.mxu0 0.0
    %1800 = vmatpush1.msra.mxu0 0.0
    %1801 = vmatprep.subr.mxu0 0.0
    %1802 = vmatpush1.msra.mxu0 0.0
    %1803 = vmatprep.subr.mxu0 0.0
    %1804 = vmatpush1.msra.mxu0 0.0
    %1805 = vmatprep.subr.mxu0 0.0
    %1806 = vmatpush1.msra.mxu0 0.0
    %1807 = vmatprep.subr.mxu0 0.0
    %1808 = vmatpush1.msra.mxu0 0.0
    %1809 = vmatprep.subr.mxu0 0.0
    %1810 = vmatpush1.msra.mxu0 0.0
    %1811 = vmatprep.subr.mxu0 0.0
    %1812 = vmatpush1.msra.mxu0 0.0
    %1813 = vmatprep.subr.mxu0 0.0
    %1814 = vmatpush1.msra.mxu0 %v736
    %1815 = vmatprep.subr.mxu0 0.0
    %1816 = vmatpush1.msra.mxu0 %v735
    %1817 = vmatprep.subr.mxu0 0.0
    %1818 = vmatpush1.msra.mxu0 %v734
    %1819 = vmatprep.subr.mxu0 0.0
    %1820 = vmatpush1.msra.mxu0 %v733
    %1821 = vmatprep.subr.mxu0 0.0
    %1822 = vmatpush2.msra.mxu0 0.0
    %1823 = vmatprep.subr.mxu0 0.0
    %1824 = vmatpush2.msra.mxu0 0.0
    %1825 = vmatprep.subr.mxu0 0.0
    %1826 = vmatpush2.msra.mxu0 0.0
    %1827 = vmatprep.subr.mxu0 0.0
    %1828 = vmatpush2.msra.mxu0 0.0
    %1829 = vmatprep.subr.mxu0 0.0
    %1830 = vmatpush2.msra.mxu0 0.0
    %1831 = vmatprep.subr.mxu0 0.0
    %1832 = vmatpush2.msra.mxu0 0.0
    %1833 = vmatprep.subr.mxu0 0.0
    %1834 = vmatpush2.msra.mxu0 0.0
    %1835 = vmatprep.subr.mxu0 0.0
    %1836 = vmatpush2.msra.mxu0 0.0
    %1837 = vmatprep.subr.mxu0 0.0
    %1838 = vmatpush2.msra.mxu0 0.0
    %1839 = vmatprep.subr.mxu0 0.0
    %1840 = vmatpush2.msra.mxu0 0.0
    %1841 = vmatprep.subr.mxu0 0.0
    %1842 = vmatpush2.msra.mxu0 0.0
    %1843 = vmatprep.subr.mxu0 0.0
    %1844 = vmatpush2.msra.mxu0 0.0
    %1845 = vmatprep.subr.mxu0 0.0
    %1846 = vmatpush2.msra.mxu0 0.0
    %1847 = vmatprep.subr.mxu0 0.0
    %1848 = vmatpush2.msra.mxu0 0.0
    %1849 = vmatprep.subr.mxu0 0.0
    %1850 = vmatpush2.msra.mxu0 0.0
    %1851 = vmatprep.subr.mxu0 0.0
    %1852 = vmatpush2.msra.mxu0 0.0
    %1853 = vmatprep.mubr.f32.mxu0 0.0
    %1854 = vmatmul.mubr.f32.gmra.mxu0 %v1717
    %v1855 = vpop.f32.mrf.mxu0
    %v1856 = vadd.f32 %v742, %v1855
    %v1857 = vpop.f32.mrf.mxu0
    %1858 = vdwg.mxu0
    %1859 = vmatprep.subr.mxu0 0.0
    %1860 = vmatpush1.msra.mxu0 0.0
    %1861 = vmatprep.subr.mxu0 0.0
    %1862 = vmatpush1.msra.mxu0 0.0
    %1863 = vmatprep.subr.mxu0 0.0
    %1864 = vmatpush1.msra.mxu0 0.0
    %1865 = vmatprep.subr.mxu0 0.0
    %1866 = vmatpush1.msra.mxu0 0.0
    %1867 = vmatprep.subr.mxu0 0.0
    %1868 = vmatpush1.msra.mxu0 0.0
    %1869 = vmatprep.subr.mxu0 0.0
    %1870 = vmatpush1.msra.mxu0 0.0
    %1871 = vmatprep.subr.mxu0 0.0
    %1872 = vmatpush1.msra.mxu0 0.0
    %1873 = vmatprep.subr.mxu0 0.0
    %1874 = vmatpush1.msra.mxu0 0.0
    %1875 = vmatprep.subr.mxu0 0.0
    %1876 = vmatpush1.msra.mxu0 0.0
    %1877 = vmatprep.subr.mxu0 0.0
    %1878 = vmatpush1.msra.mxu0 0.0
    %1879 = vmatprep.subr.mxu0 0.0
    %1880 = vmatpush1.msra.mxu0 0.0
    %1881 = vmatprep.subr.mxu0 0.0
    %1882 = vmatpush1.msra.mxu0 0.0
    %1883 = vmatprep.subr.mxu0 0.0
    %1884 = vmatpush1.msra.mxu0 %v740
    %1885 = vmatprep.subr.mxu0 0.0
    %1886 = vmatpush1.msra.mxu0 %v739
    %1887 = vmatprep.subr.mxu0 0.0
    %1888 = vmatpush1.msra.mxu0 %v738
    %1889 = vmatprep.subr.mxu0 0.0
    %1890 = vmatpush1.msra.mxu0 %v737
    %1891 = vmatprep.subr.mxu0 0.0
    %1892 = vmatpush2.msra.mxu0 0.0
    %1893 = vmatprep.subr.mxu0 0.0
    %1894 = vmatpush2.msra.mxu0 0.0
    %1895 = vmatprep.subr.mxu0 0.0
    %1896 = vmatpush2.msra.mxu0 0.0
    %1897 = vmatprep.subr.mxu0 0.0
    %1898 = vmatpush2.msra.mxu0 0.0
    %1899 = vmatprep.subr.mxu0 0.0
    %1900 = vmatpush2.msra.mxu0 0.0
    %1901 = vmatprep.subr.mxu0 0.0
    %1902 = vmatpush2.msra.mxu0 0.0
    %1903 = vmatprep.subr.mxu0 0.0
    %1904 = vmatpush2.msra.mxu0 0.0
    %1905 = vmatprep.subr.mxu0 0.0
    %1906 = vmatpush2.msra.mxu0 0.0
    %1907 = vmatprep.subr.mxu0 0.0
    %1908 = vmatpush2.msra.mxu0 0.0
    %1909 = vmatprep.subr.mxu0 0.0
    %1910 = vmatpush2.msra.mxu0 0.0
    %1911 = vmatprep.subr.mxu0 0.0
    %1912 = vmatpush2.msra.mxu0 0.0
    %1913 = vmatprep.subr.mxu0 0.0
    %1914 = vmatpush2.msra.mxu0 0.0
    %1915 = vmatprep.subr.mxu0 0.0
    %1916 = vmatpush2.msra.mxu0 0.0
    %1917 = vmatprep.subr.mxu0 0.0
    %1918 = vmatpush2.msra.mxu0 0.0
    %1919 = vmatprep.subr.mxu0 0.0
    %1920 = vmatpush2.msra.mxu0 0.0
    %1921 = vmatprep.subr.mxu0 0.0
    %1922 = vmatpush2.msra.mxu0 0.0
    %1923 = vmatprep.mubr.f32.mxu0 0.0
    %1924 = vmatmul.mubr.f32.gmra.mxu0 %v1717
    %v1925 = vpop.f32.mrf.mxu0
    %v1926 = vadd.f32 %v743, %v1925
    %v1927 = vpop.f32.mrf.mxu0
    %1928 = vdwg.mxu0
    %v1929 = vadd.f32 %v1711, %v1786
    %v1930 = vxor.u32 %v1929, 2147483648
    %v1931 = vmul.f32 %v1930, 1.442695
    %v1932 = vpow.pop %v1931
    %v1933 = vadd.f32 %v1932, 1.0
    %v1934 = vrcp.pop %v1933
    %v1935 = vmul.f32 1.0, %v1934
    %v1936 = vadd.f32 %v1713, %v1856
    %v1937 = vxor.u32 %v1936, 2147483648
    %v1938 = vmul.f32 %v1937, 1.442695
    %v1939 = vpow.pop %v1938
    %v1940 = vadd.f32 %v1939, 1.0
    %v1941 = vrcp.pop %v1940
    %v1942 = vmul.f32 1.0, %v1941
    %v1943 = vmul.f32 %v1935, %v1926
    %v1944 = vadd.f32 %v1715, %v1943
    %v1945 = vtanh.pop %v1944
    %v1946 = vsub.f32 1.0, %v1942
    %v1947 = vmul.f32 %v1946, %v1945
    %v1948 = vmul.f32 %v1942, %v1707
    %v1949 = vadd.f32 %v1947, %v1948
    %s1950 = scalar_lea.vmem [#allocation14], 4
    %1951 = vst.msk [vmem:[%s1950] sm:$0x1] %vm982, %v1949
    %s1952 = scalar_lea.vmem [#allocation3], 5
    %v1953 = vld [vmem:[%s1952] sm:$0x1]
    %s1954 = scalar_lea.vmem [#allocation4], 5
    %v1955 = vld [vmem:[%s1954] sm:$0x1]
    %s1956 = scalar_lea.vmem [#allocation5], 5
    %v1957 = vld [vmem:[%s1956] sm:$0x1]
    %v1959 = vsel %vm500, %v1949, 0
    %1961 = vmatprep.subr.mxu0 0.0
    %1962 = vmatpush1.msra.mxu0 0.0
    %1963 = vmatprep.subr.mxu0 0.0
    %1964 = vmatpush1.msra.mxu0 0.0
    %1965 = vmatprep.subr.mxu0 0.0
    %1966 = vmatpush1.msra.mxu0 0.0
    %1967 = vmatprep.subr.mxu0 0.0
    %1968 = vmatpush1.msra.mxu0 0.0
    %1969 = vmatprep.subr.mxu0 0.0
    %1970 = vmatpush1.msra.mxu0 0.0
    %1971 = vmatprep.subr.mxu0 0.0
    %1972 = vmatpush1.msra.mxu0 0.0
    %1973 = vmatprep.subr.mxu0 0.0
    %1974 = vmatpush1.msra.mxu0 0.0
    %1975 = vmatprep.subr.mxu0 0.0
    %1976 = vmatpush1.msra.mxu0 0.0
    %1977 = vmatprep.subr.mxu0 0.0
    %1978 = vmatpush1.msra.mxu0 0.0
    %1979 = vmatprep.subr.mxu0 0.0
    %1980 = vmatpush1.msra.mxu0 0.0
    %1981 = vmatprep.subr.mxu0 0.0
    %1982 = vmatpush1.msra.mxu0 0.0
    %1983 = vmatprep.subr.mxu0 0.0
    %1984 = vmatpush1.msra.mxu0 0.0
    %1985 = vmatprep.subr.mxu0 0.0
    %1986 = vmatpush1.msra.mxu0 %v732
    %1987 = vmatprep.subr.mxu0 0.0
    %1988 = vmatpush1.msra.mxu0 %v731
    %1989 = vmatprep.subr.mxu0 0.0
    %1990 = vmatpush1.msra.mxu0 %v730
    %1991 = vmatprep.subr.mxu0 0.0
    %1992 = vmatpush1.msra.mxu0 %v729
    %1993 = vmatprep.subr.mxu0 0.0
    %1994 = vmatpush2.msra.mxu0 0.0
    %1995 = vmatprep.subr.mxu0 0.0
    %1996 = vmatpush2.msra.mxu0 0.0
    %1997 = vmatprep.subr.mxu0 0.0
    %1998 = vmatpush2.msra.mxu0 0.0
    %1999 = vmatprep.subr.mxu0 0.0
    %2000 = vmatpush2.msra.mxu0 0.0
    %2001 = vmatprep.subr.mxu0 0.0
    %2002 = vmatpush2.msra.mxu0 0.0
    %2003 = vmatprep.subr.mxu0 0.0
    %2004 = vmatpush2.msra.mxu0 0.0
    %2005 = vmatprep.subr.mxu0 0.0
    %2006 = vmatpush2.msra.mxu0 0.0
    %2007 = vmatprep.subr.mxu0 0.0
    %2008 = vmatpush2.msra.mxu0 0.0
    %2009 = vmatprep.subr.mxu0 0.0
    %2010 = vmatpush2.msra.mxu0 0.0
    %2011 = vmatprep.subr.mxu0 0.0
    %2012 = vmatpush2.msra.mxu0 0.0
    %2013 = vmatprep.subr.mxu0 0.0
    %2014 = vmatpush2.msra.mxu0 0.0
    %2015 = vmatprep.subr.mxu0 0.0
    %2016 = vmatpush2.msra.mxu0 0.0
    %2017 = vmatprep.subr.mxu0 0.0
    %2018 = vmatpush2.msra.mxu0 0.0
    %2019 = vmatprep.subr.mxu0 0.0
    %2020 = vmatpush2.msra.mxu0 0.0
    %2021 = vmatprep.subr.mxu0 0.0
    %2022 = vmatpush2.msra.mxu0 0.0
    %2023 = vmatprep.subr.mxu0 0.0
    %2024 = vmatpush2.msra.mxu0 0.0
    %2025 = vmatprep.mubr.f32.mxu0 0.0
    %2026 = vmatmul.mubr.f32.gmra.mxu0 %v1959
    %v2027 = vpop.f32.mrf.mxu0
    %v2028 = vadd.f32 %v741, %v2027
    %v2029 = vpop.f32.mrf.mxu0
    %2030 = vdwg.mxu0
    %2031 = vmatprep.subr.mxu0 0.0
    %2032 = vmatpush1.msra.mxu0 0.0
    %2033 = vmatprep.subr.mxu0 0.0
    %2034 = vmatpush1.msra.mxu0 0.0
    %2035 = vmatprep.subr.mxu0 0.0
    %2036 = vmatpush1.msra.mxu0 0.0
    %2037 = vmatprep.subr.mxu0 0.0
    %2038 = vmatpush1.msra.mxu0 0.0
    %2039 = vmatprep.subr.mxu0 0.0
    %2040 = vmatpush1.msra.mxu0 0.0
    %2041 = vmatprep.subr.mxu0 0.0
    %2042 = vmatpush1.msra.mxu0 0.0
    %2043 = vmatprep.subr.mxu0 0.0
    %2044 = vmatpush1.msra.mxu0 0.0
    %2045 = vmatprep.subr.mxu0 0.0
    %2046 = vmatpush1.msra.mxu0 0.0
    %2047 = vmatprep.subr.mxu0 0.0
    %2048 = vmatpush1.msra.mxu0 0.0
    %2049 = vmatprep.subr.mxu0 0.0
    %2050 = vmatpush1.msra.mxu0 0.0
    %2051 = vmatprep.subr.mxu0 0.0
    %2052 = vmatpush1.msra.mxu0 0.0
    %2053 = vmatprep.subr.mxu0 0.0
    %2054 = vmatpush1.msra.mxu0 0.0
    %2055 = vmatprep.subr.mxu0 0.0
    %2056 = vmatpush1.msra.mxu0 %v736
    %2057 = vmatprep.subr.mxu0 0.0
    %2058 = vmatpush1.msra.mxu0 %v735
    %2059 = vmatprep.subr.mxu0 0.0
    %2060 = vmatpush1.msra.mxu0 %v734
    %2061 = vmatprep.subr.mxu0 0.0
    %2062 = vmatpush1.msra.mxu0 %v733
    %2063 = vmatprep.subr.mxu0 0.0
    %2064 = vmatpush2.msra.mxu0 0.0
    %2065 = vmatprep.subr.mxu0 0.0
    %2066 = vmatpush2.msra.mxu0 0.0
    %2067 = vmatprep.subr.mxu0 0.0
    %2068 = vmatpush2.msra.mxu0 0.0
    %2069 = vmatprep.subr.mxu0 0.0
    %2070 = vmatpush2.msra.mxu0 0.0
    %2071 = vmatprep.subr.mxu0 0.0
    %2072 = vmatpush2.msra.mxu0 0.0
    %2073 = vmatprep.subr.mxu0 0.0
    %2074 = vmatpush2.msra.mxu0 0.0
    %2075 = vmatprep.subr.mxu0 0.0
    %2076 = vmatpush2.msra.mxu0 0.0
    %2077 = vmatprep.subr.mxu0 0.0
    %2078 = vmatpush2.msra.mxu0 0.0
    %2079 = vmatprep.subr.mxu0 0.0
    %2080 = vmatpush2.msra.mxu0 0.0
    %2081 = vmatprep.subr.mxu0 0.0
    %2082 = vmatpush2.msra.mxu0 0.0
    %2083 = vmatprep.subr.mxu0 0.0
    %2084 = vmatpush2.msra.mxu0 0.0
    %2085 = vmatprep.subr.mxu0 0.0
    %2086 = vmatpush2.msra.mxu0 0.0
    %2087 = vmatprep.subr.mxu0 0.0
    %2088 = vmatpush2.msra.mxu0 0.0
    %2089 = vmatprep.subr.mxu0 0.0
    %2090 = vmatpush2.msra.mxu0 0.0
    %2091 = vmatprep.subr.mxu0 0.0
    %2092 = vmatpush2.msra.mxu0 0.0
    %2093 = vmatprep.subr.mxu0 0.0
    %2094 = vmatpush2.msra.mxu0 0.0
    %2095 = vmatprep.mubr.f32.mxu0 0.0
    %2096 = vmatmul.mubr.f32.gmra.mxu0 %v1959
    %v2097 = vpop.f32.mrf.mxu0
    %v2098 = vadd.f32 %v742, %v2097
    %v2099 = vpop.f32.mrf.mxu0
    %2100 = vdwg.mxu0
    %2101 = vmatprep.subr.mxu0 0.0
    %2102 = vmatpush1.msra.mxu0 0.0
    %2103 = vmatprep.subr.mxu0 0.0
    %2104 = vmatpush1.msra.mxu0 0.0
    %2105 = vmatprep.subr.mxu0 0.0
    %2106 = vmatpush1.msra.mxu0 0.0
    %2107 = vmatprep.subr.mxu0 0.0
    %2108 = vmatpush1.msra.mxu0 0.0
    %2109 = vmatprep.subr.mxu0 0.0
    %2110 = vmatpush1.msra.mxu0 0.0
    %2111 = vmatprep.subr.mxu0 0.0
    %2112 = vmatpush1.msra.mxu0 0.0
    %2113 = vmatprep.subr.mxu0 0.0
    %2114 = vmatpush1.msra.mxu0 0.0
    %2115 = vmatprep.subr.mxu0 0.0
    %2116 = vmatpush1.msra.mxu0 0.0
    %2117 = vmatprep.subr.mxu0 0.0
    %2118 = vmatpush1.msra.mxu0 0.0
    %2119 = vmatprep.subr.mxu0 0.0
    %2120 = vmatpush1.msra.mxu0 0.0
    %2121 = vmatprep.subr.mxu0 0.0
    %2122 = vmatpush1.msra.mxu0 0.0
    %2123 = vmatprep.subr.mxu0 0.0
    %2124 = vmatpush1.msra.mxu0 0.0
    %2125 = vmatprep.subr.mxu0 0.0
    %2126 = vmatpush1.msra.mxu0 %v740
    %2127 = vmatprep.subr.mxu0 0.0
    %2128 = vmatpush1.msra.mxu0 %v739
    %2129 = vmatprep.subr.mxu0 0.0
    %2130 = vmatpush1.msra.mxu0 %v738
    %2131 = vmatprep.subr.mxu0 0.0
    %2132 = vmatpush1.msra.mxu0 %v737
    %2133 = vmatprep.subr.mxu0 0.0
    %2134 = vmatpush2.msra.mxu0 0.0
    %2135 = vmatprep.subr.mxu0 0.0
    %2136 = vmatpush2.msra.mxu0 0.0
    %2137 = vmatprep.subr.mxu0 0.0
    %2138 = vmatpush2.msra.mxu0 0.0
    %2139 = vmatprep.subr.mxu0 0.0
    %2140 = vmatpush2.msra.mxu0 0.0
    %2141 = vmatprep.subr.mxu0 0.0
    %2142 = vmatpush2.msra.mxu0 0.0
    %2143 = vmatprep.subr.mxu0 0.0
    %2144 = vmatpush2.msra.mxu0 0.0
    %2145 = vmatprep.subr.mxu0 0.0
    %2146 = vmatpush2.msra.mxu0 0.0
    %2147 = vmatprep.subr.mxu0 0.0
    %2148 = vmatpush2.msra.mxu0 0.0
    %2149 = vmatprep.subr.mxu0 0.0
    %2150 = vmatpush2.msra.mxu0 0.0
    %2151 = vmatprep.subr.mxu0 0.0
    %2152 = vmatpush2.msra.mxu0 0.0
    %2153 = vmatprep.subr.mxu0 0.0
    %2154 = vmatpush2.msra.mxu0 0.0
    %2155 = vmatprep.subr.mxu0 0.0
    %2156 = vmatpush2.msra.mxu0 0.0
    %2157 = vmatprep.subr.mxu0 0.0
    %2158 = vmatpush2.msra.mxu0 0.0
    %2159 = vmatprep.subr.mxu0 0.0
    %2160 = vmatpush2.msra.mxu0 0.0
    %2161 = vmatprep.subr.mxu0 0.0
    %2162 = vmatpush2.msra.mxu0 0.0
    %2163 = vmatprep.subr.mxu0 0.0
    %2164 = vmatpush2.msra.mxu0 0.0
    %2165 = vmatprep.mubr.f32.mxu0 0.0
    %2166 = vmatmul.mubr.f32.gmra.mxu0 %v1959
    %v2167 = vpop.f32.mrf.mxu0
    %v2168 = vadd.f32 %v743, %v2167
    %v2169 = vpop.f32.mrf.mxu0
    %2170 = vdwg.mxu0
    %v2171 = vadd.f32 %v1953, %v2028
    %v2172 = vxor.u32 %v2171, 2147483648
    %v2173 = vmul.f32 %v2172, 1.442695
    %v2174 = vpow.pop %v2173
    %v2175 = vadd.f32 %v2174, 1.0
    %v2176 = vrcp.pop %v2175
    %v2177 = vmul.f32 1.0, %v2176
    %v2178 = vadd.f32 %v1955, %v2098
    %v2179 = vxor.u32 %v2178, 2147483648
    %v2180 = vmul.f32 %v2179, 1.442695
    %v2181 = vpow.pop %v2180
    %v2182 = vadd.f32 %v2181, 1.0
    %v2183 = vrcp.pop %v2182
    %v2184 = vmul.f32 1.0, %v2183
    %v2185 = vmul.f32 %v2177, %v2168
    %v2186 = vadd.f32 %v1957, %v2185
    %v2187 = vtanh.pop %v2186
    %v2188 = vsub.f32 1.0, %v2184
    %v2189 = vmul.f32 %v2188, %v2187
    %v2190 = vmul.f32 %v2184, %v1949
    %v2191 = vadd.f32 %v2189, %v2190
    %s2192 = scalar_lea.vmem [#allocation14], 5
    %2193 = vst.msk [vmem:[%s2192] sm:$0x1] %vm982, %v2191
    %s2194 = scalar_lea.vmem [#allocation3], 6
    %v2195 = vld [vmem:[%s2194] sm:$0x1]
    %s2196 = scalar_lea.vmem [#allocation4], 6
    %v2197 = vld [vmem:[%s2196] sm:$0x1]
    %s2198 = scalar_lea.vmem [#allocation5], 6
    %v2199 = vld [vmem:[%s2198] sm:$0x1]
    %v2201 = vsel %vm500, %v2191, 0
    %2203 = vmatprep.subr.mxu0 0.0
    %2204 = vmatpush1.msra.mxu0 0.0
    %2205 = vmatprep.subr.mxu0 0.0
    %2206 = vmatpush1.msra.mxu0 0.0
    %2207 = vmatprep.subr.mxu0 0.0
    %2208 = vmatpush1.msra.mxu0 0.0
    %2209 = vmatprep.subr.mxu0 0.0
    %2210 = vmatpush1.msra.mxu0 0.0
    %2211 = vmatprep.subr.mxu0 0.0
    %2212 = vmatpush1.msra.mxu0 0.0
    %2213 = vmatprep.subr.mxu0 0.0
    %2214 = vmatpush1.msra.mxu0 0.0
    %2215 = vmatprep.subr.mxu0 0.0
    %2216 = vmatpush1.msra.mxu0 0.0
    %2217 = vmatprep.subr.mxu0 0.0
    %2218 = vmatpush1.msra.mxu0 0.0
    %2219 = vmatprep.subr.mxu0 0.0
    %2220 = vmatpush1.msra.mxu0 0.0
    %2221 = vmatprep.subr.mxu0 0.0
    %2222 = vmatpush1.msra.mxu0 0.0
    %2223 = vmatprep.subr.mxu0 0.0
    %2224 = vmatpush1.msra.mxu0 0.0
    %2225 = vmatprep.subr.mxu0 0.0
    %2226 = vmatpush1.msra.mxu0 0.0
    %2227 = vmatprep.subr.mxu0 0.0
    %2228 = vmatpush1.msra.mxu0 %v732
    %2229 = vmatprep.subr.mxu0 0.0
    %2230 = vmatpush1.msra.mxu0 %v731
    %2231 = vmatprep.subr.mxu0 0.0
    %2232 = vmatpush1.msra.mxu0 %v730
    %2233 = vmatprep.subr.mxu0 0.0
    %2234 = vmatpush1.msra.mxu0 %v729
    %2235 = vmatprep.subr.mxu0 0.0
    %2236 = vmatpush2.msra.mxu0 0.0
    %2237 = vmatprep.subr.mxu0 0.0
    %2238 = vmatpush2.msra.mxu0 0.0
    %2239 = vmatprep.subr.mxu0 0.0
    %2240 = vmatpush2.msra.mxu0 0.0
    %2241 = vmatprep.subr.mxu0 0.0
    %2242 = vmatpush2.msra.mxu0 0.0
    %2243 = vmatprep.subr.mxu0 0.0
    %2244 = vmatpush2.msra.mxu0 0.0
    %2245 = vmatprep.subr.mxu0 0.0
    %2246 = vmatpush2.msra.mxu0 0.0
    %2247 = vmatprep.subr.mxu0 0.0
    %2248 = vmatpush2.msra.mxu0 0.0
    %2249 = vmatprep.subr.mxu0 0.0
    %2250 = vmatpush2.msra.mxu0 0.0
    %2251 = vmatprep.subr.mxu0 0.0
    %2252 = vmatpush2.msra.mxu0 0.0
    %2253 = vmatprep.subr.mxu0 0.0
    %2254 = vmatpush2.msra.mxu0 0.0
    %2255 = vmatprep.subr.mxu0 0.0
    %2256 = vmatpush2.msra.mxu0 0.0
    %2257 = vmatprep.subr.mxu0 0.0
    %2258 = vmatpush2.msra.mxu0 0.0
    %2259 = vmatprep.subr.mxu0 0.0
    %2260 = vmatpush2.msra.mxu0 0.0
    %2261 = vmatprep.subr.mxu0 0.0
    %2262 = vmatpush2.msra.mxu0 0.0
    %2263 = vmatprep.subr.mxu0 0.0
    %2264 = vmatpush2.msra.mxu0 0.0
    %2265 = vmatprep.subr.mxu0 0.0
    %2266 = vmatpush2.msra.mxu0 0.0
    %2267 = vmatprep.mubr.f32.mxu0 0.0
    %2268 = vmatmul.mubr.f32.gmra.mxu0 %v2201
    %v2269 = vpop.f32.mrf.mxu0
    %v2270 = vadd.f32 %v741, %v2269
    %v2271 = vpop.f32.mrf.mxu0
    %2272 = vdwg.mxu0
    %2273 = vmatprep.subr.mxu0 0.0
    %2274 = vmatpush1.msra.mxu0 0.0
    %2275 = vmatprep.subr.mxu0 0.0
    %2276 = vmatpush1.msra.mxu0 0.0
    %2277 = vmatprep.subr.mxu0 0.0
    %2278 = vmatpush1.msra.mxu0 0.0
    %2279 = vmatprep.subr.mxu0 0.0
    %2280 = vmatpush1.msra.mxu0 0.0
    %2281 = vmatprep.subr.mxu0 0.0
    %2282 = vmatpush1.msra.mxu0 0.0
    %2283 = vmatprep.subr.mxu0 0.0
    %2284 = vmatpush1.msra.mxu0 0.0
    %2285 = vmatprep.subr.mxu0 0.0
    %2286 = vmatpush1.msra.mxu0 0.0
    %2287 = vmatprep.subr.mxu0 0.0
    %2288 = vmatpush1.msra.mxu0 0.0
    %2289 = vmatprep.subr.mxu0 0.0
    %2290 = vmatpush1.msra.mxu0 0.0
    %2291 = vmatprep.subr.mxu0 0.0
    %2292 = vmatpush1.msra.mxu0 0.0
    %2293 = vmatprep.subr.mxu0 0.0
    %2294 = vmatpush1.msra.mxu0 0.0
    %2295 = vmatprep.subr.mxu0 0.0
    %2296 = vmatpush1.msra.mxu0 0.0
    %2297 = vmatprep.subr.mxu0 0.0
    %2298 = vmatpush1.msra.mxu0 %v736
    %2299 = vmatprep.subr.mxu0 0.0
    %2300 = vmatpush1.msra.mxu0 %v735
    %2301 = vmatprep.subr.mxu0 0.0
    %2302 = vmatpush1.msra.mxu0 %v734
    %2303 = vmatprep.subr.mxu0 0.0
    %2304 = vmatpush1.msra.mxu0 %v733
    %2305 = vmatprep.subr.mxu0 0.0
    %2306 = vmatpush2.msra.mxu0 0.0
    %2307 = vmatprep.subr.mxu0 0.0
    %2308 = vmatpush2.msra.mxu0 0.0
    %2309 = vmatprep.subr.mxu0 0.0
    %2310 = vmatpush2.msra.mxu0 0.0
    %2311 = vmatprep.subr.mxu0 0.0
    %2312 = vmatpush2.msra.mxu0 0.0
    %2313 = vmatprep.subr.mxu0 0.0
    %2314 = vmatpush2.msra.mxu0 0.0
    %2315 = vmatprep.subr.mxu0 0.0
    %2316 = vmatpush2.msra.mxu0 0.0
    %2317 = vmatprep.subr.mxu0 0.0
    %2318 = vmatpush2.msra.mxu0 0.0
    %2319 = vmatprep.subr.mxu0 0.0
    %2320 = vmatpush2.msra.mxu0 0.0
    %2321 = vmatprep.subr.mxu0 0.0
    %2322 = vmatpush2.msra.mxu0 0.0
    %2323 = vmatprep.subr.mxu0 0.0
    %2324 = vmatpush2.msra.mxu0 0.0
    %2325 = vmatprep.subr.mxu0 0.0
    %2326 = vmatpush2.msra.mxu0 0.0
    %2327 = vmatprep.subr.mxu0 0.0
    %2328 = vmatpush2.msra.mxu0 0.0
    %2329 = vmatprep.subr.mxu0 0.0
    %2330 = vmatpush2.msra.mxu0 0.0
    %2331 = vmatprep.subr.mxu0 0.0
    %2332 = vmatpush2.msra.mxu0 0.0
    %2333 = vmatprep.subr.mxu0 0.0
    %2334 = vmatpush2.msra.mxu0 0.0
    %2335 = vmatprep.subr.mxu0 0.0
    %2336 = vmatpush2.msra.mxu0 0.0
    %2337 = vmatprep.mubr.f32.mxu0 0.0
    %2338 = vmatmul.mubr.f32.gmra.mxu0 %v2201
    %v2339 = vpop.f32.mrf.mxu0
    %v2340 = vadd.f32 %v742, %v2339
    %v2341 = vpop.f32.mrf.mxu0
    %2342 = vdwg.mxu0
    %2343 = vmatprep.subr.mxu0 0.0
    %2344 = vmatpush1.msra.mxu0 0.0
    %2345 = vmatprep.subr.mxu0 0.0
    %2346 = vmatpush1.msra.mxu0 0.0
    %2347 = vmatprep.subr.mxu0 0.0
    %2348 = vmatpush1.msra.mxu0 0.0
    %2349 = vmatprep.subr.mxu0 0.0
    %2350 = vmatpush1.msra.mxu0 0.0
    %2351 = vmatprep.subr.mxu0 0.0
    %2352 = vmatpush1.msra.mxu0 0.0
    %2353 = vmatprep.subr.mxu0 0.0
    %2354 = vmatpush1.msra.mxu0 0.0
    %2355 = vmatprep.subr.mxu0 0.0
    %2356 = vmatpush1.msra.mxu0 0.0
    %2357 = vmatprep.subr.mxu0 0.0
    %2358 = vmatpush1.msra.mxu0 0.0
    %2359 = vmatprep.subr.mxu0 0.0
    %2360 = vmatpush1.msra.mxu0 0.0
    %2361 = vmatprep.subr.mxu0 0.0
    %2362 = vmatpush1.msra.mxu0 0.0
    %2363 = vmatprep.subr.mxu0 0.0
    %2364 = vmatpush1.msra.mxu0 0.0
    %2365 = vmatprep.subr.mxu0 0.0
    %2366 = vmatpush1.msra.mxu0 0.0
    %2367 = vmatprep.subr.mxu0 0.0
    %2368 = vmatpush1.msra.mxu0 %v740
    %2369 = vmatprep.subr.mxu0 0.0
    %2370 = vmatpush1.msra.mxu0 %v739
    %2371 = vmatprep.subr.mxu0 0.0
    %2372 = vmatpush1.msra.mxu0 %v738
    %2373 = vmatprep.subr.mxu0 0.0
    %2374 = vmatpush1.msra.mxu0 %v737
    %2375 = vmatprep.subr.mxu0 0.0
    %2376 = vmatpush2.msra.mxu0 0.0
    %2377 = vmatprep.subr.mxu0 0.0
    %2378 = vmatpush2.msra.mxu0 0.0
    %2379 = vmatprep.subr.mxu0 0.0
    %2380 = vmatpush2.msra.mxu0 0.0
    %2381 = vmatprep.subr.mxu0 0.0
    %2382 = vmatpush2.msra.mxu0 0.0
    %2383 = vmatprep.subr.mxu0 0.0
    %2384 = vmatpush2.msra.mxu0 0.0
    %2385 = vmatprep.subr.mxu0 0.0
    %2386 = vmatpush2.msra.mxu0 0.0
    %2387 = vmatprep.subr.mxu0 0.0
    %2388 = vmatpush2.msra.mxu0 0.0
    %2389 = vmatprep.subr.mxu0 0.0
    %2390 = vmatpush2.msra.mxu0 0.0
    %2391 = vmatprep.subr.mxu0 0.0
    %2392 = vmatpush2.msra.mxu0 0.0
    %2393 = vmatprep.subr.mxu0 0.0
    %2394 = vmatpush2.msra.mxu0 0.0
    %2395 = vmatprep.subr.mxu0 0.0
    %2396 = vmatpush2.msra.mxu0 0.0
    %2397 = vmatprep.subr.mxu0 0.0
    %2398 = vmatpush2.msra.mxu0 0.0
    %2399 = vmatprep.subr.mxu0 0.0
    %2400 = vmatpush2.msra.mxu0 0.0
    %2401 = vmatprep.subr.mxu0 0.0
    %2402 = vmatpush2.msra.mxu0 0.0
    %2403 = vmatprep.subr.mxu0 0.0
    %2404 = vmatpush2.msra.mxu0 0.0
    %2405 = vmatprep.subr.mxu0 0.0
    %2406 = vmatpush2.msra.mxu0 0.0
    %2407 = vmatprep.mubr.f32.mxu0 0.0
    %2408 = vmatmul.mubr.f32.gmra.mxu0 %v2201
    %v2409 = vpop.f32.mrf.mxu0
    %v2410 = vadd.f32 %v743, %v2409
    %v2411 = vpop.f32.mrf.mxu0
    %2412 = vdwg.mxu0
    %v2413 = vadd.f32 %v2195, %v2270
    %v2414 = vxor.u32 %v2413, 2147483648
    %v2415 = vmul.f32 %v2414, 1.442695
    %v2416 = vpow.pop %v2415
    %v2417 = vadd.f32 %v2416, 1.0
    %v2418 = vrcp.pop %v2417
    %v2419 = vmul.f32 1.0, %v2418
    %v2420 = vadd.f32 %v2197, %v2340
    %v2421 = vxor.u32 %v2420, 2147483648
    %v2422 = vmul.f32 %v2421, 1.442695
    %v2423 = vpow.pop %v2422
    %v2424 = vadd.f32 %v2423, 1.0
    %v2425 = vrcp.pop %v2424
    %v2426 = vmul.f32 1.0, %v2425
    %v2427 = vmul.f32 %v2419, %v2410
    %v2428 = vadd.f32 %v2199, %v2427
    %v2429 = vtanh.pop %v2428
    %v2430 = vsub.f32 1.0, %v2426
    %v2431 = vmul.f32 %v2430, %v2429
    %v2432 = vmul.f32 %v2426, %v2191
    %v2433 = vadd.f32 %v2431, %v2432
    %s2434 = scalar_lea.vmem [#allocation14], 6
    %2435 = vst.msk [vmem:[%s2434] sm:$0x1] %vm982, %v2433
    %s2436 = scalar_lea.vmem [#allocation3], 7
    %v2437 = vld [vmem:[%s2436] sm:$0x1]
    %s2438 = scalar_lea.vmem [#allocation4], 7
    %v2439 = vld [vmem:[%s2438] sm:$0x1]
    %s2440 = scalar_lea.vmem [#allocation5], 7
    %v2441 = vld [vmem:[%s2440] sm:$0x1]
    %v2443 = vsel %vm500, %v2433, 0
    %2445 = vmatprep.subr.mxu0 0.0
    %2446 = vmatpush1.msra.mxu0 0.0
    %2447 = vmatprep.subr.mxu0 0.0
    %2448 = vmatpush1.msra.mxu0 0.0
    %2449 = vmatprep.subr.mxu0 0.0
    %2450 = vmatpush1.msra.mxu0 0.0
    %2451 = vmatprep.subr.mxu0 0.0
    %2452 = vmatpush1.msra.mxu0 0.0
    %2453 = vmatprep.subr.mxu0 0.0
    %2454 = vmatpush1.msra.mxu0 0.0
    %2455 = vmatprep.subr.mxu0 0.0
    %2456 = vmatpush1.msra.mxu0 0.0
    %2457 = vmatprep.subr.mxu0 0.0
    %2458 = vmatpush1.msra.mxu0 0.0
    %2459 = vmatprep.subr.mxu0 0.0
    %2460 = vmatpush1.msra.mxu0 0.0
    %2461 = vmatprep.subr.mxu0 0.0
    %2462 = vmatpush1.msra.mxu0 0.0
    %2463 = vmatprep.subr.mxu0 0.0
    %2464 = vmatpush1.msra.mxu0 0.0
    %2465 = vmatprep.subr.mxu0 0.0
    %2466 = vmatpush1.msra.mxu0 0.0
    %2467 = vmatprep.subr.mxu0 0.0
    %2468 = vmatpush1.msra.mxu0 0.0
    %2469 = vmatprep.subr.mxu0 0.0
    %2470 = vmatpush1.msra.mxu0 %v732
    %2471 = vmatprep.subr.mxu0 0.0
    %2472 = vmatpush1.msra.mxu0 %v731
    %2473 = vmatprep.subr.mxu0 0.0
    %2474 = vmatpush1.msra.mxu0 %v730
    %2475 = vmatprep.subr.mxu0 0.0
    %2476 = vmatpush1.msra.mxu0 %v729
    %2477 = vmatprep.subr.mxu0 0.0
    %2478 = vmatpush2.msra.mxu0 0.0
    %2479 = vmatprep.subr.mxu0 0.0
    %2480 = vmatpush2.msra.mxu0 0.0
    %2481 = vmatprep.subr.mxu0 0.0
    %2482 = vmatpush2.msra.mxu0 0.0
    %2483 = vmatprep.subr.mxu0 0.0
    %2484 = vmatpush2.msra.mxu0 0.0
    %2485 = vmatprep.subr.mxu0 0.0
    %2486 = vmatpush2.msra.mxu0 0.0
    %2487 = vmatprep.subr.mxu0 0.0
    %2488 = vmatpush2.msra.mxu0 0.0
    %2489 = vmatprep.subr.mxu0 0.0
    %2490 = vmatpush2.msra.mxu0 0.0
    %2491 = vmatprep.subr.mxu0 0.0
    %2492 = vmatpush2.msra.mxu0 0.0
    %2493 = vmatprep.subr.mxu0 0.0
    %2494 = vmatpush2.msra.mxu0 0.0
    %2495 = vmatprep.subr.mxu0 0.0
    %2496 = vmatpush2.msra.mxu0 0.0
    %2497 = vmatprep.subr.mxu0 0.0
    %2498 = vmatpush2.msra.mxu0 0.0
    %2499 = vmatprep.subr.mxu0 0.0
    %2500 = vmatpush2.msra.mxu0 0.0
    %2501 = vmatprep.subr.mxu0 0.0
    %2502 = vmatpush2.msra.mxu0 0.0
    %2503 = vmatprep.subr.mxu0 0.0
    %2504 = vmatpush2.msra.mxu0 0.0
    %2505 = vmatprep.subr.mxu0 0.0
    %2506 = vmatpush2.msra.mxu0 0.0
    %2507 = vmatprep.subr.mxu0 0.0
    %2508 = vmatpush2.msra.mxu0 0.0
    %2509 = vmatprep.mubr.f32.mxu0 0.0
    %2510 = vmatmul.mubr.f32.gmra.mxu0 %v2443
    %v2511 = vpop.f32.mrf.mxu0
    %v2512 = vadd.f32 %v741, %v2511
    %v2513 = vpop.f32.mrf.mxu0
    %2514 = vdwg.mxu0
    %2515 = vmatprep.subr.mxu0 0.0
    %2516 = vmatpush1.msra.mxu0 0.0
    %2517 = vmatprep.subr.mxu0 0.0
    %2518 = vmatpush1.msra.mxu0 0.0
    %2519 = vmatprep.subr.mxu0 0.0
    %2520 = vmatpush1.msra.mxu0 0.0
    %2521 = vmatprep.subr.mxu0 0.0
    %2522 = vmatpush1.msra.mxu0 0.0
    %2523 = vmatprep.subr.mxu0 0.0
    %2524 = vmatpush1.msra.mxu0 0.0
    %2525 = vmatprep.subr.mxu0 0.0
    %2526 = vmatpush1.msra.mxu0 0.0
    %2527 = vmatprep.subr.mxu0 0.0
    %2528 = vmatpush1.msra.mxu0 0.0
    %2529 = vmatprep.subr.mxu0 0.0
    %2530 = vmatpush1.msra.mxu0 0.0
    %2531 = vmatprep.subr.mxu0 0.0
    %2532 = vmatpush1.msra.mxu0 0.0
    %2533 = vmatprep.subr.mxu0 0.0
    %2534 = vmatpush1.msra.mxu0 0.0
    %2535 = vmatprep.subr.mxu0 0.0
    %2536 = vmatpush1.msra.mxu0 0.0
    %2537 = vmatprep.subr.mxu0 0.0
    %2538 = vmatpush1.msra.mxu0 0.0
    %2539 = vmatprep.subr.mxu0 0.0
    %2540 = vmatpush1.msra.mxu0 %v736
    %2541 = vmatprep.subr.mxu0 0.0
    %2542 = vmatpush1.msra.mxu0 %v735
    %2543 = vmatprep.subr.mxu0 0.0
    %2544 = vmatpush1.msra.mxu0 %v734
    %2545 = vmatprep.subr.mxu0 0.0
    %2546 = vmatpush1.msra.mxu0 %v733
    %2547 = vmatprep.subr.mxu0 0.0
    %2548 = vmatpush2.msra.mxu0 0.0
    %2549 = vmatprep.subr.mxu0 0.0
    %2550 = vmatpush2.msra.mxu0 0.0
    %2551 = vmatprep.subr.mxu0 0.0
    %2552 = vmatpush2.msra.mxu0 0.0
    %2553 = vmatprep.subr.mxu0 0.0
    %2554 = vmatpush2.msra.mxu0 0.0
    %2555 = vmatprep.subr.mxu0 0.0
    %2556 = vmatpush2.msra.mxu0 0.0
    %2557 = vmatprep.subr.mxu0 0.0
    %2558 = vmatpush2.msra.mxu0 0.0
    %2559 = vmatprep.subr.mxu0 0.0
    %2560 = vmatpush2.msra.mxu0 0.0
    %2561 = vmatprep.subr.mxu0 0.0
    %2562 = vmatpush2.msra.mxu0 0.0
    %2563 = vmatprep.subr.mxu0 0.0
    %2564 = vmatpush2.msra.mxu0 0.0
    %2565 = vmatprep.subr.mxu0 0.0
    %2566 = vmatpush2.msra.mxu0 0.0
    %2567 = vmatprep.subr.mxu0 0.0
    %2568 = vmatpush2.msra.mxu0 0.0
    %2569 = vmatprep.subr.mxu0 0.0
    %2570 = vmatpush2.msra.mxu0 0.0
    %2571 = vmatprep.subr.mxu0 0.0
    %2572 = vmatpush2.msra.mxu0 0.0
    %2573 = vmatprep.subr.mxu0 0.0
    %2574 = vmatpush2.msra.mxu0 0.0
    %2575 = vmatprep.subr.mxu0 0.0
    %2576 = vmatpush2.msra.mxu0 0.0
    %2577 = vmatprep.subr.mxu0 0.0
    %2578 = vmatpush2.msra.mxu0 0.0
    %2579 = vmatprep.mubr.f32.mxu0 0.0
    %2580 = vmatmul.mubr.f32.gmra.mxu0 %v2443
    %v2581 = vpop.f32.mrf.mxu0
    %v2582 = vadd.f32 %v742, %v2581
    %v2583 = vpop.f32.mrf.mxu0
    %2584 = vdwg.mxu0
    %2585 = vmatprep.subr.mxu0 0.0
    %2586 = vmatpush1.msra.mxu0 0.0
    %2587 = vmatprep.subr.mxu0 0.0
    %2588 = vmatpush1.msra.mxu0 0.0
    %2589 = vmatprep.subr.mxu0 0.0
    %2590 = vmatpush1.msra.mxu0 0.0
    %2591 = vmatprep.subr.mxu0 0.0
    %2592 = vmatpush1.msra.mxu0 0.0
    %2593 = vmatprep.subr.mxu0 0.0
    %2594 = vmatpush1.msra.mxu0 0.0
    %2595 = vmatprep.subr.mxu0 0.0
    %2596 = vmatpush1.msra.mxu0 0.0
    %2597 = vmatprep.subr.mxu0 0.0
    %2598 = vmatpush1.msra.mxu0 0.0
    %2599 = vmatprep.subr.mxu0 0.0
    %2600 = vmatpush1.msra.mxu0 0.0
    %2601 = vmatprep.subr.mxu0 0.0
    %2602 = vmatpush1.msra.mxu0 0.0
    %2603 = vmatprep.subr.mxu0 0.0
    %2604 = vmatpush1.msra.mxu0 0.0
    %2605 = vmatprep.subr.mxu0 0.0
    %2606 = vmatpush1.msra.mxu0 0.0
    %2607 = vmatprep.subr.mxu0 0.0
    %2608 = vmatpush1.msra.mxu0 0.0
    %2609 = vmatprep.subr.mxu0 0.0
    %2610 = vmatpush1.msra.mxu0 %v740
    %2611 = vmatprep.subr.mxu0 0.0
    %2612 = vmatpush1.msra.mxu0 %v739
    %2613 = vmatprep.subr.mxu0 0.0
    %2614 = vmatpush1.msra.mxu0 %v738
    %2615 = vmatprep.subr.mxu0 0.0
    %2616 = vmatpush1.msra.mxu0 %v737
    %2617 = vmatprep.subr.mxu0 0.0
    %2618 = vmatpush2.msra.mxu0 0.0
    %2619 = vmatprep.subr.mxu0 0.0
    %2620 = vmatpush2.msra.mxu0 0.0
    %2621 = vmatprep.subr.mxu0 0.0
    %2622 = vmatpush2.msra.mxu0 0.0
    %2623 = vmatprep.subr.mxu0 0.0
    %2624 = vmatpush2.msra.mxu0 0.0
    %2625 = vmatprep.subr.mxu0 0.0
    %2626 = vmatpush2.msra.mxu0 0.0
    %2627 = vmatprep.subr.mxu0 0.0
    %2628 = vmatpush2.msra.mxu0 0.0
    %2629 = vmatprep.subr.mxu0 0.0
    %2630 = vmatpush2.msra.mxu0 0.0
    %2631 = vmatprep.subr.mxu0 0.0
    %2632 = vmatpush2.msra.mxu0 0.0
    %2633 = vmatprep.subr.mxu0 0.0
    %2634 = vmatpush2.msra.mxu0 0.0
    %2635 = vmatprep.subr.mxu0 0.0
    %2636 = vmatpush2.msra.mxu0 0.0
    %2637 = vmatprep.subr.mxu0 0.0
    %2638 = vmatpush2.msra.mxu0 0.0
    %2639 = vmatprep.subr.mxu0 0.0
    %2640 = vmatpush2.msra.mxu0 0.0
    %2641 = vmatprep.subr.mxu0 0.0
    %2642 = vmatpush2.msra.mxu0 0.0
    %2643 = vmatprep.subr.mxu0 0.0
    %2644 = vmatpush2.msra.mxu0 0.0
    %2645 = vmatprep.subr.mxu0 0.0
    %2646 = vmatpush2.msra.mxu0 0.0
    %2647 = vmatprep.subr.mxu0 0.0
    %2648 = vmatpush2.msra.mxu0 0.0
    %2649 = vmatprep.mubr.f32.mxu0 0.0
    %2650 = vmatmul.mubr.f32.gmra.mxu0 %v2443
    %v2651 = vpop.f32.mrf.mxu0
    %v2652 = vadd.f32 %v743, %v2651
    %v2653 = vpop.f32.mrf.mxu0
    %2654 = vdwg.mxu0
    %v2655 = vadd.f32 %v2437, %v2512
    %v2656 = vxor.u32 %v2655, 2147483648
    %v2657 = vmul.f32 %v2656, 1.442695
    %v2658 = vpow.pop %v2657
    %v2659 = vadd.f32 %v2658, 1.0
    %v2660 = vrcp.pop %v2659
    %v2661 = vmul.f32 1.0, %v2660
    %v2662 = vadd.f32 %v2439, %v2582
    %v2663 = vxor.u32 %v2662, 2147483648
    %v2664 = vmul.f32 %v2663, 1.442695
    %v2665 = vpow.pop %v2664
    %v2666 = vadd.f32 %v2665, 1.0
    %v2667 = vrcp.pop %v2666
    %v2668 = vmul.f32 1.0, %v2667
    %v2669 = vmul.f32 %v2661, %v2652
    %v2670 = vadd.f32 %v2441, %v2669
    %v2671 = vtanh.pop %v2670
    %v2672 = vsub.f32 1.0, %v2668
    %v2673 = vmul.f32 %v2672, %v2671
    %v2674 = vmul.f32 %v2668, %v2433
    %v2675 = vadd.f32 %v2673, %v2674
    %s2676 = scalar_lea.vmem [#allocation14], 7
    %2677 = vst.msk [vmem:[%s2676] sm:$0x1] %vm982, %v2675
    // Predicated region
    $region270: #{tpu_custom_call.1} parent=1 // pred_check
      _
    $region271: #{tpu_custom_call.1} parent=1 // pred_check_branch
      %2679 = sbr.rel (0) target = $region273
    $region272: #{tpu_custom_call.1} parent=1 // pred_region
      %s2681 = ssub.s32 128, 128
      %2682 = vsyncadd [#allocation11], %s2681
      %s2684 = sshll.u32 [#allocation14], 4
      %s2685 = int_to_ptr.vmem [resolvable:$true] %s2684
      %2687 = dma.vmem_to_hbm [thread:$0]  %s2685, 128, %s7, [#allocation11]
    $region273: #{tpu_custom_call.1} parent=1 // pred_fallthru
      _
    // Predicated region
    $region274: #{tpu_custom_call.1} parent=1 // pred_check
      _
    $region275: #{tpu_custom_call.1} parent=1 // pred_check_branch
      %2689 = sbr.rel (0) target = $region277
    $region276: #{tpu_custom_call.1} parent=1 // pred_region
      %2690 = dma.done [#allocation11], 128
    $region277: #{tpu_custom_call.1} parent=1 // pred_fallthru
      _
    %2691 = vsyncpa [#allocation10], 1
    %2692 = vsyncpa [#allocation13], 1
    %2693 = vsyncpa [#allocation11], 1
  %2694 = vsyncmov [#allocation6]
  %s2695 = vpop.sfrf %2694
  %p2696 = scmp.eq.s32.totalorder %s2695, 0
  %p2697 = pneg %p2696
  %2699 = shalt.err (%p2697)
  %s2700 = scalar_lea.sflag [#allocation6], 1
  %2701 = vsyncmov %s2700
  %s2702 = vpop.sfrf %2701
  %p2703 = scmp.eq.s32.totalorder %s2702, 0
  %p2704 = pneg %p2703
  %2706 = shalt.err (%p2704)
  %s2707 = scalar_lea.sflag [#allocation6], 2
  %2708 = vsyncmov %s2707
  %s2709 = vpop.sfrf %2708
  %p2710 = scmp.eq.s32.totalorder %s2709, 0
  %p2711 = pneg %p2710
  %2713 = shalt.err (%p2711)
  %s2714 = scalar_lea.sflag [#allocation6], 3
  %2715 = vsyncmov %s2714
  %s2716 = vpop.sfrf %2715
  %p2717 = scmp.eq.s32.totalorder %s2716, 0
  %p2718 = pneg %p2717
  %2720 = shalt.err (%p2718)
  %s2721 = scalar_lea.sflag [#allocation6], 4
  %2722 = vsyncmov %s2721
  %s2723 = vpop.sfrf %2722
  %p2724 = scmp.eq.s32.totalorder %s2723, 0
  %p2725 = pneg %p2724
  %2727 = shalt.err (%p2725)
  %s2728 = scalar_lea.sflag [#allocation6], 5
  %2729 = vsyncmov %s2728
  %s2730 = vpop.sfrf %2729
  %p2731 = scmp.eq.s32.totalorder %s2730, 0
  %p2732 = pneg %p2731
  %2734 = shalt.err (%p2732)
  %s2735 = scalar_lea.sflag [#allocation6], 6
  %2736 = vsyncmov %s2735
  %s2737 = vpop.sfrf %2736
  %p2738 = scmp.eq.s32.totalorder %s2737, 0
  %p2739 = pneg %p2738
  %2741 = shalt.err (%p2739)
  %s2742 = scalar_lea.sflag [#allocation6], 7
  %2743 = vsyncmov %s2742
  %s2744 = vpop.sfrf %2743
  %p2745 = scmp.eq.s32.totalorder %s2744, 0
  %p2746 = pneg %p2745
  %2748 = shalt.err (%p2746)

</llo_original>
